<compile_context>
chip_gen: v6e
topology: v6e:2x2x1
jax: 0.10.0
libtpu: 0.0.40
codegen_flags: <defaults>
</compile_context>

<pallas_src>
import functools

import jax
import jax.numpy as jnp
from jax.experimental import pallas as pl
from jax.experimental.pallas import tpu as pltpu


def _round_up(x, m):
    return -(-x // m) * m


def _nbytes(shape, dtype):
    n = 1
    for s in shape:
        n *= s
    return n * jnp.dtype(dtype).itemsize


def _reorder_gates_rows(w, hidden_dim):
    """Reorder PyTorch gate-row order (i, f, g, o) -> (i, f, o, g) along axis 0."""
    h = hidden_dim
    return jnp.concatenate([w[: 2 * h], w[3 * h: 4 * h], w[2 * h: 3 * h]], axis=0)


# ----------------------------------------------------------------------------
# Fused kernel. Grid = (num_vocab_tiles,).
#   step j == 0 : run both LSTM layers (hoisted input projection + serial recurrence),
#                 leaving the final hidden sequence in VMEM scratch and writing h_n / c_n.
#   every step  : one lane-dense (T*Bp, H) @ (H, Vtile) FC matmul for this vocab tile.
# Gate activations match torch.nn.LSTM (columns pre-reordered to i, f, o, g).
# ----------------------------------------------------------------------------
def _fused_lstm_fc_kernel(num_layers, x_ref, *refs):
    layer_refs = refs[: 3 * num_layers]
    wfc_ref, bfc_ref = refs[3 * num_layers: 3 * num_layers + 2]
    logits_ref, hn_ref, cn_ref = refs[3 * num_layers + 2: 3 * num_layers + 5]
    g_sc, hseq_sc = refs[3 * num_layers + 5: 3 * num_layers + 7]

    T, Bp, E = x_ref.shape
    H = hseq_sc.shape[-1]
    unroll = min(T, 8)

    @pl.when(pl.program_id(0) == 0)
    def _recurrence():
        def run_layer(layer_idx, x_flat, wih_ref, whh_ref, b_ref):
            # (1) Hoisted input projection for ALL timesteps (bf16 operands, f32 acc).
            g = jnp.dot(x_flat, wih_ref[...],
                        preferred_element_type=jnp.float32) + b_ref[...]
            g_sc[...] = g.reshape(T, Bp, 4 * H).astype(g_sc.dtype)

            whh = whh_ref[...]  # hoisted bf16 weight load, reused every step

            # (2) Serial recurrence: only h @ W_hh + G[t] + gates on the critical path.
            def step(t, carry):
                h, c = carry  # f32 carries
                gates = (g_sc[t].astype(jnp.float32)
                         + jnp.dot(h.astype(whh.dtype), whh,
                                   preferred_element_type=jnp.float32))
                sig = jax.nn.sigmoid(gates[:, : 3 * H])      # i, f, o in one EUP pass
                i_g = sig[:, 0 * H: 1 * H]
                f_g = sig[:, 1 * H: 2 * H]
                o_g = sig[:, 2 * H: 3 * H]
                g_g = jnp.tanh(gates[:, 3 * H: 4 * H])
                c_new = f_g * c + i_g * g_g
                h_new = o_g * jnp.tanh(c_new)
                hseq_sc[t] = h_new.astype(hseq_sc.dtype)
                return h_new, c_new

            zero = jnp.zeros((Bp, H), jnp.float32)
            h_fin, c_fin = jax.lax.fori_loop(0, T, step, (zero, zero), unroll=unroll)
            hn_ref[layer_idx] = h_fin.astype(hn_ref.dtype)
            cn_ref[layer_idx] = c_fin.astype(cn_ref.dtype)

        # Layer 0 consumes embedded inputs; layers >= 1 consume the previous layer's hidden
        # sequence straight from VMEM scratch (no HBM roundtrip).
        run_layer(0, x_ref[...].reshape(T * Bp, E),
                  layer_refs[0], layer_refs[1], layer_refs[2])
        for l in range(1, num_layers):
            x_flat = hseq_sc[...].reshape(T * Bp, H)
            run_layer(l, x_flat,
                      layer_refs[3 * l], layer_refs[3 * l + 1], layer_refs[3 * l + 2])

    # (3) FC head for this vocab tile: one lane-dense matmul over every (t, b) position.
    h_all = hseq_sc[...].reshape(T * Bp, H)
    tv = wfc_ref.shape[-1]
    logits = (jnp.dot(h_all, wfc_ref[...], preferred_element_type=jnp.float32)
              + bfc_ref[...])
    logits_ref[...] = logits.reshape(T, Bp, tv).astype(logits_ref.dtype)


# ----------------------------------------------------------------------------
# Parameter construction (deterministic, mirrors PyTorch module shapes / gate order).
# ----------------------------------------------------------------------------
def init_params(key, vocab_size, embedding_dim, hidden_dim, num_layers):
    keys = jax.random.split(key, 3 + 4 * num_layers)
    ki = iter(keys)
    params = {"embedding": jax.random.normal(
        next(ki), (vocab_size, embedding_dim), jnp.float32) * 0.1}
    layers = []
    for layer in range(num_layers):
        in_dim = embedding_dim if layer == 0 else hidden_dim
        layers.append({
            "w_ih": jax.random.normal(next(ki), (4 * hidden_dim, in_dim), jnp.float32) * 0.1,
            "w_hh": jax.random.normal(next(ki), (4 * hidden_dim, hidden_dim), jnp.float32) * 0.1,
            "b_ih": jax.random.normal(next(ki), (4 * hidden_dim,), jnp.float32) * 0.1,
            "b_hh": jax.random.normal(next(ki), (4 * hidden_dim,), jnp.float32) * 0.1,
        })
    params["lstm"] = layers
    params["fc_w"] = jax.random.normal(next(ki), (vocab_size, hidden_dim), jnp.float32) * 0.1
    params["fc_b"] = jax.random.normal(next(ki), (vocab_size,), jnp.float32) * 0.1
    return params


# ----------------------------------------------------------------------------
# Forward wrapper: embedding gather (glue) -> single fused Pallas kernel (vocab-tiled grid).
# ----------------------------------------------------------------------------
def lstm_generator_forward(params, tokens):
    """tokens: (B, T) int32. Returns (logits (B, T, V) bf16, (h_n, c_n) each (L, B, H) f32)."""
    B, T = tokens.shape
    emb = params["embedding"]
    V, E = emb.shape
    layers = params["lstm"]
    L = len(layers)
    H = layers[0]["w_hh"].shape[1]

    Bp = _round_up(B, 16)            # sublane-aligned batch (bf16 packs 16 rows / vreg)
    Vp = _round_up(V, 128)           # lane-dense FC output
    TV = 512 if Vp % 512 == 0 else (256 if Vp % 256 == 0 else 128)
    NV = Vp // TV

    # Embedding gather indexed with tokens.T -> time-major (T, B, E) bf16 directly.
    x = emb.astype(jnp.bfloat16)[tokens.T]                   # (T, B, E)
    if Bp != B:
        x = jnp.pad(x, ((0, 0), (0, Bp - B), (0, 0)))

    # Layer weights: gate reorder (i,f,g,o) -> (i,f,o,g), transpose, bf16 (biases stay f32).
    layer_args, layer_specs = [], []
    for layer in layers:
        w_ih_t = _reorder_gates_rows(layer["w_ih"], H).T.astype(jnp.bfloat16)   # (in, 4H)
        w_hh_t = _reorder_gates_rows(layer["w_hh"], H).T.astype(jnp.bfloat16)   # (H, 4H)
        bias = _reorder_gates_rows(layer["b_ih"] + layer["b_hh"], H).reshape(1, 4 * H)
        layer_args += [w_ih_t, w_hh_t, bias.astype(jnp.float32)]
        layer_specs += [pl.BlockSpec(w_ih_t.shape, lambda j: (0, 0)),
                        pl.BlockSpec(w_hh_t.shape, lambda j: (0, 0)),
                        pl.BlockSpec((1, 4 * H), lambda j: (0, 0))]

    wfc_t = params["fc_w"].T.astype(jnp.bfloat16)            # (H, V)
    bfc = params["fc_b"].reshape(1, V).astype(jnp.float32)
    if Vp != V:
        wfc_t = jnp.pad(wfc_t, ((0, 0), (0, Vp - V)))
        bfc = jnp.pad(bfc, ((0, 0), (0, Vp - V)))

    args = [x] + layer_args + [wfc_t, bfc]
    in_specs = ([pl.BlockSpec((T, Bp, E), lambda j: (0, 0, 0))] + layer_specs
                + [pl.BlockSpec((H, TV), lambda j: (0, j)),
                   pl.BlockSpec((1, TV), lambda j: (0, j))])

    out_shape = (jax.ShapeDtypeStruct((T, Bp, Vp), jnp.bfloat16),
                 jax.ShapeDtypeStruct((L, Bp, H), jnp.float32),
                 jax.ShapeDtypeStruct((L, Bp, H), jnp.float32))
    out_specs = [pl.BlockSpec((T, Bp, TV), lambda j: (0, 0, j)),
                 pl.BlockSpec((L, Bp, H), lambda j: (0, 0, 0)),
                 pl.BlockSpec((L, Bp, H), lambda j: (0, 0, 0))]

    # VMEM budget: resident buffers (double-buffered in/out tiles) + scratch + headroom.
    vmem = 2 * _nbytes((T, Bp, E), jnp.bfloat16)
    for layer in layers:
        in_dim = layer["w_ih"].shape[1]
        vmem += 2 * (_nbytes((in_dim, 4 * H), jnp.bfloat16)
                     + _nbytes((H, 4 * H), jnp.bfloat16)
                     + _nbytes((1, 4 * H), jnp.float32))
    vmem += 2 * (_nbytes((H, TV), jnp.bfloat16) + _nbytes((1, TV), jnp.float32))
    vmem += 2 * _nbytes((T, Bp, TV), jnp.bfloat16)
    vmem += 4 * _nbytes((L, Bp, H), jnp.float32)
    vmem += _nbytes((T, Bp, 4 * H), jnp.bfloat16) + _nbytes((T, Bp, H), jnp.bfloat16)
    vmem_limit = min(int(vmem * 1.5) + (4 << 20), 128 << 20)

    kernel = functools.partial(_fused_lstm_fc_kernel, L)
    logits_p, h_n_p, c_n_p = pl.pallas_call(
        kernel,
        out_shape=out_shape,
        grid_spec=pltpu.PrefetchScalarGridSpec(
            num_scalar_prefetch=0,
            grid=(NV,),                 # recurrence at j==0, FC head streamed per vocab tile
            in_specs=in_specs,
            out_specs=out_specs,
            scratch_shapes=[pltpu.VMEM((T, Bp, 4 * H), jnp.bfloat16),   # hoisted gate pre-acts
                            pltpu.VMEM((T, Bp, H), jnp.bfloat16)]),     # layer hidden sequence
        compiler_params=pltpu.CompilerParams(
            dimension_semantics=("arbitrary",),     # vocab tiles reuse the recurrence scratch
            vmem_limit_bytes=vmem_limit),
    )(*args)

    logits = jnp.transpose(logits_p[:, :B, :V], (1, 0, 2))   # (B, T, V) batch-first, bf16
    hidden = (h_n_p[:, :B, :], c_n_p[:, :B, :])
    return logits, hidden


if __name__ == "__main__":
    vocab_size = 64
    embedding_dim = 128
    hidden_dim = 128
    num_layers = 2
    batch = 2
    seq = 8

    key = jax.random.PRNGKey(0)
    k_params, k_tok = jax.random.split(key)
    params = init_params(k_params, vocab_size, embedding_dim, hidden_dim, num_layers)
    tokens = jax.random.randint(k_tok, (batch, seq), 0, vocab_size, dtype=jnp.int32)

    logits, (h_n, c_n) = jax.jit(lstm_generator_forward)(params, tokens)
    jax.block_until_ready((logits, h_n, c_n))

    assert logits.shape == (batch, seq, vocab_size)
    assert h_n.shape == (num_layers, batch, hidden_dim)
    assert c_n.shape == (num_layers, batch, hidden_dim)
    assert bool(jnp.all(jnp.isfinite(logits.astype(jnp.float32))))
    assert bool(jnp.all(jnp.isfinite(h_n))) and bool(jnp.all(jnp.isfinite(c_n)))
    print("KERNEL_OK")
</pallas_src>

<mosaic_0001>
module attributes {stable_mosaic.version = 11 : i64} {
  func.func @_fused_lstm_fc_kernel(%arg0: i32, %arg1: memref<8x16x128xbf16, #tpu.memory_space<vmem>>, %arg2: memref<128x512xbf16, #tpu.memory_space<vmem>>, %arg3: memref<128x512xbf16, #tpu.memory_space<vmem>>, %arg4: memref<1x512xf32, #tpu.memory_space<vmem>>, %arg5: memref<128x512xbf16, #tpu.memory_space<vmem>>, %arg6: memref<128x512xbf16, #tpu.memory_space<vmem>>, %arg7: memref<1x512xf32, #tpu.memory_space<vmem>>, %arg8: memref<128x128xbf16, #tpu.memory_space<vmem>>, %arg9: memref<1x128xf32, #tpu.memory_space<vmem>>, %arg10: memref<8x16x128xbf16, #tpu.memory_space<vmem>>, %arg11: memref<2x16x128xf32, #tpu.memory_space<vmem>>, %arg12: memref<2x16x128xf32, #tpu.memory_space<vmem>>, %arg13: memref<8x16x512xbf16, #tpu.memory_space<vmem>>, %arg14: memref<8x16x128xbf16, #tpu.memory_space<vmem>>) attributes {dimension_semantics = [#tpu.dimension_semantics<arbitrary>], iteration_bounds = array<i64: 1>, scalar_prefetch = 0 : i64, scratch_operands = 2 : i64, tpu.core_type = #tpu.core_type<tc>, window_params = [{pipeline_mode = #tpu.pipeline_mode<synchronous>, transform_indices = @transform_0, window_bounds = array<i64: 8, 16, 128>}, {pipeline_mode = #tpu.pipeline_mode<synchronous>, transform_indices = @transform_1, window_bounds = array<i64: 128, 512>}, {pipeline_mode = #tpu.pipeline_mode<synchronous>, transform_indices = @transform_2, window_bounds = array<i64: 128, 512>}, {pipeline_mode = #tpu.pipeline_mode<synchronous>, transform_indices = @transform_3, window_bounds = array<i64: 1, 512>}, {pipeline_mode = #tpu.pipeline_mode<synchronous>, transform_indices = @transform_4, window_bounds = array<i64: 128, 512>}, {pipeline_mode = #tpu.pipeline_mode<synchronous>, transform_indices = @transform_5, window_bounds = array<i64: 128, 512>}, {pipeline_mode = #tpu.pipeline_mode<synchronous>, transform_indices = @transform_6, window_bounds = array<i64: 1, 512>}, {transform_indices = @transform_7, window_bounds = array<i64: 128, 128>}, {transform_indices = @transform_8, window_bounds = array<i64: 1, 128>}, {transform_indices = @transform_9, window_bounds = array<i64: 8, 16, 128>}, {pipeline_mode = #tpu.pipeline_mode<synchronous>, transform_indices = @transform_10, window_bounds = array<i64: 2, 16, 128>}, {pipeline_mode = #tpu.pipeline_mode<synchronous>, transform_indices = @transform_11, window_bounds = array<i64: 2, 16, 128>}]} {
    %c0_i32 = arith.constant 0 : i32
    %0 = arith.cmpi eq, %arg0, %c0_i32 : i32
    %1 = arith.extui %0 : i1 to i32
    %c0_i32_0 = arith.constant 0 : i32
    %2 = arith.cmpi ne, %1, %c0_i32_0 : i32
    scf.if %2 {
      %c0_10 = arith.constant 0 : index
      %c0_11 = arith.constant 0 : index
      %c0_12 = arith.constant 0 : index
      %13 = vector.load %arg1[%c0_10, %c0_11, %c0_12] : memref<8x16x128xbf16, #tpu.memory_space<vmem>>, vector<8x16x128xbf16>
      %14 = vector.shape_cast %13 : vector<8x16x128xbf16> to vector<128x128xbf16>
      %c0_13 = arith.constant 0 : index
      %c0_14 = arith.constant 0 : index
      %15 = vector.load %arg2[%c0_13, %c0_14] : memref<128x512xbf16, #tpu.memory_space<vmem>>, vector<128x512xbf16>
      %cst_15 = arith.constant dense<0.000000e+00> : vector<128x512xf32>
      %16 = tpu.matmul %14, %15, %cst_15 {dimension_numbers = #tpu.dot_dimension_numbers<[1], [0], [0], [1], [0, 0, 1, 1], [], []>} : vector<128x128xbf16>, vector<128x512xbf16>, vector<128x512xf32> -> vector<128x512xf32>
      %c0_16 = arith.constant 0 : index
      %c0_17 = arith.constant 0 : index
      %17 = vector.load %arg4[%c0_16, %c0_17] : memref<1x512xf32, #tpu.memory_space<vmem>>, vector<1x512xf32>
      %18 = vector.broadcast %17 : vector<1x512xf32> to vector<128x512xf32>
      %19 = arith.addf %16, %18 : vector<128x512xf32>
      %20 = vector.shape_cast %19 : vector<128x512xf32> to vector<8x16x512xf32>
      %21 = arith.truncf %20 : vector<8x16x512xf32> to vector<8x16x512xbf16>
      %c0_18 = arith.constant 0 : index
      %c0_19 = arith.constant 0 : index
      %c0_20 = arith.constant 0 : index
      %22 = vector.load %arg13[%c0_18, %c0_19, %c0_20] : memref<8x16x512xbf16, #tpu.memory_space<vmem>>, vector<8x16x512xbf16>
      tpu.vector_store %arg13[%c0_18, %c0_19, %c0_20], %21 {strides = array<i32>} : memref<8x16x512xbf16, #tpu.memory_space<vmem>>, vector<8x16x512xbf16>,
      %c0_21 = arith.constant 0 : index
      %c0_22 = arith.constant 0 : index
      %23 = vector.load %arg3[%c0_21, %c0_22] : memref<128x512xbf16, #tpu.memory_space<vmem>>, vector<128x512xbf16>
      %cst_23 = arith.constant 0.000000e+00 : f32
      %24 = vector.broadcast %cst_23 : f32 to vector<16x128xf32>
      %c0_i32_24 = arith.constant 0 : i32
      %25 = arith.index_cast %c0_i32_24 : i32 to index
      %c0_25 = arith.constant 0 : index
      %c0_26 = arith.constant 0 : index
      %26 = vector.load %arg13[%25, %c0_25, %c0_26] : memref<8x16x512xbf16, #tpu.memory_space<vmem>>, vector<1x16x512xbf16>
      %27 = vector.shape_cast %26 : vector<1x16x512xbf16> to vector<16x512xbf16>
      %28 = arith.extf %27 : vector<16x512xbf16> to vector<16x512xf32>
      %29 = arith.truncf %24 : vector<16x128xf32> to vector<16x128xbf16>
      %cst_27 = arith.constant dense<0.000000e+00> : vector<16x512xf32>
      %30 = tpu.matmul %29, %23, %cst_27 {dimension_numbers = #tpu.dot_dimension_numbers<[1], [0], [0], [1], [0, 0, 1, 1], [], []>} : vector<16x128xbf16>, vector<128x512xbf16>, vector<16x512xf32> -> vector<16x512xf32>
      %31 = arith.addf %28, %30 : vector<16x512xf32>
      %32 = vector.extract_strided_slice %31 {offsets = [0, 0], sizes = [16, 384], strides = [1, 1]} : vector<16x512xf32> to vector<16x384xf32>
      %33 = arith.negf %32 : vector<16x384xf32>
      %34 = math.exp %33 : vector<16x384xf32>
      %cst_28 = arith.constant 1.000000e+00 : f32
      %35 = vector.broadcast %cst_28 : f32 to vector<16x384xf32>
      %36 = arith.addf %35, %34 : vector<16x384xf32>
      %37 = arith.divf %35, %36 : vector<16x384xf32>
      %38 = vector.extract_strided_slice %37 {offsets = [0, 0], sizes = [16, 128], strides = [1, 1]} : vector<16x384xf32> to vector<16x128xf32>
      %39 = vector.extract_strided_slice %37 {offsets = [0, 128], sizes = [16, 128], strides = [1, 1]} : vector<16x384xf32> to vector<16x128xf32>
      %40 = vector.extract_strided_slice %37 {offsets = [0, 256], sizes = [16, 128], strides = [1, 1]} : vector<16x384xf32> to vector<16x128xf32>
      %41 = vector.extract_strided_slice %31 {offsets = [0, 384], sizes = [16, 128], strides = [1, 1]} : vector<16x512xf32> to vector<16x128xf32>
      %42 = math.tanh %41 : vector<16x128xf32>
      %43 = arith.mulf %39, %24 : vector<16x128xf32>
      %44 = arith.mulf %38, %42 : vector<16x128xf32>
      %45 = arith.addf %43, %44 : vector<16x128xf32>
      %46 = math.tanh %45 : vector<16x128xf32>
      %47 = arith.mulf %40, %46 : vector<16x128xf32>
      %48 = arith.truncf %47 : vector<16x128xf32> to vector<16x128xbf16>
      %49 = arith.index_cast %c0_i32_24 : i32 to index
      %c0_29 = arith.constant 0 : index
      %c0_30 = arith.constant 0 : index
      %50 = vector.load %arg14[%49, %c0_29, %c0_30] : memref<8x16x128xbf16, #tpu.memory_space<vmem>>, vector<1x16x128xbf16>
      %51 = vector.shape_cast %50 : vector<1x16x128xbf16> to vector<16x128xbf16>
      %52 = vector.shape_cast %48 : vector<16x128xbf16> to vector<1x16x128xbf16>
      tpu.vector_store %arg14[%49, %c0_29, %c0_30], %52 {strides = array<i32>} : memref<8x16x128xbf16, #tpu.memory_space<vmem>>, vector<1x16x128xbf16>,
      %c1_i32 = arith.constant 1 : i32
      %53 = arith.index_cast %c1_i32 : i32 to index
      %c0_31 = arith.constant 0 : index
      %c0_32 = arith.constant 0 : index
      %54 = vector.load %arg13[%53, %c0_31, %c0_32] : memref<8x16x512xbf16, #tpu.memory_space<vmem>>, vector<1x16x512xbf16>
      %55 = vector.shape_cast %54 : vector<1x16x512xbf16> to vector<16x512xbf16>
      %56 = arith.extf %55 : vector<16x512xbf16> to vector<16x512xf32>
      %57 = arith.truncf %47 : vector<16x128xf32> to vector<16x128xbf16>
      %cst_33 = arith.constant dense<0.000000e+00> : vector<16x512xf32>
      %58 = tpu.matmul %57, %23, %cst_33 {dimension_numbers = #tpu.dot_dimension_numbers<[1], [0], [0], [1], [0, 0, 1, 1], [], []>} : vector<16x128xbf16>, vector<128x512xbf16>, vector<16x512xf32> -> vector<16x512xf32>
      %59 = arith.addf %56, %58 : vector<16x512xf32>
      %60 = vector.extract_strided_slice %59 {offsets = [0, 0], sizes = [16, 384], strides = [1, 1]} : vector<16x512xf32> to vector<16x384xf32>
      %61 = arith.negf %60 : vector<16x384xf32>
      %62 = math.exp %61 : vector<16x384xf32>
      %cst_34 = arith.constant 1.000000e+00 : f32
      %63 = vector.broadcast %cst_34 : f32 to vector<16x384xf32>
      %64 = arith.addf %63, %62 : vector<16x384xf32>
      %65 = arith.divf %63, %64 : vector<16x384xf32>
      %66 = vector.extract_strided_slice %65 {offsets = [0, 0], sizes = [16, 128], strides = [1, 1]} : vector<16x384xf32> to vector<16x128xf32>
      %67 = vector.extract_strided_slice %65 {offsets = [0, 128], sizes = [16, 128], strides = [1, 1]} : vector<16x384xf32> to vector<16x128xf32>
      %68 = vector.extract_strided_slice %65 {offsets = [0, 256], sizes = [16, 128], strides = [1, 1]} : vector<16x384xf32> to vector<16x128xf32>
      %69 = vector.extract_strided_slice %59 {offsets = [0, 384], sizes = [16, 128], strides = [1, 1]} : vector<16x512xf32> to vector<16x128xf32>
      %70 = math.tanh %69 : vector<16x128xf32>
      %71 = arith.mulf %67, %45 : vector<16x128xf32>
      %72 = arith.mulf %66, %70 : vector<16x128xf32>
      %73 = arith.addf %71, %72 : vector<16x128xf32>
      %74 = math.tanh %73 : vector<16x128xf32>
      %75 = arith.mulf %68, %74 : vector<16x128xf32>
      %76 = arith.truncf %75 : vector<16x128xf32> to vector<16x128xbf16>
      %77 = arith.index_cast %c1_i32 : i32 to index
      %c0_35 = arith.constant 0 : index
      %c0_36 = arith.constant 0 : index
      %78 = vector.load %arg14[%77, %c0_35, %c0_36] : memref<8x16x128xbf16, #tpu.memory_space<vmem>>, vector<1x16x128xbf16>
      %79 = vector.shape_cast %78 : vector<1x16x128xbf16> to vector<16x128xbf16>
      %80 = vector.shape_cast %76 : vector<16x128xbf16> to vector<1x16x128xbf16>
      tpu.vector_store %arg14[%77, %c0_35, %c0_36], %80 {strides = array<i32>} : memref<8x16x128xbf16, #tpu.memory_space<vmem>>, vector<1x16x128xbf16>,
      %c2_i32 = arith.constant 2 : i32
      %81 = arith.index_cast %c2_i32 : i32 to index
      %c0_37 = arith.constant 0 : index
      %c0_38 = arith.constant 0 : index
      %82 = vector.load %arg13[%81, %c0_37, %c0_38] : memref<8x16x512xbf16, #tpu.memory_space<vmem>>, vector<1x16x512xbf16>
      %83 = vector.shape_cast %82 : vector<1x16x512xbf16> to vector<16x512xbf16>
      %84 = arith.extf %83 : vector<16x512xbf16> to vector<16x512xf32>
      %85 = arith.truncf %75 : vector<16x128xf32> to vector<16x128xbf16>
      %cst_39 = arith.constant dense<0.000000e+00> : vector<16x512xf32>
      %86 = tpu.matmul %85, %23, %cst_39 {dimension_numbers = #tpu.dot_dimension_numbers<[1], [0], [0], [1], [0, 0, 1, 1], [], []>} : vector<16x128xbf16>, vector<128x512xbf16>, vector<16x512xf32> -> vector<16x512xf32>
      %87 = arith.addf %84, %86 : vector<16x512xf32>
      %88 = vector.extract_strided_slice %87 {offsets = [0, 0], sizes = [16, 384], strides = [1, 1]} : vector<16x512xf32> to vector<16x384xf32>
      %89 = arith.negf %88 : vector<16x384xf32>
      %90 = math.exp %89 : vector<16x384xf32>
      %cst_40 = arith.constant 1.000000e+00 : f32
      %91 = vector.broadcast %cst_40 : f32 to vector<16x384xf32>
      %92 = arith.addf %91, %90 : vector<16x384xf32>
      %93 = arith.divf %91, %92 : vector<16x384xf32>
      %94 = vector.extract_strided_slice %93 {offsets = [0, 0], sizes = [16, 128], strides = [1, 1]} : vector<16x384xf32> to vector<16x128xf32>
      %95 = vector.extract_strided_slice %93 {offsets = [0, 128], sizes = [16, 128], strides = [1, 1]} : vector<16x384xf32> to vector<16x128xf32>
      %96 = vector.extract_strided_slice %93 {offsets = [0, 256], sizes = [16, 128], strides = [1, 1]} : vector<16x384xf32> to vector<16x128xf32>
      %97 = vector.extract_strided_slice %87 {offsets = [0, 384], sizes = [16, 128], strides = [1, 1]} : vector<16x512xf32> to vector<16x128xf32>
      %98 = math.tanh %97 : vector<16x128xf32>
      %99 = arith.mulf %95, %73 : vector<16x128xf32>
      %100 = arith.mulf %94, %98 : vector<16x128xf32>
      %101 = arith.addf %99, %100 : vector<16x128xf32>
      %102 = math.tanh %101 : vector<16x128xf32>
      %103 = arith.mulf %96, %102 : vector<16x128xf32>
      %104 = arith.truncf %103 : vector<16x128xf32> to vector<16x128xbf16>
      %105 = arith.index_cast %c2_i32 : i32 to index
      %c0_41 = arith.constant 0 : index
      %c0_42 = arith.constant 0 : index
      %106 = vector.load %arg14[%105, %c0_41, %c0_42] : memref<8x16x128xbf16, #tpu.memory_space<vmem>>, vector<1x16x128xbf16>
      %107 = vector.shape_cast %106 : vector<1x16x128xbf16> to vector<16x128xbf16>
      %108 = vector.shape_cast %104 : vector<16x128xbf16> to vector<1x16x128xbf16>
      tpu.vector_store %arg14[%105, %c0_41, %c0_42], %108 {strides = array<i32>} : memref<8x16x128xbf16, #tpu.memory_space<vmem>>, vector<1x16x128xbf16>,
      %c3_i32 = arith.constant 3 : i32
      %109 = arith.index_cast %c3_i32 : i32 to index
      %c0_43 = arith.constant 0 : index
      %c0_44 = arith.constant 0 : index
      %110 = vector.load %arg13[%109, %c0_43, %c0_44] : memref<8x16x512xbf16, #tpu.memory_space<vmem>>, vector<1x16x512xbf16>
      %111 = vector.shape_cast %110 : vector<1x16x512xbf16> to vector<16x512xbf16>
      %112 = arith.extf %111 : vector<16x512xbf16> to vector<16x512xf32>
      %113 = arith.truncf %103 : vector<16x128xf32> to vector<16x128xbf16>
      %cst_45 = arith.constant dense<0.000000e+00> : vector<16x512xf32>
      %114 = tpu.matmul %113, %23, %cst_45 {dimension_numbers = #tpu.dot_dimension_numbers<[1], [0], [0], [1], [0, 0, 1, 1], [], []>} : vector<16x128xbf16>, vector<128x512xbf16>, vector<16x512xf32> -> vector<16x512xf32>
      %115 = arith.addf %112, %114 : vector<16x512xf32>
      %116 = vector.extract_strided_slice %115 {offsets = [0, 0], sizes = [16, 384], strides = [1, 1]} : vector<16x512xf32> to vector<16x384xf32>
      %117 = arith.negf %116 : vector<16x384xf32>
      %118 = math.exp %117 : vector<16x384xf32>
      %cst_46 = arith.constant 1.000000e+00 : f32
      %119 = vector.broadcast %cst_46 : f32 to vector<16x384xf32>
      %120 = arith.addf %119, %118 : vector<16x384xf32>
      %121 = arith.divf %119, %120 : vector<16x384xf32>
      %122 = vector.extract_strided_slice %121 {offsets = [0, 0], sizes = [16, 128], strides = [1, 1]} : vector<16x384xf32> to vector<16x128xf32>
      %123 = vector.extract_strided_slice %121 {offsets = [0, 128], sizes = [16, 128], strides = [1, 1]} : vector<16x384xf32> to vector<16x128xf32>
      %124 = vector.extract_strided_slice %121 {offsets = [0, 256], sizes = [16, 128], strides = [1, 1]} : vector<16x384xf32> to vector<16x128xf32>
      %125 = vector.extract_strided_slice %115 {offsets = [0, 384], sizes = [16, 128], strides = [1, 1]} : vector<16x512xf32> to vector<16x128xf32>
      %126 = math.tanh %125 : vector<16x128xf32>
      %127 = arith.mulf %123, %101 : vector<16x128xf32>
      %128 = arith.mulf %122, %126 : vector<16x128xf32>
      %129 = arith.addf %127, %128 : vector<16x128xf32>
      %130 = math.tanh %129 : vector<16x128xf32>
      %131 = arith.mulf %124, %130 : vector<16x128xf32>
      %132 = arith.truncf %131 : vector<16x128xf32> to vector<16x128xbf16>
      %133 = arith.index_cast %c3_i32 : i32 to index
      %c0_47 = arith.constant 0 : index
      %c0_48 = arith.constant 0 : index
      %134 = vector.load %arg14[%133, %c0_47, %c0_48] : memref<8x16x128xbf16, #tpu.memory_space<vmem>>, vector<1x16x128xbf16>
      %135 = vector.shape_cast %134 : vector<1x16x128xbf16> to vector<16x128xbf16>
      %136 = vector.shape_cast %132 : vector<16x128xbf16> to vector<1x16x128xbf16>
      tpu.vector_store %arg14[%133, %c0_47, %c0_48], %136 {strides = array<i32>} : memref<8x16x128xbf16, #tpu.memory_space<vmem>>, vector<1x16x128xbf16>,
      %c4_i32 = arith.constant 4 : i32
      %137 = arith.index_cast %c4_i32 : i32 to index
      %c0_49 = arith.constant 0 : index
      %c0_50 = arith.constant 0 : index
      %138 = vector.load %arg13[%137, %c0_49, %c0_50] : memref<8x16x512xbf16, #tpu.memory_space<vmem>>, vector<1x16x512xbf16>
      %139 = vector.shape_cast %138 : vector<1x16x512xbf16> to vector<16x512xbf16>
      %140 = arith.extf %139 : vector<16x512xbf16> to vector<16x512xf32>
      %141 = arith.truncf %131 : vector<16x128xf32> to vector<16x128xbf16>
      %cst_51 = arith.constant dense<0.000000e+00> : vector<16x512xf32>
      %142 = tpu.matmul %141, %23, %cst_51 {dimension_numbers = #tpu.dot_dimension_numbers<[1], [0], [0], [1], [0, 0, 1, 1], [], []>} : vector<16x128xbf16>, vector<128x512xbf16>, vector<16x512xf32> -> vector<16x512xf32>
      %143 = arith.addf %140, %142 : vector<16x512xf32>
      %144 = vector.extract_strided_slice %143 {offsets = [0, 0], sizes = [16, 384], strides = [1, 1]} : vector<16x512xf32> to vector<16x384xf32>
      %145 = arith.negf %144 : vector<16x384xf32>
      %146 = math.exp %145 : vector<16x384xf32>
      %cst_52 = arith.constant 1.000000e+00 : f32
      %147 = vector.broadcast %cst_52 : f32 to vector<16x384xf32>
      %148 = arith.addf %147, %146 : vector<16x384xf32>
      %149 = arith.divf %147, %148 : vector<16x384xf32>
      %150 = vector.extract_strided_slice %149 {offsets = [0, 0], sizes = [16, 128], strides = [1, 1]} : vector<16x384xf32> to vector<16x128xf32>
      %151 = vector.extract_strided_slice %149 {offsets = [0, 128], sizes = [16, 128], strides = [1, 1]} : vector<16x384xf32> to vector<16x128xf32>
      %152 = vector.extract_strided_slice %149 {offsets = [0, 256], sizes = [16, 128], strides = [1, 1]} : vector<16x384xf32> to vector<16x128xf32>
      %153 = vector.extract_strided_slice %143 {offsets = [0, 384], sizes = [16, 128], strides = [1, 1]} : vector<16x512xf32> to vector<16x128xf32>
      %154 = math.tanh %153 : vector<16x128xf32>
      %155 = arith.mulf %151, %129 : vector<16x128xf32>
      %156 = arith.mulf %150, %154 : vector<16x128xf32>
      %157 = arith.addf %155, %156 : vector<16x128xf32>
      %158 = math.tanh %157 : vector<16x128xf32>
      %159 = arith.mulf %152, %158 : vector<16x128xf32>
      %160 = arith.truncf %159 : vector<16x128xf32> to vector<16x128xbf16>
      %161 = arith.index_cast %c4_i32 : i32 to index
      %c0_53 = arith.constant 0 : index
      %c0_54 = arith.constant 0 : index
      %162 = vector.load %arg14[%161, %c0_53, %c0_54] : memref<8x16x128xbf16, #tpu.memory_space<vmem>>, vector<1x16x128xbf16>
      %163 = vector.shape_cast %162 : vector<1x16x128xbf16> to vector<16x128xbf16>
      %164 = vector.shape_cast %160 : vector<16x128xbf16> to vector<1x16x128xbf16>
      tpu.vector_store %arg14[%161, %c0_53, %c0_54], %164 {strides = array<i32>} : memref<8x16x128xbf16, #tpu.memory_space<vmem>>, vector<1x16x128xbf16>,
      %c5_i32 = arith.constant 5 : i32
      %165 = arith.index_cast %c5_i32 : i32 to index
      %c0_55 = arith.constant 0 : index
      %c0_56 = arith.constant 0 : index
      %166 = vector.load %arg13[%165, %c0_55, %c0_56] : memref<8x16x512xbf16, #tpu.memory_space<vmem>>, vector<1x16x512xbf16>
      %167 = vector.shape_cast %166 : vector<1x16x512xbf16> to vector<16x512xbf16>
      %168 = arith.extf %167 : vector<16x512xbf16> to vector<16x512xf32>
      %169 = arith.truncf %159 : vector<16x128xf32> to vector<16x128xbf16>
      %cst_57 = arith.constant dense<0.000000e+00> : vector<16x512xf32>
      %170 = tpu.matmul %169, %23, %cst_57 {dimension_numbers = #tpu.dot_dimension_numbers<[1], [0], [0], [1], [0, 0, 1, 1], [], []>} : vector<16x128xbf16>, vector<128x512xbf16>, vector<16x512xf32> -> vector<16x512xf32>
      %171 = arith.addf %168, %170 : vector<16x512xf32>
      %172 = vector.extract_strided_slice %171 {offsets = [0, 0], sizes = [16, 384], strides = [1, 1]} : vector<16x512xf32> to vector<16x384xf32>
      %173 = arith.negf %172 : vector<16x384xf32>
      %174 = math.exp %173 : vector<16x384xf32>
      %cst_58 = arith.constant 1.000000e+00 : f32
      %175 = vector.broadcast %cst_58 : f32 to vector<16x384xf32>
      %176 = arith.addf %175, %174 : vector<16x384xf32>
      %177 = arith.divf %175, %176 : vector<16x384xf32>
      %178 = vector.extract_strided_slice %177 {offsets = [0, 0], sizes = [16, 128], strides = [1, 1]} : vector<16x384xf32> to vector<16x128xf32>
      %179 = vector.extract_strided_slice %177 {offsets = [0, 128], sizes = [16, 128], strides = [1, 1]} : vector<16x384xf32> to vector<16x128xf32>
      %180 = vector.extract_strided_slice %177 {offsets = [0, 256], sizes = [16, 128], strides = [1, 1]} : vector<16x384xf32> to vector<16x128xf32>
      %181 = vector.extract_strided_slice %171 {offsets = [0, 384], sizes = [16, 128], strides = [1, 1]} : vector<16x512xf32> to vector<16x128xf32>
      %182 = math.tanh %181 : vector<16x128xf32>
      %183 = arith.mulf %179, %157 : vector<16x128xf32>
      %184 = arith.mulf %178, %182 : vector<16x128xf32>
      %185 = arith.addf %183, %184 : vector<16x128xf32>
      %186 = math.tanh %185 : vector<16x128xf32>
      %187 = arith.mulf %180, %186 : vector<16x128xf32>
      %188 = arith.truncf %187 : vector<16x128xf32> to vector<16x128xbf16>
      %189 = arith.index_cast %c5_i32 : i32 to index
      %c0_59 = arith.constant 0 : index
      %c0_60 = arith.constant 0 : index
      %190 = vector.load %arg14[%189, %c0_59, %c0_60] : memref<8x16x128xbf16, #tpu.memory_space<vmem>>, vector<1x16x128xbf16>
      %191 = vector.shape_cast %190 : vector<1x16x128xbf16> to vector<16x128xbf16>
      %192 = vector.shape_cast %188 : vector<16x128xbf16> to vector<1x16x128xbf16>
      tpu.vector_store %arg14[%189, %c0_59, %c0_60], %192 {strides = array<i32>} : memref<8x16x128xbf16, #tpu.memory_space<vmem>>, vector<1x16x128xbf16>,
      %c6_i32 = arith.constant 6 : i32
      %193 = arith.index_cast %c6_i32 : i32 to index
      %c0_61 = arith.constant 0 : index
      %c0_62 = arith.constant 0 : index
      %194 = vector.load %arg13[%193, %c0_61, %c0_62] : memref<8x16x512xbf16, #tpu.memory_space<vmem>>, vector<1x16x512xbf16>
      %195 = vector.shape_cast %194 : vector<1x16x512xbf16> to vector<16x512xbf16>
      %196 = arith.extf %195 : vector<16x512xbf16> to vector<16x512xf32>
      %197 = arith.truncf %187 : vector<16x128xf32> to vector<16x128xbf16>
      %cst_63 = arith.constant dense<0.000000e+00> : vector<16x512xf32>
      %198 = tpu.matmul %197, %23, %cst_63 {dimension_numbers = #tpu.dot_dimension_numbers<[1], [0], [0], [1], [0, 0, 1, 1], [], []>} : vector<16x128xbf16>, vector<128x512xbf16>, vector<16x512xf32> -> vector<16x512xf32>
      %199 = arith.addf %196, %198 : vector<16x512xf32>
      %200 = vector.extract_strided_slice %199 {offsets = [0, 0], sizes = [16, 384], strides = [1, 1]} : vector<16x512xf32> to vector<16x384xf32>
      %201 = arith.negf %200 : vector<16x384xf32>
      %202 = math.exp %201 : vector<16x384xf32>
      %cst_64 = arith.constant 1.000000e+00 : f32
      %203 = vector.broadcast %cst_64 : f32 to vector<16x384xf32>
      %204 = arith.addf %203, %202 : vector<16x384xf32>
      %205 = arith.divf %203, %204 : vector<16x384xf32>
      %206 = vector.extract_strided_slice %205 {offsets = [0, 0], sizes = [16, 128], strides = [1, 1]} : vector<16x384xf32> to vector<16x128xf32>
      %207 = vector.extract_strided_slice %205 {offsets = [0, 128], sizes = [16, 128], strides = [1, 1]} : vector<16x384xf32> to vector<16x128xf32>
      %208 = vector.extract_strided_slice %205 {offsets = [0, 256], sizes = [16, 128], strides = [1, 1]} : vector<16x384xf32> to vector<16x128xf32>
      %209 = vector.extract_strided_slice %199 {offsets = [0, 384], sizes = [16, 128], strides = [1, 1]} : vector<16x512xf32> to vector<16x128xf32>
      %210 = math.tanh %209 : vector<16x128xf32>
      %211 = arith.mulf %207, %185 : vector<16x128xf32>
      %212 = arith.mulf %206, %210 : vector<16x128xf32>
      %213 = arith.addf %211, %212 : vector<16x128xf32>
      %214 = math.tanh %213 : vector<16x128xf32>
      %215 = arith.mulf %208, %214 : vector<16x128xf32>
      %216 = arith.truncf %215 : vector<16x128xf32> to vector<16x128xbf16>
      %217 = arith.index_cast %c6_i32 : i32 to index
      %c0_65 = arith.constant 0 : index
      %c0_66 = arith.constant 0 : index
      %218 = vector.load %arg14[%217, %c0_65, %c0_66] : memref<8x16x128xbf16, #tpu.memory_space<vmem>>, vector<1x16x128xbf16>
      %219 = vector.shape_cast %218 : vector<1x16x128xbf16> to vector<16x128xbf16>
      %220 = vector.shape_cast %216 : vector<16x128xbf16> to vector<1x16x128xbf16>
      tpu.vector_store %arg14[%217, %c0_65, %c0_66], %220 {strides = array<i32>} : memref<8x16x128xbf16, #tpu.memory_space<vmem>>, vector<1x16x128xbf16>,
      %c7_i32 = arith.constant 7 : i32
      %221 = arith.index_cast %c7_i32 : i32 to index
      %c0_67 = arith.constant 0 : index
      %c0_68 = arith.constant 0 : index
      %222 = vector.load %arg13[%221, %c0_67, %c0_68] : memref<8x16x512xbf16, #tpu.memory_space<vmem>>, vector<1x16x512xbf16>
      %223 = vector.shape_cast %222 : vector<1x16x512xbf16> to vector<16x512xbf16>
      %224 = arith.extf %223 : vector<16x512xbf16> to vector<16x512xf32>
      %225 = arith.truncf %215 : vector<16x128xf32> to vector<16x128xbf16>
      %cst_69 = arith.constant dense<0.000000e+00> : vector<16x512xf32>
      %226 = tpu.matmul %225, %23, %cst_69 {dimension_numbers = #tpu.dot_dimension_numbers<[1], [0], [0], [1], [0, 0, 1, 1], [], []>} : vector<16x128xbf16>, vector<128x512xbf16>, vector<16x512xf32> -> vector<16x512xf32>
      %227 = arith.addf %224, %226 : vector<16x512xf32>
      %228 = vector.extract_strided_slice %227 {offsets = [0, 0], sizes = [16, 384], strides = [1, 1]} : vector<16x512xf32> to vector<16x384xf32>
      %229 = arith.negf %228 : vector<16x384xf32>
      %230 = math.exp %229 : vector<16x384xf32>
      %cst_70 = arith.constant 1.000000e+00 : f32
      %231 = vector.broadcast %cst_70 : f32 to vector<16x384xf32>
      %232 = arith.addf %231, %230 : vector<16x384xf32>
      %233 = arith.divf %231, %232 : vector<16x384xf32>
      %234 = vector.extract_strided_slice %233 {offsets = [0, 0], sizes = [16, 128], strides = [1, 1]} : vector<16x384xf32> to vector<16x128xf32>
      %235 = vector.extract_strided_slice %233 {offsets = [0, 128], sizes = [16, 128], strides = [1, 1]} : vector<16x384xf32> to vector<16x128xf32>
      %236 = vector.extract_strided_slice %233 {offsets = [0, 256], sizes = [16, 128], strides = [1, 1]} : vector<16x384xf32> to vector<16x128xf32>
      %237 = vector.extract_strided_slice %227 {offsets = [0, 384], sizes = [16, 128], strides = [1, 1]} : vector<16x512xf32> to vector<16x128xf32>
      %238 = math.tanh %237 : vector<16x128xf32>
      %239 = arith.mulf %235, %213 : vector<16x128xf32>
      %240 = arith.mulf %234, %238 : vector<16x128xf32>
      %241 = arith.addf %239, %240 : vector<16x128xf32>
      %242 = math.tanh %241 : vector<16x128xf32>
      %243 = arith.mulf %236, %242 : vector<16x128xf32>
      %244 = arith.truncf %243 : vector<16x128xf32> to vector<16x128xbf16>
      %245 = arith.index_cast %c7_i32 : i32 to index
      %c0_71 = arith.constant 0 : index
      %c0_72 = arith.constant 0 : index
      %246 = vector.load %arg14[%245, %c0_71, %c0_72] : memref<8x16x128xbf16, #tpu.memory_space<vmem>>, vector<1x16x128xbf16>
      %247 = vector.shape_cast %246 : vector<1x16x128xbf16> to vector<16x128xbf16>
      %248 = vector.shape_cast %244 : vector<16x128xbf16> to vector<1x16x128xbf16>
      tpu.vector_store %arg14[%245, %c0_71, %c0_72], %248 {strides = array<i32>} : memref<8x16x128xbf16, #tpu.memory_space<vmem>>, vector<1x16x128xbf16>,
      %c8_i32 = arith.constant 8 : i32
      %c0_73 = arith.constant 0 : index
      %c0_74 = arith.constant 0 : index
      %c0_75 = arith.constant 0 : index
      %249 = vector.load %arg11[%c0_73, %c0_74, %c0_75] : memref<2x16x128xf32, #tpu.memory_space<vmem>>, vector<1x16x128xf32>
      %250 = vector.shape_cast %249 : vector<1x16x128xf32> to vector<16x128xf32>
      %251 = vector.shape_cast %243 : vector<16x128xf32> to vector<1x16x128xf32>
      tpu.vector_store %arg11[%c0_73, %c0_74, %c0_75], %251 {strides = array<i32>} : memref<2x16x128xf32, #tpu.memory_space<vmem>>, vector<1x16x128xf32>,
      %c0_76 = arith.constant 0 : index
      %c0_77 = arith.constant 0 : index
      %c0_78 = arith.constant 0 : index
      %252 = vector.load %arg12[%c0_76, %c0_77, %c0_78] : memref<2x16x128xf32, #tpu.memory_space<vmem>>, vector<1x16x128xf32>
      %253 = vector.shape_cast %252 : vector<1x16x128xf32> to vector<16x128xf32>
      %254 = vector.shape_cast %241 : vector<16x128xf32> to vector<1x16x128xf32>
      tpu.vector_store %arg12[%c0_76, %c0_77, %c0_78], %254 {strides = array<i32>} : memref<2x16x128xf32, #tpu.memory_space<vmem>>, vector<1x16x128xf32>,
      %c0_79 = arith.constant 0 : index
      %c0_80 = arith.constant 0 : index
      %c0_81 = arith.constant 0 : index
      %255 = vector.load %arg14[%c0_79, %c0_80, %c0_81] : memref<8x16x128xbf16, #tpu.memory_space<vmem>>, vector<8x16x128xbf16>
      %256 = vector.shape_cast %255 : vector<8x16x128xbf16> to vector<128x128xbf16>
      %c0_82 = arith.constant 0 : index
      %c0_83 = arith.constant 0 : index
      %257 = vector.load %arg5[%c0_82, %c0_83] : memref<128x512xbf16, #tpu.memory_space<vmem>>, vector<128x512xbf16>
      %cst_84 = arith.constant dense<0.000000e+00> : vector<128x512xf32>
      %258 = tpu.matmul %256, %257, %cst_84 {dimension_numbers = #tpu.dot_dimension_numbers<[1], [0], [0], [1], [0, 0, 1, 1], [], []>} : vector<128x128xbf16>, vector<128x512xbf16>, vector<128x512xf32> -> vector<128x512xf32>
      %c0_85 = arith.constant 0 : index
      %c0_86 = arith.constant 0 : index
      %259 = vector.load %arg7[%c0_85, %c0_86] : memref<1x512xf32, #tpu.memory_space<vmem>>, vector<1x512xf32>
      %260 = vector.broadcast %259 : vector<1x512xf32> to vector<128x512xf32>
      %261 = arith.addf %258, %260 : vector<128x512xf32>
      %262 = vector.shape_cast %261 : vector<128x512xf32> to vector<8x16x512xf32>
      %263 = arith.truncf %262 : vector<8x16x512xf32> to vector<8x16x512xbf16>
      %c0_87 = arith.constant 0 : index
      %c0_88 = arith.constant 0 : index
      %c0_89 = arith.constant 0 : index
      %264 = vector.load %arg13[%c0_87, %c0_88, %c0_89] : memref<8x16x512xbf16, #tpu.memory_space<vmem>>, vector<8x16x512xbf16>
      tpu.vector_store %arg13[%c0_87, %c0_88, %c0_89], %263 {strides = array<i32>} : memref<8x16x512xbf16, #tpu.memory_space<vmem>>, vector<8x16x512xbf16>,
      %c0_90 = arith.constant 0 : index
      %c0_91 = arith.constant 0 : index
      %265 = vector.load %arg6[%c0_90, %c0_91] : memref<128x512xbf16, #tpu.memory_space<vmem>>, vector<128x512xbf16>
      %cst_92 = arith.constant 0.000000e+00 : f32
      %266 = vector.broadcast %cst_92 : f32 to vector<16x128xf32>
      %c0_i32_93 = arith.constant 0 : i32
      %267 = arith.index_cast %c0_i32_93 : i32 to index
      %c0_94 = arith.constant 0 : index
      %c0_95 = arith.constant 0 : index
      %268 = vector.load %arg13[%267, %c0_94, %c0_95] : memref<8x16x512xbf16, #tpu.memory_space<vmem>>, vector<1x16x512xbf16>
      %269 = vector.shape_cast %268 : vector<1x16x512xbf16> to vector<16x512xbf16>
      %270 = arith.extf %269 : vector<16x512xbf16> to vector<16x512xf32>
      %271 = arith.truncf %266 : vector<16x128xf32> to vector<16x128xbf16>
      %cst_96 = arith.constant dense<0.000000e+00> : vector<16x512xf32>
      %272 = tpu.matmul %271, %265, %cst_96 {dimension_numbers = #tpu.dot_dimension_numbers<[1], [0], [0], [1], [0, 0, 1, 1], [], []>} : vector<16x128xbf16>, vector<128x512xbf16>, vector<16x512xf32> -> vector<16x512xf32>
      %273 = arith.addf %270, %272 : vector<16x512xf32>
      %274 = vector.extract_strided_slice %273 {offsets = [0, 0], sizes = [16, 384], strides = [1, 1]} : vector<16x512xf32> to vector<16x384xf32>
      %275 = arith.negf %274 : vector<16x384xf32>
      %276 = math.exp %275 : vector<16x384xf32>
      %cst_97 = arith.constant 1.000000e+00 : f32
      %277 = vector.broadcast %cst_97 : f32 to vector<16x384xf32>
      %278 = arith.addf %277, %276 : vector<16x384xf32>
      %279 = arith.divf %277, %278 : vector<16x384xf32>
      %280 = vector.extract_strided_slice %279 {offsets = [0, 0], sizes = [16, 128], strides = [1, 1]} : vector<16x384xf32> to vector<16x128xf32>
      %281 = vector.extract_strided_slice %279 {offsets = [0, 128], sizes = [16, 128], strides = [1, 1]} : vector<16x384xf32> to vector<16x128xf32>
      %282 = vector.extract_strided_slice %279 {offsets = [0, 256], sizes = [16, 128], strides = [1, 1]} : vector<16x384xf32> to vector<16x128xf32>
      %283 = vector.extract_strided_slice %273 {offsets = [0, 384], sizes = [16, 128], strides = [1, 1]} : vector<16x512xf32> to vector<16x128xf32>
      %284 = math.tanh %283 : vector<16x128xf32>
      %285 = arith.mulf %281, %266 : vector<16x128xf32>
      %286 = arith.mulf %280, %284 : vector<16x128xf32>
      %287 = arith.addf %285, %286 : vector<16x128xf32>
      %288 = math.tanh %287 : vector<16x128xf32>
      %289 = arith.mulf %282, %288 : vector<16x128xf32>
      %290 = arith.truncf %289 : vector<16x128xf32> to vector<16x128xbf16>
      %291 = arith.index_cast %c0_i32_93 : i32 to index
      %c0_98 = arith.constant 0 : index
      %c0_99 = arith.constant 0 : index
      %292 = vector.load %arg14[%291, %c0_98, %c0_99] : memref<8x16x128xbf16, #tpu.memory_space<vmem>>, vector<1x16x128xbf16>
      %293 = vector.shape_cast %292 : vector<1x16x128xbf16> to vector<16x128xbf16>
      %294 = vector.shape_cast %290 : vector<16x128xbf16> to vector<1x16x128xbf16>
      tpu.vector_store %arg14[%291, %c0_98, %c0_99], %294 {strides = array<i32>} : memref<8x16x128xbf16, #tpu.memory_space<vmem>>, vector<1x16x128xbf16>,
      %c1_i32_100 = arith.constant 1 : i32
      %295 = arith.index_cast %c1_i32_100 : i32 to index
      %c0_101 = arith.constant 0 : index
      %c0_102 = arith.constant 0 : index
      %296 = vector.load %arg13[%295, %c0_101, %c0_102] : memref<8x16x512xbf16, #tpu.memory_space<vmem>>, vector<1x16x512xbf16>
      %297 = vector.shape_cast %296 : vector<1x16x512xbf16> to vector<16x512xbf16>
      %298 = arith.extf %297 : vector<16x512xbf16> to vector<16x512xf32>
      %299 = arith.truncf %289 : vector<16x128xf32> to vector<16x128xbf16>
      %cst_103 = arith.constant dense<0.000000e+00> : vector<16x512xf32>
      %300 = tpu.matmul %299, %265, %cst_103 {dimension_numbers = #tpu.dot_dimension_numbers<[1], [0], [0], [1], [0, 0, 1, 1], [], []>} : vector<16x128xbf16>, vector<128x512xbf16>, vector<16x512xf32> -> vector<16x512xf32>
      %301 = arith.addf %298, %300 : vector<16x512xf32>
      %302 = vector.extract_strided_slice %301 {offsets = [0, 0], sizes = [16, 384], strides = [1, 1]} : vector<16x512xf32> to vector<16x384xf32>
      %303 = arith.negf %302 : vector<16x384xf32>
      %304 = math.exp %303 : vector<16x384xf32>
      %cst_104 = arith.constant 1.000000e+00 : f32
      %305 = vector.broadcast %cst_104 : f32 to vector<16x384xf32>
      %306 = arith.addf %305, %304 : vector<16x384xf32>
      %307 = arith.divf %305, %306 : vector<16x384xf32>
      %308 = vector.extract_strided_slice %307 {offsets = [0, 0], sizes = [16, 128], strides = [1, 1]} : vector<16x384xf32> to vector<16x128xf32>
      %309 = vector.extract_strided_slice %307 {offsets = [0, 128], sizes = [16, 128], strides = [1, 1]} : vector<16x384xf32> to vector<16x128xf32>
      %310 = vector.extract_strided_slice %307 {offsets = [0, 256], sizes = [16, 128], strides = [1, 1]} : vector<16x384xf32> to vector<16x128xf32>
      %311 = vector.extract_strided_slice %301 {offsets = [0, 384], sizes = [16, 128], strides = [1, 1]} : vector<16x512xf32> to vector<16x128xf32>
      %312 = math.tanh %311 : vector<16x128xf32>
      %313 = arith.mulf %309, %287 : vector<16x128xf32>
      %314 = arith.mulf %308, %312 : vector<16x128xf32>
      %315 = arith.addf %313, %314 : vector<16x128xf32>
      %316 = math.tanh %315 : vector<16x128xf32>
      %317 = arith.mulf %310, %316 : vector<16x128xf32>
      %318 = arith.truncf %317 : vector<16x128xf32> to vector<16x128xbf16>
      %319 = arith.index_cast %c1_i32_100 : i32 to index
      %c0_105 = arith.constant 0 : index
      %c0_106 = arith.constant 0 : index
      %320 = vector.load %arg14[%319, %c0_105, %c0_106] : memref<8x16x128xbf16, #tpu.memory_space<vmem>>, vector<1x16x128xbf16>
      %321 = vector.shape_cast %320 : vector<1x16x128xbf16> to vector<16x128xbf16>
      %322 = vector.shape_cast %318 : vector<16x128xbf16> to vector<1x16x128xbf16>
      tpu.vector_store %arg14[%319, %c0_105, %c0_106], %322 {strides = array<i32>} : memref<8x16x128xbf16, #tpu.memory_space<vmem>>, vector<1x16x128xbf16>,
      %c2_i32_107 = arith.constant 2 : i32
      %323 = arith.index_cast %c2_i32_107 : i32 to index
      %c0_108 = arith.constant 0 : index
      %c0_109 = arith.constant 0 : index
      %324 = vector.load %arg13[%323, %c0_108, %c0_109] : memref<8x16x512xbf16, #tpu.memory_space<vmem>>, vector<1x16x512xbf16>
      %325 = vector.shape_cast %324 : vector<1x16x512xbf16> to vector<16x512xbf16>
      %326 = arith.extf %325 : vector<16x512xbf16> to vector<16x512xf32>
      %327 = arith.truncf %317 : vector<16x128xf32> to vector<16x128xbf16>
      %cst_110 = arith.constant dense<0.000000e+00> : vector<16x512xf32>
      %328 = tpu.matmul %327, %265, %cst_110 {dimension_numbers = #tpu.dot_dimension_numbers<[1], [0], [0], [1], [0, 0, 1, 1], [], []>} : vector<16x128xbf16>, vector<128x512xbf16>, vector<16x512xf32> -> vector<16x512xf32>
      %329 = arith.addf %326, %328 : vector<16x512xf32>
      %330 = vector.extract_strided_slice %329 {offsets = [0, 0], sizes = [16, 384], strides = [1, 1]} : vector<16x512xf32> to vector<16x384xf32>
      %331 = arith.negf %330 : vector<16x384xf32>
      %332 = math.exp %331 : vector<16x384xf32>
      %cst_111 = arith.constant 1.000000e+00 : f32
      %333 = vector.broadcast %cst_111 : f32 to vector<16x384xf32>
      %334 = arith.addf %333, %332 : vector<16x384xf32>
      %335 = arith.divf %333, %334 : vector<16x384xf32>
      %336 = vector.extract_strided_slice %335 {offsets = [0, 0], sizes = [16, 128], strides = [1, 1]} : vector<16x384xf32> to vector<16x128xf32>
      %337 = vector.extract_strided_slice %335 {offsets = [0, 128], sizes = [16, 128], strides = [1, 1]} : vector<16x384xf32> to vector<16x128xf32>
      %338 = vector.extract_strided_slice %335 {offsets = [0, 256], sizes = [16, 128], strides = [1, 1]} : vector<16x384xf32> to vector<16x128xf32>
      %339 = vector.extract_strided_slice %329 {offsets = [0, 384], sizes = [16, 128], strides = [1, 1]} : vector<16x512xf32> to vector<16x128xf32>
      %340 = math.tanh %339 : vector<16x128xf32>
      %341 = arith.mulf %337, %315 : vector<16x128xf32>
      %342 = arith.mulf %336, %340 : vector<16x128xf32>
      %343 = arith.addf %341, %342 : vector<16x128xf32>
      %344 = math.tanh %343 : vector<16x128xf32>
      %345 = arith.mulf %338, %344 : vector<16x128xf32>
      %346 = arith.truncf %345 : vector<16x128xf32> to vector<16x128xbf16>
      %347 = arith.index_cast %c2_i32_107 : i32 to index
      %c0_112 = arith.constant 0 : index
      %c0_113 = arith.constant 0 : index
      %348 = vector.load %arg14[%347, %c0_112, %c0_113] : memref<8x16x128xbf16, #tpu.memory_space<vmem>>, vector<1x16x128xbf16>
      %349 = vector.shape_cast %348 : vector<1x16x128xbf16> to vector<16x128xbf16>
      %350 = vector.shape_cast %346 : vector<16x128xbf16> to vector<1x16x128xbf16>
      tpu.vector_store %arg14[%347, %c0_112, %c0_113], %350 {strides = array<i32>} : memref<8x16x128xbf16, #tpu.memory_space<vmem>>, vector<1x16x128xbf16>,
      %c3_i32_114 = arith.constant 3 : i32
      %351 = arith.index_cast %c3_i32_114 : i32 to index
      %c0_115 = arith.constant 0 : index
      %c0_116 = arith.constant 0 : index
      %352 = vector.load %arg13[%351, %c0_115, %c0_116] : memref<8x16x512xbf16, #tpu.memory_space<vmem>>, vector<1x16x512xbf16>
      %353 = vector.shape_cast %352 : vector<1x16x512xbf16> to vector<16x512xbf16>
      %354 = arith.extf %353 : vector<16x512xbf16> to vector<16x512xf32>
      %355 = arith.truncf %345 : vector<16x128xf32> to vector<16x128xbf16>
      %cst_117 = arith.constant dense<0.000000e+00> : vector<16x512xf32>
      %356 = tpu.matmul %355, %265, %cst_117 {dimension_numbers = #tpu.dot_dimension_numbers<[1], [0], [0], [1], [0, 0, 1, 1], [], []>} : vector<16x128xbf16>, vector<128x512xbf16>, vector<16x512xf32> -> vector<16x512xf32>
      %357 = arith.addf %354, %356 : vector<16x512xf32>
      %358 = vector.extract_strided_slice %357 {offsets = [0, 0], sizes = [16, 384], strides = [1, 1]} : vector<16x512xf32> to vector<16x384xf32>
      %359 = arith.negf %358 : vector<16x384xf32>
      %360 = math.exp %359 : vector<16x384xf32>
      %cst_118 = arith.constant 1.000000e+00 : f32
      %361 = vector.broadcast %cst_118 : f32 to vector<16x384xf32>
      %362 = arith.addf %361, %360 : vector<16x384xf32>
      %363 = arith.divf %361, %362 : vector<16x384xf32>
      %364 = vector.extract_strided_slice %363 {offsets = [0, 0], sizes = [16, 128], strides = [1, 1]} : vector<16x384xf32> to vector<16x128xf32>
      %365 = vector.extract_strided_slice %363 {offsets = [0, 128], sizes = [16, 128], strides = [1, 1]} : vector<16x384xf32> to vector<16x128xf32>
      %366 = vector.extract_strided_slice %363 {offsets = [0, 256], sizes = [16, 128], strides = [1, 1]} : vector<16x384xf32> to vector<16x128xf32>
      %367 = vector.extract_strided_slice %357 {offsets = [0, 384], sizes = [16, 128], strides = [1, 1]} : vector<16x512xf32> to vector<16x128xf32>
      %368 = math.tanh %367 : vector<16x128xf32>
      %369 = arith.mulf %365, %343 : vector<16x128xf32>
      %370 = arith.mulf %364, %368 : vector<16x128xf32>
      %371 = arith.addf %369, %370 : vector<16x128xf32>
      %372 = math.tanh %371 : vector<16x128xf32>
      %373 = arith.mulf %366, %372 : vector<16x128xf32>
      %374 = arith.truncf %373 : vector<16x128xf32> to vector<16x128xbf16>
      %375 = arith.index_cast %c3_i32_114 : i32 to index
      %c0_119 = arith.constant 0 : index
      %c0_120 = arith.constant 0 : index
      %376 = vector.load %arg14[%375, %c0_119, %c0_120] : memref<8x16x128xbf16, #tpu.memory_space<vmem>>, vector<1x16x128xbf16>
      %377 = vector.shape_cast %376 : vector<1x16x128xbf16> to vector<16x128xbf16>
      %378 = vector.shape_cast %374 : vector<16x128xbf16> to vector<1x16x128xbf16>
      tpu.vector_store %arg14[%375, %c0_119, %c0_120], %378 {strides = array<i32>} : memref<8x16x128xbf16, #tpu.memory_space<vmem>>, vector<1x16x128xbf16>,
      %c4_i32_121 = arith.constant 4 : i32
      %379 = arith.index_cast %c4_i32_121 : i32 to index
      %c0_122 = arith.constant 0 : index
      %c0_123 = arith.constant 0 : index
      %380 = vector.load %arg13[%379, %c0_122, %c0_123] : memref<8x16x512xbf16, #tpu.memory_space<vmem>>, vector<1x16x512xbf16>
      %381 = vector.shape_cast %380 : vector<1x16x512xbf16> to vector<16x512xbf16>
      %382 = arith.extf %381 : vector<16x512xbf16> to vector<16x512xf32>
      %383 = arith.truncf %373 : vector<16x128xf32> to vector<16x128xbf16>
      %cst_124 = arith.constant dense<0.000000e+00> : vector<16x512xf32>
      %384 = tpu.matmul %383, %265, %cst_124 {dimension_numbers = #tpu.dot_dimension_numbers<[1], [0], [0], [1], [0, 0, 1, 1], [], []>} : vector<16x128xbf16>, vector<128x512xbf16>, vector<16x512xf32> -> vector<16x512xf32>
      %385 = arith.addf %382, %384 : vector<16x512xf32>
      %386 = vector.extract_strided_slice %385 {offsets = [0, 0], sizes = [16, 384], strides = [1, 1]} : vector<16x512xf32> to vector<16x384xf32>
      %387 = arith.negf %386 : vector<16x384xf32>
      %388 = math.exp %387 : vector<16x384xf32>
      %cst_125 = arith.constant 1.000000e+00 : f32
      %389 = vector.broadcast %cst_125 : f32 to vector<16x384xf32>
      %390 = arith.addf %389, %388 : vector<16x384xf32>
      %391 = arith.divf %389, %390 : vector<16x384xf32>
      %392 = vector.extract_strided_slice %391 {offsets = [0, 0], sizes = [16, 128], strides = [1, 1]} : vector<16x384xf32> to vector<16x128xf32>
      %393 = vector.extract_strided_slice %391 {offsets = [0, 128], sizes = [16, 128], strides = [1, 1]} : vector<16x384xf32> to vector<16x128xf32>
      %394 = vector.extract_strided_slice %391 {offsets = [0, 256], sizes = [16, 128], strides = [1, 1]} : vector<16x384xf32> to vector<16x128xf32>
      %395 = vector.extract_strided_slice %385 {offsets = [0, 384], sizes = [16, 128], strides = [1, 1]} : vector<16x512xf32> to vector<16x128xf32>
      %396 = math.tanh %395 : vector<16x128xf32>
      %397 = arith.mulf %393, %371 : vector<16x128xf32>
      %398 = arith.mulf %392, %396 : vector<16x128xf32>
      %399 = arith.addf %397, %398 : vector<16x128xf32>
      %400 = math.tanh %399 : vector<16x128xf32>
      %401 = arith.mulf %394, %400 : vector<16x128xf32>
      %402 = arith.truncf %401 : vector<16x128xf32> to vector<16x128xbf16>
      %403 = arith.index_cast %c4_i32_121 : i32 to index
      %c0_126 = arith.constant 0 : index
      %c0_127 = arith.constant 0 : index
      %404 = vector.load %arg14[%403, %c0_126, %c0_127] : memref<8x16x128xbf16, #tpu.memory_space<vmem>>, vector<1x16x128xbf16>
      %405 = vector.shape_cast %404 : vector<1x16x128xbf16> to vector<16x128xbf16>
      %406 = vector.shape_cast %402 : vector<16x128xbf16> to vector<1x16x128xbf16>
      tpu.vector_store %arg14[%403, %c0_126, %c0_127], %406 {strides = array<i32>} : memref<8x16x128xbf16, #tpu.memory_space<vmem>>, vector<1x16x128xbf16>,
      %c5_i32_128 = arith.constant 5 : i32
      %407 = arith.index_cast %c5_i32_128 : i32 to index
      %c0_129 = arith.constant 0 : index
      %c0_130 = arith.constant 0 : index
      %408 = vector.load %arg13[%407, %c0_129, %c0_130] : memref<8x16x512xbf16, #tpu.memory_space<vmem>>, vector<1x16x512xbf16>
      %409 = vector.shape_cast %408 : vector<1x16x512xbf16> to vector<16x512xbf16>
      %410 = arith.extf %409 : vector<16x512xbf16> to vector<16x512xf32>
      %411 = arith.truncf %401 : vector<16x128xf32> to vector<16x128xbf16>
      %cst_131 = arith.constant dense<0.000000e+00> : vector<16x512xf32>
      %412 = tpu.matmul %411, %265, %cst_131 {dimension_numbers = #tpu.dot_dimension_numbers<[1], [0], [0], [1], [0, 0, 1, 1], [], []>} : vector<16x128xbf16>, vector<128x512xbf16>, vector<16x512xf32> -> vector<16x512xf32>
      %413 = arith.addf %410, %412 : vector<16x512xf32>
      %414 = vector.extract_strided_slice %413 {offsets = [0, 0], sizes = [16, 384], strides = [1, 1]} : vector<16x512xf32> to vector<16x384xf32>
      %415 = arith.negf %414 : vector<16x384xf32>
      %416 = math.exp %415 : vector<16x384xf32>
      %cst_132 = arith.constant 1.000000e+00 : f32
      %417 = vector.broadcast %cst_132 : f32 to vector<16x384xf32>
      %418 = arith.addf %417, %416 : vector<16x384xf32>
      %419 = arith.divf %417, %418 : vector<16x384xf32>
      %420 = vector.extract_strided_slice %419 {offsets = [0, 0], sizes = [16, 128], strides = [1, 1]} : vector<16x384xf32> to vector<16x128xf32>
      %421 = vector.extract_strided_slice %419 {offsets = [0, 128], sizes = [16, 128], strides = [1, 1]} : vector<16x384xf32> to vector<16x128xf32>
      %422 = vector.extract_strided_slice %419 {offsets = [0, 256], sizes = [16, 128], strides = [1, 1]} : vector<16x384xf32> to vector<16x128xf32>
      %423 = vector.extract_strided_slice %413 {offsets = [0, 384], sizes = [16, 128], strides = [1, 1]} : vector<16x512xf32> to vector<16x128xf32>
      %424 = math.tanh %423 : vector<16x128xf32>
      %425 = arith.mulf %421, %399 : vector<16x128xf32>
      %426 = arith.mulf %420, %424 : vector<16x128xf32>
      %427 = arith.addf %425, %426 : vector<16x128xf32>
      %428 = math.tanh %427 : vector<16x128xf32>
      %429 = arith.mulf %422, %428 : vector<16x128xf32>
      %430 = arith.truncf %429 : vector<16x128xf32> to vector<16x128xbf16>
      %431 = arith.index_cast %c5_i32_128 : i32 to index
      %c0_133 = arith.constant 0 : index
      %c0_134 = arith.constant 0 : index
      %432 = vector.load %arg14[%431, %c0_133, %c0_134] : memref<8x16x128xbf16, #tpu.memory_space<vmem>>, vector<1x16x128xbf16>
      %433 = vector.shape_cast %432 : vector<1x16x128xbf16> to vector<16x128xbf16>
      %434 = vector.shape_cast %430 : vector<16x128xbf16> to vector<1x16x128xbf16>
      tpu.vector_store %arg14[%431, %c0_133, %c0_134], %434 {strides = array<i32>} : memref<8x16x128xbf16, #tpu.memory_space<vmem>>, vector<1x16x128xbf16>,
      %c6_i32_135 = arith.constant 6 : i32
      %435 = arith.index_cast %c6_i32_135 : i32 to index
      %c0_136 = arith.constant 0 : index
      %c0_137 = arith.constant 0 : index
      %436 = vector.load %arg13[%435, %c0_136, %c0_137] : memref<8x16x512xbf16, #tpu.memory_space<vmem>>, vector<1x16x512xbf16>
      %437 = vector.shape_cast %436 : vector<1x16x512xbf16> to vector<16x512xbf16>
      %438 = arith.extf %437 : vector<16x512xbf16> to vector<16x512xf32>
      %439 = arith.truncf %429 : vector<16x128xf32> to vector<16x128xbf16>
      %cst_138 = arith.constant dense<0.000000e+00> : vector<16x512xf32>
      %440 = tpu.matmul %439, %265, %cst_138 {dimension_numbers = #tpu.dot_dimension_numbers<[1], [0], [0], [1], [0, 0, 1, 1], [], []>} : vector<16x128xbf16>, vector<128x512xbf16>, vector<16x512xf32> -> vector<16x512xf32>
      %441 = arith.addf %438, %440 : vector<16x512xf32>
      %442 = vector.extract_strided_slice %441 {offsets = [0, 0], sizes = [16, 384], strides = [1, 1]} : vector<16x512xf32> to vector<16x384xf32>
      %443 = arith.negf %442 : vector<16x384xf32>
      %444 = math.exp %443 : vector<16x384xf32>
      %cst_139 = arith.constant 1.000000e+00 : f32
      %445 = vector.broadcast %cst_139 : f32 to vector<16x384xf32>
      %446 = arith.addf %445, %444 : vector<16x384xf32>
      %447 = arith.divf %445, %446 : vector<16x384xf32>
      %448 = vector.extract_strided_slice %447 {offsets = [0, 0], sizes = [16, 128], strides = [1, 1]} : vector<16x384xf32> to vector<16x128xf32>
      %449 = vector.extract_strided_slice %447 {offsets = [0, 128], sizes = [16, 128], strides = [1, 1]} : vector<16x384xf32> to vector<16x128xf32>
      %450 = vector.extract_strided_slice %447 {offsets = [0, 256], sizes = [16, 128], strides = [1, 1]} : vector<16x384xf32> to vector<16x128xf32>
      %451 = vector.extract_strided_slice %441 {offsets = [0, 384], sizes = [16, 128], strides = [1, 1]} : vector<16x512xf32> to vector<16x128xf32>
      %452 = math.tanh %451 : vector<16x128xf32>
      %453 = arith.mulf %449, %427 : vector<16x128xf32>
      %454 = arith.mulf %448, %452 : vector<16x128xf32>
      %455 = arith.addf %453, %454 : vector<16x128xf32>
      %456 = math.tanh %455 : vector<16x128xf32>
      %457 = arith.mulf %450, %456 : vector<16x128xf32>
      %458 = arith.truncf %457 : vector<16x128xf32> to vector<16x128xbf16>
      %459 = arith.index_cast %c6_i32_135 : i32 to index
      %c0_140 = arith.constant 0 : index
      %c0_141 = arith.constant 0 : index
      %460 = vector.load %arg14[%459, %c0_140, %c0_141] : memref<8x16x128xbf16, #tpu.memory_space<vmem>>, vector<1x16x128xbf16>
      %461 = vector.shape_cast %460 : vector<1x16x128xbf16> to vector<16x128xbf16>
      %462 = vector.shape_cast %458 : vector<16x128xbf16> to vector<1x16x128xbf16>
      tpu.vector_store %arg14[%459, %c0_140, %c0_141], %462 {strides = array<i32>} : memref<8x16x128xbf16, #tpu.memory_space<vmem>>, vector<1x16x128xbf16>,
      %c7_i32_142 = arith.constant 7 : i32
      %463 = arith.index_cast %c7_i32_142 : i32 to index
      %c0_143 = arith.constant 0 : index
      %c0_144 = arith.constant 0 : index
      %464 = vector.load %arg13[%463, %c0_143, %c0_144] : memref<8x16x512xbf16, #tpu.memory_space<vmem>>, vector<1x16x512xbf16>
      %465 = vector.shape_cast %464 : vector<1x16x512xbf16> to vector<16x512xbf16>
      %466 = arith.extf %465 : vector<16x512xbf16> to vector<16x512xf32>
      %467 = arith.truncf %457 : vector<16x128xf32> to vector<16x128xbf16>
      %cst_145 = arith.constant dense<0.000000e+00> : vector<16x512xf32>
      %468 = tpu.matmul %467, %265, %cst_145 {dimension_numbers = #tpu.dot_dimension_numbers<[1], [0], [0], [1], [0, 0, 1, 1], [], []>} : vector<16x128xbf16>, vector<128x512xbf16>, vector<16x512xf32> -> vector<16x512xf32>
      %469 = arith.addf %466, %468 : vector<16x512xf32>
      %470 = vector.extract_strided_slice %469 {offsets = [0, 0], sizes = [16, 384], strides = [1, 1]} : vector<16x512xf32> to vector<16x384xf32>
      %471 = arith.negf %470 : vector<16x384xf32>
      %472 = math.exp %471 : vector<16x384xf32>
      %cst_146 = arith.constant 1.000000e+00 : f32
      %473 = vector.broadcast %cst_146 : f32 to vector<16x384xf32>
      %474 = arith.addf %473, %472 : vector<16x384xf32>
      %475 = arith.divf %473, %474 : vector<16x384xf32>
      %476 = vector.extract_strided_slice %475 {offsets = [0, 0], sizes = [16, 128], strides = [1, 1]} : vector<16x384xf32> to vector<16x128xf32>
      %477 = vector.extract_strided_slice %475 {offsets = [0, 128], sizes = [16, 128], strides = [1, 1]} : vector<16x384xf32> to vector<16x128xf32>
      %478 = vector.extract_strided_slice %475 {offsets = [0, 256], sizes = [16, 128], strides = [1, 1]} : vector<16x384xf32> to vector<16x128xf32>
      %479 = vector.extract_strided_slice %469 {offsets = [0, 384], sizes = [16, 128], strides = [1, 1]} : vector<16x512xf32> to vector<16x128xf32>
      %480 = math.tanh %479 : vector<16x128xf32>
      %481 = arith.mulf %477, %455 : vector<16x128xf32>
      %482 = arith.mulf %476, %480 : vector<16x128xf32>
      %483 = arith.addf %481, %482 : vector<16x128xf32>
      %484 = math.tanh %483 : vector<16x128xf32>
      %485 = arith.mulf %478, %484 : vector<16x128xf32>
      %486 = arith.truncf %485 : vector<16x128xf32> to vector<16x128xbf16>
      %487 = arith.index_cast %c7_i32_142 : i32 to index
      %c0_147 = arith.constant 0 : index
      %c0_148 = arith.constant 0 : index
      %488 = vector.load %arg14[%487, %c0_147, %c0_148] : memref<8x16x128xbf16, #tpu.memory_space<vmem>>, vector<1x16x128xbf16>
      %489 = vector.shape_cast %488 : vector<1x16x128xbf16> to vector<16x128xbf16>
      %490 = vector.shape_cast %486 : vector<16x128xbf16> to vector<1x16x128xbf16>
      tpu.vector_store %arg14[%487, %c0_147, %c0_148], %490 {strides = array<i32>} : memref<8x16x128xbf16, #tpu.memory_space<vmem>>, vector<1x16x128xbf16>,
      %c8_i32_149 = arith.constant 8 : i32
      %c1 = arith.constant 1 : index
      %c0_150 = arith.constant 0 : index
      %c0_151 = arith.constant 0 : index
      %491 = vector.load %arg11[%c1, %c0_150, %c0_151] : memref<2x16x128xf32, #tpu.memory_space<vmem>>, vector<1x16x128xf32>
      %492 = vector.shape_cast %491 : vector<1x16x128xf32> to vector<16x128xf32>
      %493 = vector.shape_cast %485 : vector<16x128xf32> to vector<1x16x128xf32>
      tpu.vector_store %arg11[%c1, %c0_150, %c0_151], %493 {strides = array<i32>} : memref<2x16x128xf32, #tpu.memory_space<vmem>>, vector<1x16x128xf32>,
      %c1_152 = arith.constant 1 : index
      %c0_153 = arith.constant 0 : index
      %c0_154 = arith.constant 0 : index
      %494 = vector.load %arg12[%c1_152, %c0_153, %c0_154] : memref<2x16x128xf32, #tpu.memory_space<vmem>>, vector<1x16x128xf32>
      %495 = vector.shape_cast %494 : vector<1x16x128xf32> to vector<16x128xf32>
      %496 = vector.shape_cast %483 : vector<16x128xf32> to vector<1x16x128xf32>
      tpu.vector_store %arg12[%c1_152, %c0_153, %c0_154], %496 {strides = array<i32>} : memref<2x16x128xf32, #tpu.memory_space<vmem>>, vector<1x16x128xf32>,
    } else {
    }
    %c0 = arith.constant 0 : index
    %c0_1 = arith.constant 0 : index
    %c0_2 = arith.constant 0 : index
    %3 = vector.load %arg14[%c0, %c0_1, %c0_2] : memref<8x16x128xbf16, #tpu.memory_space<vmem>>, vector<8x16x128xbf16>
    %4 = vector.shape_cast %3 : vector<8x16x128xbf16> to vector<128x128xbf16>
    %c0_3 = arith.constant 0 : index
    %c0_4 = arith.constant 0 : index
    %5 = vector.load %arg8[%c0_3, %c0_4] : memref<128x128xbf16, #tpu.memory_space<vmem>>, vector<128x128xbf16>
    %cst = arith.constant dense<0.000000e+00> : vector<128x128xf32>
    %6 = tpu.matmul %4, %5, %cst {dimension_numbers = #tpu.dot_dimension_numbers<[1], [0], [0], [1], [0, 0, 1, 1], [], []>} : vector<128x128xbf16>, vector<128x128xbf16>, vector<128x128xf32> -> vector<128x128xf32>
    %c0_5 = arith.constant 0 : index
    %c0_6 = arith.constant 0 : index
    %7 = vector.load %arg9[%c0_5, %c0_6] : memref<1x128xf32, #tpu.memory_space<vmem>>, vector<1x128xf32>
    %8 = vector.broadcast %7 : vector<1x128xf32> to vector<128x128xf32>
    %9 = arith.addf %6, %8 : vector<128x128xf32>
    %10 = vector.shape_cast %9 : vector<128x128xf32> to vector<8x16x128xf32>
    %11 = arith.truncf %10 : vector<8x16x128xf32> to vector<8x16x128xbf16>
    %c0_7 = arith.constant 0 : index
    %c0_8 = arith.constant 0 : index
    %c0_9 = arith.constant 0 : index
    %12 = vector.load %arg10[%c0_7, %c0_8, %c0_9] : memref<8x16x128xbf16, #tpu.memory_space<vmem>>, vector<8x16x128xbf16>
    tpu.vector_store %arg10[%c0_7, %c0_8, %c0_9], %11 {strides = array<i32>} : memref<8x16x128xbf16, #tpu.memory_space<vmem>>, vector<8x16x128xbf16>,
    return
  }
  func.func @transform_0(%arg0: i32) -> (i32, i32, i32) {
    %c0_i32 = arith.constant 0 : i32
    %c0_i32_0 = arith.constant 0 : i32
    %c0_i32_1 = arith.constant 0 : i32
    %c0_i32_2 = arith.constant 0 : i32
    return %c0_i32, %c0_i32_0, %c0_i32_1 : i32, i32, i32
  }
  func.func @transform_1(%arg0: i32) -> (i32, i32) {
    %c0_i32 = arith.constant 0 : i32
    %c0_i32_0 = arith.constant 0 : i32
    %c0_i32_1 = arith.constant 0 : i32
    return %c0_i32, %c0_i32_0 : i32, i32
  }
  func.func @transform_2(%arg0: i32) -> (i32, i32) {
    %c0_i32 = arith.constant 0 : i32
    %c0_i32_0 = arith.constant 0 : i32
    %c0_i32_1 = arith.constant 0 : i32
    return %c0_i32, %c0_i32_0 : i32, i32
  }
  func.func @transform_3(%arg0: i32) -> (i32, i32) {
    %c0_i32 = arith.constant 0 : i32
    %c0_i32_0 = arith.constant 0 : i32
    %c0_i32_1 = arith.constant 0 : i32
    return %c0_i32, %c0_i32_0 : i32, i32
  }
  func.func @transform_4(%arg0: i32) -> (i32, i32) {
    %c0_i32 = arith.constant 0 : i32
    %c0_i32_0 = arith.constant 0 : i32
    %c0_i32_1 = arith.constant 0 : i32
    return %c0_i32, %c0_i32_0 : i32, i32
  }
  func.func @transform_5(%arg0: i32) -> (i32, i32) {
    %c0_i32 = arith.constant 0 : i32
    %c0_i32_0 = arith.constant 0 : i32
    %c0_i32_1 = arith.constant 0 : i32
    return %c0_i32, %c0_i32_0 : i32, i32
  }
  func.func @transform_6(%arg0: i32) -> (i32, i32) {
    %c0_i32 = arith.constant 0 : i32
    %c0_i32_0 = arith.constant 0 : i32
    %c0_i32_1 = arith.constant 0 : i32
    return %c0_i32, %c0_i32_0 : i32, i32
  }
  func.func @transform_7(%arg0: i32) -> (i32, i32) {
    %c0_i32 = arith.constant 0 : i32
    %c0_i32_0 = arith.constant 0 : i32
    return %c0_i32, %arg0 : i32, i32
  }
  func.func @transform_8(%arg0: i32) -> (i32, i32) {
    %c0_i32 = arith.constant 0 : i32
    %c0_i32_0 = arith.constant 0 : i32
    return %c0_i32, %arg0 : i32, i32
  }
  func.func @transform_9(%arg0: i32) -> (i32, i32, i32) {
    %c0_i32 = arith.constant 0 : i32
    %c0_i32_0 = arith.constant 0 : i32
    %c0_i32_1 = arith.constant 0 : i32
    return %c0_i32, %c0_i32_0, %arg0 : i32, i32, i32
  }
  func.func @transform_10(%arg0: i32) -> (i32, i32, i32) {
    %c0_i32 = arith.constant 0 : i32
    %c0_i32_0 = arith.constant 0 : i32
    %c0_i32_1 = arith.constant 0 : i32
    %c0_i32_2 = arith.constant 0 : i32
    return %c0_i32, %c0_i32_0, %c0_i32_1 : i32, i32, i32
  }
  func.func @transform_11(%arg0: i32) -> (i32, i32, i32) {
    %c0_i32 = arith.constant 0 : i32
    %c0_i32_0 = arith.constant 0 : i32
    %c0_i32_1 = arith.constant 0 : i32
    %c0_i32_2 = arith.constant 0 : i32
    return %c0_i32, %c0_i32_0, %c0_i32_1 : i32, i32, i32
  }
}

</mosaic_0001>

<llo_original>
// kernel: lstm_generator_forward.1
$region0: #{lstm_generator_forward.1}
  #allocation0 [shape = 'u32[]', space=smem, size = 0x4, offset = 0x4, fixed_abs, tag = 'smem constant byte address 0x4 - core index']
  #allocation1 [shape = 'u32[144,128]{1,0:T(1,128)}', space=vmem, size = 0x12000, scoped, tag = 'internal scratch']
  #allocation2 [shape = 'bf16[8,16,512]{2,1,0:T(8,128)(2,1)}', space=vmem, size = 0x20000, scoped, tag = 'scratch operand']
  #allocation3 [shape = 'bf16[8,16,128]{2,1,0:T(8,128)(2,1)}', space=vmem, size = 0x8000, scoped, tag = 'scratch operand']
  %s0 = inlined_call_operand.vmem [shape: bf16[8,16,128], index: 0, kind: input, shape index: {}]
  %s1 = inlined_call_operand.vmem [shape: bf16[128,512], index: 1, kind: input, shape index: {}]
  %s2 = inlined_call_operand.vmem [shape: bf16[128,512], index: 2, kind: input, shape index: {}]
  %s3 = inlined_call_operand.vmem [shape: f32[1,512], index: 3, kind: input, shape index: {}]
  %s4 = inlined_call_operand.vmem [shape: bf16[128,512], index: 4, kind: input, shape index: {}]
  %s5 = inlined_call_operand.vmem [shape: bf16[128,512], index: 5, kind: input, shape index: {}]
  %s6 = inlined_call_operand.vmem [shape: f32[1,512], index: 6, kind: input, shape index: {}]
  %s7 = inlined_call_operand.vmem [shape: bf16[128,128], index: 7, kind: input, shape index: {}]
  %s8 = inlined_call_operand.vmem [shape: f32[1,128], index: 8, kind: input, shape index: {}]
  %s9 = inlined_call_operand.vmem [shape: bf16[8,16,128], index: 9, kind: output, shape index: {0}]
  %s10 = inlined_call_operand.vmem [shape: f32[2,16,128], index: 10, kind: output, shape index: {1}]
  %s11 = inlined_call_operand.vmem [shape: f32[2,16,128], index: 11, kind: output, shape index: {2}]
  %12 = xla_tuple %s9, %s10, %s11
  %s13 = sld [smem:[#allocation0]]
  $region66: #{lstm_generator_forward.1} parent=0
    _
  %s15 = ssub.s32 1, %s13
  %s16 = scalar_select 0, %s15, %s13
  // Predicated region
  $region2: #{lstm_generator_forward.1} parent=0 // pred_check
    _
  $region3: #{lstm_generator_forward.1} parent=0 // pred_check_branch
    %18 = sbr.rel (0) target = $region5
  $region4: #{lstm_generator_forward.1} parent=0 // pred_region
    _
  $region5: #{lstm_generator_forward.1} parent=0 // pred_fallthru
    _
  // Predicated region
  $region6: #{lstm_generator_forward.1} parent=0 // pred_check
    _
  $region7: #{lstm_generator_forward.1} parent=0 // pred_check_branch
    %20 = sbr.rel (0) target = $region9
  $region8: #{lstm_generator_forward.1} parent=0 // pred_region
    _
  $region9: #{lstm_generator_forward.1} parent=0 // pred_fallthru
    _
  // Predicated region
  $region10: #{lstm_generator_forward.1} parent=0 // pred_check
    _
  $region11: #{lstm_generator_forward.1} parent=0 // pred_check_branch
    %22 = sbr.rel (0) target = $region13
  $region12: #{lstm_generator_forward.1} parent=0 // pred_region
    _
  $region13: #{lstm_generator_forward.1} parent=0 // pred_fallthru
    _
  // Predicated region
  $region14: #{lstm_generator_forward.1} parent=0 // pred_check
    _
  $region15: #{lstm_generator_forward.1} parent=0 // pred_check_branch
    %24 = sbr.rel (0) target = $region17
  $region16: #{lstm_generator_forward.1} parent=0 // pred_region
    _
  $region17: #{lstm_generator_forward.1} parent=0 // pred_fallthru
    _
  // Predicated region
  $region18: #{lstm_generator_forward.1} parent=0 // pred_check
    _
  $region19: #{lstm_generator_forward.1} parent=0 // pred_check_branch
    %26 = sbr.rel (0) target = $region21
  $region20: #{lstm_generator_forward.1} parent=0 // pred_region
    _
  $region21: #{lstm_generator_forward.1} parent=0 // pred_fallthru
    _
  // Predicated region
  $region22: #{lstm_generator_forward.1} parent=0 // pred_check
    _
  $region23: #{lstm_generator_forward.1} parent=0 // pred_check_branch
    %28 = sbr.rel (0) target = $region25
  $region24: #{lstm_generator_forward.1} parent=0 // pred_region
    _
  $region25: #{lstm_generator_forward.1} parent=0 // pred_fallthru
    _
  // Predicated region
  $region26: #{lstm_generator_forward.1} parent=0 // pred_check
    _
  $region27: #{lstm_generator_forward.1} parent=0 // pred_check_branch
    %30 = sbr.rel (0) target = $region29
  $region28: #{lstm_generator_forward.1} parent=0 // pred_region
    _
  $region29: #{lstm_generator_forward.1} parent=0 // pred_fallthru
    _
  // Predicated region
  $region30: #{lstm_generator_forward.1} parent=0 // pred_check
    _
  $region31: #{lstm_generator_forward.1} parent=0 // pred_check_branch
    %32 = sbr.rel (0) target = $region33
  $region32: #{lstm_generator_forward.1} parent=0 // pred_region
    _
  $region33: #{lstm_generator_forward.1} parent=0 // pred_fallthru
    _
  // Predicated region
  $region34: #{lstm_generator_forward.1} parent=0 // pred_check
    _
  $region35: #{lstm_generator_forward.1} parent=0 // pred_check_branch
    %34 = sbr.rel (0) target = $region37
  $region36: #{lstm_generator_forward.1} parent=0 // pred_region
    _
  $region37: #{lstm_generator_forward.1} parent=0 // pred_fallthru
    _
  %p36 = scmp.eq.s32.totalorder 0, 0
  // Predicated region
  $region38: #{lstm_generator_forward.1} parent=0 // pred_check
    %p37 = pneg %p36
  $region39: #{lstm_generator_forward.1} parent=0 // pred_check_branch
    %39 = sbr.rel (%p37) target = $region41
  $region40: #{lstm_generator_forward.1} parent=0 // pred_region
    %v40 = vld [vmem:[%s0] sm:$0xf]
    %v41 = vld [vmem:[%s0 + $0x4] sm:$0xf]
    %v42 = vld [vmem:[%s0 + $0x8] sm:$0xf]
    %v43 = vld [vmem:[%s0 + $0xc] sm:$0xf]
    %v44 = vld [vmem:[%s0 + $0x10] sm:$0xf]
    %v45 = vld [vmem:[%s0 + $0x14] sm:$0xf]
    %v46 = vld [vmem:[%s0 + $0x18] sm:$0xf]
    %v47 = vld [vmem:[%s0 + $0x1c] sm:$0xf]
    %v48 = vld [vmem:[%s0 + $0x20] sm:$0xf]
    %v49 = vld [vmem:[%s0 + $0x24] sm:$0xf]
    %v50 = vld [vmem:[%s0 + $0x28] sm:$0xf]
    %v51 = vld [vmem:[%s0 + $0x2c] sm:$0xf]
    %v52 = vld [vmem:[%s0 + $0x30] sm:$0xf]
    %v53 = vld [vmem:[%s0 + $0x34] sm:$0xf]
    %v54 = vld [vmem:[%s0 + $0x38] sm:$0xf]
    %v55 = vld [vmem:[%s0 + $0x3c] sm:$0xf]
    %v56 = vld [vmem:[%s1] sm:$0xff]
    %v57 = vld [vmem:[%s1 + $0x8] sm:$0xff]
    %v58 = vld [vmem:[%s1 + $0x10] sm:$0xff]
    %v59 = vld [vmem:[%s1 + $0x18] sm:$0xff]
    %v60 = vld [vmem:[%s1 + $0x20] sm:$0xff]
    %v61 = vld [vmem:[%s1 + $0x28] sm:$0xff]
    %v62 = vld [vmem:[%s1 + $0x30] sm:$0xff]
    %v63 = vld [vmem:[%s1 + $0x38] sm:$0xff]
    %v64 = vld [vmem:[%s1 + $0x40] sm:$0xff]
    %v65 = vld [vmem:[%s1 + $0x48] sm:$0xff]
    %v66 = vld [vmem:[%s1 + $0x50] sm:$0xff]
    %v67 = vld [vmem:[%s1 + $0x58] sm:$0xff]
    %v68 = vld [vmem:[%s1 + $0x60] sm:$0xff]
    %v69 = vld [vmem:[%s1 + $0x68] sm:$0xff]
    %v70 = vld [vmem:[%s1 + $0x70] sm:$0xff]
    %v71 = vld [vmem:[%s1 + $0x78] sm:$0xff]
    %v72 = vld [vmem:[%s1 + $0x80] sm:$0xff]
    %v73 = vld [vmem:[%s1 + $0x88] sm:$0xff]
    %v74 = vld [vmem:[%s1 + $0x90] sm:$0xff]
    %v75 = vld [vmem:[%s1 + $0x98] sm:$0xff]
    %v76 = vld [vmem:[%s1 + $0xa0] sm:$0xff]
    %v77 = vld [vmem:[%s1 + $0xa8] sm:$0xff]
    %v78 = vld [vmem:[%s1 + $0xb0] sm:$0xff]
    %v79 = vld [vmem:[%s1 + $0xb8] sm:$0xff]
    %v80 = vld [vmem:[%s1 + $0xc0] sm:$0xff]
    %v81 = vld [vmem:[%s1 + $0xc8] sm:$0xff]
    %v82 = vld [vmem:[%s1 + $0xd0] sm:$0xff]
    %v83 = vld [vmem:[%s1 + $0xd8] sm:$0xff]
    %v84 = vld [vmem:[%s1 + $0xe0] sm:$0xff]
    %v85 = vld [vmem:[%s1 + $0xe8] sm:$0xff]
    %v86 = vld [vmem:[%s1 + $0xf0] sm:$0xff]
    %v87 = vld [vmem:[%s1 + $0xf8] sm:$0xff]
    %v88 = vld [vmem:[%s3] sm:$0xf]
    %v90 = vlaneseq
    %v91 = vshrl.u32 %v90, 7
    %v92 = vsub.s32 0, %v91
    %v93 = vrot.slane %v88, %v92
    %v94 = vlaneseq
    %v95 = vshrl.u32 %v94, 7
    %v96 = vsub.s32 1, %v95
    %v97 = vrot.slane %v88, %v96
    %v98 = vlaneseq
    %v99 = vshrl.u32 %v98, 7
    %v100 = vsub.s32 2, %v99
    %v101 = vrot.slane %v88, %v100
    %v102 = vlaneseq
    %v103 = vshrl.u32 %v102, 7
    %v104 = vsub.s32 3, %v103
    %v105 = vrot.slane %v88, %v104
    %v126 = vunpack.c.l.b16 %v40
    %v127 = vunpack.c.l.b16 %v41
    %v128 = vunpack.c.l.b16 %v42
    %v129 = vunpack.c.l.b16 %v43
    %v130 = vunpack.c.l.b16 %v44
    %v131 = vunpack.c.l.b16 %v45
    %v132 = vunpack.c.l.b16 %v46
    %v133 = vunpack.c.l.b16 %v47
    %v134 = vunpack.c.l.b16 %v48
    %v135 = vunpack.c.l.b16 %v49
    %v136 = vunpack.c.l.b16 %v50
    %v137 = vunpack.c.l.b16 %v51
    %v138 = vunpack.c.l.b16 %v52
    %v139 = vunpack.c.l.b16 %v53
    %v140 = vunpack.c.l.b16 %v54
    %v141 = vunpack.c.l.b16 %v55
    %v142 = vpack.c.b16 %v127, %v126
    %v143 = vpack.c.b16 %v129, %v128
    %v144 = vpack.c.b16 %v131, %v130
    %v145 = vpack.c.b16 %v133, %v132
    %v146 = vpack.c.b16 %v135, %v134
    %v147 = vpack.c.b16 %v137, %v136
    %v148 = vpack.c.b16 %v139, %v138
    %v149 = vpack.c.b16 %v141, %v140
    %v190 = vunpack.c.l.b16 %v56
    %v191 = vunpack.c.h.b16 %v56
    %v192 = vunpack.c.l.b16 %v57
    %v193 = vunpack.c.h.b16 %v57
    %v194 = vunpack.c.l.b16 %v58
    %v195 = vunpack.c.h.b16 %v58
    %v196 = vunpack.c.l.b16 %v59
    %v197 = vunpack.c.h.b16 %v59
    %v198 = vunpack.c.l.b16 %v60
    %v199 = vunpack.c.h.b16 %v60
    %v200 = vunpack.c.l.b16 %v61
    %v201 = vunpack.c.h.b16 %v61
    %v202 = vunpack.c.l.b16 %v62
    %v203 = vunpack.c.h.b16 %v62
    %v204 = vunpack.c.l.b16 %v63
    %v205 = vunpack.c.h.b16 %v63
    %v206 = vunpack.c.l.b16 %v64
    %v207 = vunpack.c.h.b16 %v64
    %v208 = vunpack.c.l.b16 %v65
    %v209 = vunpack.c.h.b16 %v65
    %v210 = vunpack.c.l.b16 %v66
    %v211 = vunpack.c.h.b16 %v66
    %v212 = vunpack.c.l.b16 %v67
    %v213 = vunpack.c.h.b16 %v67
    %v214 = vunpack.c.l.b16 %v68
    %v215 = vunpack.c.h.b16 %v68
    %v216 = vunpack.c.l.b16 %v69
    %v217 = vunpack.c.h.b16 %v69
    %v218 = vunpack.c.l.b16 %v70
    %v219 = vunpack.c.h.b16 %v70
    %v220 = vunpack.c.l.b16 %v71
    %v221 = vunpack.c.h.b16 %v71
    %v222 = vunpack.c.l.b16 %v72
    %v223 = vunpack.c.h.b16 %v72
    %v224 = vunpack.c.l.b16 %v73
    %v225 = vunpack.c.h.b16 %v73
    %v226 = vunpack.c.l.b16 %v74
    %v227 = vunpack.c.h.b16 %v74
    %v228 = vunpack.c.l.b16 %v75
    %v229 = vunpack.c.h.b16 %v75
    %v230 = vunpack.c.l.b16 %v76
    %v231 = vunpack.c.h.b16 %v76
    %v232 = vunpack.c.l.b16 %v77
    %v233 = vunpack.c.h.b16 %v77
    %v234 = vunpack.c.l.b16 %v78
    %v235 = vunpack.c.h.b16 %v78
    %v236 = vunpack.c.l.b16 %v79
    %v237 = vunpack.c.h.b16 %v79
    %v238 = vunpack.c.l.b16 %v80
    %v239 = vunpack.c.h.b16 %v80
    %v240 = vunpack.c.l.b16 %v81
    %v241 = vunpack.c.h.b16 %v81
    %v242 = vunpack.c.l.b16 %v82
    %v243 = vunpack.c.h.b16 %v82
    %v244 = vunpack.c.l.b16 %v83
    %v245 = vunpack.c.h.b16 %v83
    %v246 = vunpack.c.l.b16 %v84
    %v247 = vunpack.c.h.b16 %v84
    %v248 = vunpack.c.l.b16 %v85
    %v249 = vunpack.c.h.b16 %v85
    %v250 = vunpack.c.l.b16 %v86
    %v251 = vunpack.c.h.b16 %v86
    %v252 = vunpack.c.l.b16 %v87
    %v253 = vunpack.c.h.b16 %v87
    %v254 = vpack.c.b16 %v194, %v190
    %v255 = vpack.c.b16 %v195, %v191
    %v256 = vpack.c.b16 %v196, %v192
    %v257 = vpack.c.b16 %v197, %v193
    %v258 = vpack.c.b16 %v202, %v198
    %v259 = vpack.c.b16 %v203, %v199
    %v260 = vpack.c.b16 %v204, %v200
    %v261 = vpack.c.b16 %v205, %v201
    %v262 = vpack.c.b16 %v210, %v206
    %v263 = vpack.c.b16 %v211, %v207
    %v264 = vpack.c.b16 %v212, %v208
    %v265 = vpack.c.b16 %v213, %v209
    %v266 = vpack.c.b16 %v218, %v214
    %v267 = vpack.c.b16 %v219, %v215
    %v268 = vpack.c.b16 %v220, %v216
    %v269 = vpack.c.b16 %v221, %v217
    %v270 = vpack.c.b16 %v226, %v222
    %v271 = vpack.c.b16 %v227, %v223
    %v272 = vpack.c.b16 %v228, %v224
    %v273 = vpack.c.b16 %v229, %v225
    %v274 = vpack.c.b16 %v234, %v230
    %v275 = vpack.c.b16 %v235, %v231
    %v276 = vpack.c.b16 %v236, %v232
    %v277 = vpack.c.b16 %v237, %v233
    %v278 = vpack.c.b16 %v242, %v238
    %v279 = vpack.c.b16 %v243, %v239
    %v280 = vpack.c.b16 %v244, %v240
    %v281 = vpack.c.b16 %v245, %v241
    %v282 = vpack.c.b16 %v250, %v246
    %v283 = vpack.c.b16 %v251, %v247
    %v284 = vpack.c.b16 %v252, %v248
    %v285 = vpack.c.b16 %v253, %v249
    %318 = vmatprep.subr.bf16.mxu0 %v283
    %319 = vmatpush1.bf16.msra.mxu0 %v282
    %320 = vmatprep.subr.bf16.mxu0 %v279
    %321 = vmatpush1.bf16.msra.mxu0 %v278
    %322 = vmatprep.subr.bf16.mxu0 %v275
    %323 = vmatpush1.bf16.msra.mxu0 %v274
    %324 = vmatprep.subr.bf16.mxu0 %v271
    %325 = vmatpush1.bf16.msra.mxu0 %v270
    %326 = vmatprep.subr.bf16.mxu0 %v267
    %327 = vmatpush1.bf16.msra.mxu0 %v266
    %328 = vmatprep.subr.bf16.mxu0 %v263
    %329 = vmatpush1.bf16.msra.mxu0 %v262
    %330 = vmatprep.subr.bf16.mxu0 %v259
    %331 = vmatpush1.bf16.msra.mxu0 %v258
    %332 = vmatprep.subr.bf16.mxu0 %v255
    %333 = vmatpush1.bf16.msra.mxu0 %v254
    %334 = vmatprep.subr.bf16.mxu0 0
    %335 = vmatpush2.bf16.msra.mxu0 0
    %336 = vmatprep.subr.bf16.mxu0 0
    %337 = vmatpush2.bf16.msra.mxu0 0
    %338 = vmatprep.subr.bf16.mxu0 0
    %339 = vmatpush2.bf16.msra.mxu0 0
    %340 = vmatprep.subr.bf16.mxu0 0
    %341 = vmatpush2.bf16.msra.mxu0 0
    %342 = vmatprep.subr.bf16.mxu0 0
    %343 = vmatpush2.bf16.msra.mxu0 0
    %344 = vmatprep.subr.bf16.mxu0 0
    %345 = vmatpush2.bf16.msra.mxu0 0
    %346 = vmatprep.subr.bf16.mxu0 0
    %347 = vmatpush2.bf16.msra.mxu0 0
    %348 = vmatprep.subr.bf16.mxu0 0
    %349 = vmatpush2.bf16.msra.mxu0 0
    %350 = vmatprep.mubr.bf16.mxu0 0
    %351 = vmatmul.mubr.bf16.gmra.mxu0 %v142
    %v352 = vpop.f32.mrf.mxu0
    %v353 = vadd.f32 %v93, %v352
    %v354 = vpop.f32.mrf.mxu0
    %v355 = vadd.f32 %v97, %v354
    %v356 = vpop.f32.mrf.mxu0
    %v357 = vadd.f32 %v93, %v356
    %v358 = vpop.f32.mrf.mxu0
    %v359 = vadd.f32 %v97, %v358
    %360 = vmatprep.mubr.bf16.mxu0 0
    %361 = vmatmul.mubr.bf16.gmra.mxu0 %v143
    %v362 = vpop.f32.mrf.mxu0
    %v363 = vadd.f32 %v93, %v362
    %v364 = vpop.f32.mrf.mxu0
    %v365 = vadd.f32 %v97, %v364
    %v366 = vpop.f32.mrf.mxu0
    %v367 = vadd.f32 %v93, %v366
    %v368 = vpop.f32.mrf.mxu0
    %v369 = vadd.f32 %v97, %v368
    %370 = vmatprep.mubr.bf16.mxu0 0
    %371 = vmatmul.mubr.bf16.gmra.mxu0 %v144
    %v372 = vpop.f32.mrf.mxu0
    %v373 = vadd.f32 %v93, %v372
    %v374 = vpop.f32.mrf.mxu0
    %v375 = vadd.f32 %v97, %v374
    %v376 = vpop.f32.mrf.mxu0
    %v377 = vadd.f32 %v93, %v376
    %v378 = vpop.f32.mrf.mxu0
    %v379 = vadd.f32 %v97, %v378
    %380 = vmatprep.mubr.bf16.mxu0 0
    %381 = vmatmul.mubr.bf16.gmra.mxu0 %v145
    %v382 = vpop.f32.mrf.mxu0
    %v383 = vadd.f32 %v93, %v382
    %v384 = vpop.f32.mrf.mxu0
    %v385 = vadd.f32 %v97, %v384
    %v386 = vpop.f32.mrf.mxu0
    %v387 = vadd.f32 %v93, %v386
    %v388 = vpop.f32.mrf.mxu0
    %v389 = vadd.f32 %v97, %v388
    %390 = vmatprep.mubr.bf16.mxu0 0
    %391 = vmatmul.mubr.bf16.gmra.mxu0 %v146
    %v392 = vpop.f32.mrf.mxu0
    %v393 = vadd.f32 %v93, %v392
    %v394 = vpop.f32.mrf.mxu0
    %v395 = vadd.f32 %v97, %v394
    %v396 = vpop.f32.mrf.mxu0
    %v397 = vadd.f32 %v93, %v396
    %v398 = vpop.f32.mrf.mxu0
    %v399 = vadd.f32 %v97, %v398
    %400 = vmatprep.mubr.bf16.mxu0 0
    %401 = vmatmul.mubr.bf16.gmra.mxu0 %v147
    %v402 = vpop.f32.mrf.mxu0
    %v403 = vadd.f32 %v93, %v402
    %v404 = vpop.f32.mrf.mxu0
    %v405 = vadd.f32 %v97, %v404
    %v406 = vpop.f32.mrf.mxu0
    %v407 = vadd.f32 %v93, %v406
    %v408 = vpop.f32.mrf.mxu0
    %v409 = vadd.f32 %v97, %v408
    %410 = vmatprep.mubr.bf16.mxu0 0
    %411 = vmatmul.mubr.bf16.gmra.mxu0 %v148
    %v412 = vpop.f32.mrf.mxu0
    %v413 = vadd.f32 %v93, %v412
    %v414 = vpop.f32.mrf.mxu0
    %v415 = vadd.f32 %v97, %v414
    %v416 = vpop.f32.mrf.mxu0
    %v417 = vadd.f32 %v93, %v416
    %v418 = vpop.f32.mrf.mxu0
    %v419 = vadd.f32 %v97, %v418
    %420 = vmatprep.mubr.bf16.mxu0 0
    %421 = vmatmul.mubr.bf16.gmra.mxu0 %v149
    %v422 = vpop.f32.mrf.mxu0
    %v423 = vadd.f32 %v93, %v422
    %v424 = vpop.f32.mrf.mxu0
    %v425 = vadd.f32 %v97, %v424
    %v426 = vpop.f32.mrf.mxu0
    %v427 = vadd.f32 %v93, %v426
    %v428 = vpop.f32.mrf.mxu0
    %v429 = vadd.f32 %v97, %v428
    %430 = vdwg.mxu0
    %431 = vmatprep.subr.bf16.mxu0 %v285
    %432 = vmatpush1.bf16.msra.mxu0 %v284
    %433 = vmatprep.subr.bf16.mxu0 %v281
    %434 = vmatpush1.bf16.msra.mxu0 %v280
    %435 = vmatprep.subr.bf16.mxu0 %v277
    %436 = vmatpush1.bf16.msra.mxu0 %v276
    %437 = vmatprep.subr.bf16.mxu0 %v273
    %438 = vmatpush1.bf16.msra.mxu0 %v272
    %439 = vmatprep.subr.bf16.mxu0 %v269
    %440 = vmatpush1.bf16.msra.mxu0 %v268
    %441 = vmatprep.subr.bf16.mxu0 %v265
    %442 = vmatpush1.bf16.msra.mxu0 %v264
    %443 = vmatprep.subr.bf16.mxu0 %v261
    %444 = vmatpush1.bf16.msra.mxu0 %v260
    %445 = vmatprep.subr.bf16.mxu0 %v257
    %446 = vmatpush1.bf16.msra.mxu0 %v256
    %447 = vmatprep.subr.bf16.mxu0 0
    %448 = vmatpush2.bf16.msra.mxu0 0
    %449 = vmatprep.subr.bf16.mxu0 0
    %450 = vmatpush2.bf16.msra.mxu0 0
    %451 = vmatprep.subr.bf16.mxu0 0
    %452 = vmatpush2.bf16.msra.mxu0 0
    %453 = vmatprep.subr.bf16.mxu0 0
    %454 = vmatpush2.bf16.msra.mxu0 0
    %455 = vmatprep.subr.bf16.mxu0 0
    %456 = vmatpush2.bf16.msra.mxu0 0
    %457 = vmatprep.subr.bf16.mxu0 0
    %458 = vmatpush2.bf16.msra.mxu0 0
    %459 = vmatprep.subr.bf16.mxu0 0
    %460 = vmatpush2.bf16.msra.mxu0 0
    %461 = vmatprep.subr.bf16.mxu0 0
    %462 = vmatpush2.bf16.msra.mxu0 0
    %463 = vmatprep.mubr.bf16.mxu0 0
    %464 = vmatmul.mubr.bf16.gmra.mxu0 %v142
    %v465 = vpop.f32.mrf.mxu0
    %v466 = vadd.f32 %v101, %v465
    %v467 = vpop.f32.mrf.mxu0
    %v468 = vadd.f32 %v105, %v467
    %v469 = vpop.f32.mrf.mxu0
    %v470 = vadd.f32 %v101, %v469
    %v471 = vpop.f32.mrf.mxu0
    %v472 = vadd.f32 %v105, %v471
    %473 = vmatprep.mubr.bf16.mxu0 0
    %474 = vmatmul.mubr.bf16.gmra.mxu0 %v143
    %v475 = vpop.f32.mrf.mxu0
    %v476 = vadd.f32 %v101, %v475
    %v477 = vpop.f32.mrf.mxu0
    %v478 = vadd.f32 %v105, %v477
    %v479 = vpop.f32.mrf.mxu0
    %v480 = vadd.f32 %v101, %v479
    %v481 = vpop.f32.mrf.mxu0
    %v482 = vadd.f32 %v105, %v481
    %483 = vmatprep.mubr.bf16.mxu0 0
    %484 = vmatmul.mubr.bf16.gmra.mxu0 %v144
    %v485 = vpop.f32.mrf.mxu0
    %v486 = vadd.f32 %v101, %v485
    %v487 = vpop.f32.mrf.mxu0
    %v488 = vadd.f32 %v105, %v487
    %v489 = vpop.f32.mrf.mxu0
    %v490 = vadd.f32 %v101, %v489
    %v491 = vpop.f32.mrf.mxu0
    %v492 = vadd.f32 %v105, %v491
    %493 = vmatprep.mubr.bf16.mxu0 0
    %494 = vmatmul.mubr.bf16.gmra.mxu0 %v145
    %v495 = vpop.f32.mrf.mxu0
    %v496 = vadd.f32 %v101, %v495
    %v497 = vpop.f32.mrf.mxu0
    %v498 = vadd.f32 %v105, %v497
    %v499 = vpop.f32.mrf.mxu0
    %v500 = vadd.f32 %v101, %v499
    %v501 = vpop.f32.mrf.mxu0
    %v502 = vadd.f32 %v105, %v501
    %503 = vmatprep.mubr.bf16.mxu0 0
    %504 = vmatmul.mubr.bf16.gmra.mxu0 %v146
    %v505 = vpop.f32.mrf.mxu0
    %v506 = vadd.f32 %v101, %v505
    %v507 = vpop.f32.mrf.mxu0
    %v508 = vadd.f32 %v105, %v507
    %v509 = vpop.f32.mrf.mxu0
    %v510 = vadd.f32 %v101, %v509
    %v511 = vpop.f32.mrf.mxu0
    %v512 = vadd.f32 %v105, %v511
    %513 = vmatprep.mubr.bf16.mxu0 0
    %514 = vmatmul.mubr.bf16.gmra.mxu0 %v147
    %v515 = vpop.f32.mrf.mxu0
    %v516 = vadd.f32 %v101, %v515
    %v517 = vpop.f32.mrf.mxu0
    %v518 = vadd.f32 %v105, %v517
    %v519 = vpop.f32.mrf.mxu0
    %v520 = vadd.f32 %v101, %v519
    %v521 = vpop.f32.mrf.mxu0
    %v522 = vadd.f32 %v105, %v521
    %523 = vmatprep.mubr.bf16.mxu0 0
    %524 = vmatmul.mubr.bf16.gmra.mxu0 %v148
    %v525 = vpop.f32.mrf.mxu0
    %v526 = vadd.f32 %v101, %v525
    %v527 = vpop.f32.mrf.mxu0
    %v528 = vadd.f32 %v105, %v527
    %v529 = vpop.f32.mrf.mxu0
    %v530 = vadd.f32 %v101, %v529
    %v531 = vpop.f32.mrf.mxu0
    %v532 = vadd.f32 %v105, %v531
    %533 = vmatprep.mubr.bf16.mxu0 0
    %534 = vmatmul.mubr.bf16.gmra.mxu0 %v149
    %v535 = vpop.f32.mrf.mxu0
    %v536 = vadd.f32 %v101, %v535
    %v537 = vpop.f32.mrf.mxu0
    %v538 = vadd.f32 %v105, %v537
    %v539 = vpop.f32.mrf.mxu0
    %v540 = vadd.f32 %v101, %v539
    %v541 = vpop.f32.mrf.mxu0
    %v542 = vadd.f32 %v105, %v541
    %543 = vdwg.mxu0
    %v544 = vpack.c.bf16 %v357, %v353
    %v545 = vpack.c.bf16 %v359, %v355
    %v546 = vpack.c.bf16 %v470, %v466
    %v547 = vpack.c.bf16 %v472, %v468
    %v548 = vpack.c.bf16 %v367, %v363
    %v549 = vpack.c.bf16 %v369, %v365
    %v550 = vpack.c.bf16 %v480, %v476
    %v551 = vpack.c.bf16 %v482, %v478
    %v552 = vpack.c.bf16 %v377, %v373
    %v553 = vpack.c.bf16 %v379, %v375
    %v554 = vpack.c.bf16 %v490, %v486
    %v555 = vpack.c.bf16 %v492, %v488
    %v556 = vpack.c.bf16 %v387, %v383
    %v557 = vpack.c.bf16 %v389, %v385
    %v558 = vpack.c.bf16 %v500, %v496
    %v559 = vpack.c.bf16 %v502, %v498
    %v560 = vpack.c.bf16 %v397, %v393
    %v561 = vpack.c.bf16 %v399, %v395
    %v562 = vpack.c.bf16 %v510, %v506
    %v563 = vpack.c.bf16 %v512, %v508
    %v564 = vpack.c.bf16 %v407, %v403
    %v565 = vpack.c.bf16 %v409, %v405
    %v566 = vpack.c.bf16 %v520, %v516
    %v567 = vpack.c.bf16 %v522, %v518
    %v568 = vpack.c.bf16 %v417, %v413
    %v569 = vpack.c.bf16 %v419, %v415
    %v570 = vpack.c.bf16 %v530, %v526
    %v571 = vpack.c.bf16 %v532, %v528
    %v572 = vpack.c.bf16 %v427, %v423
    %v573 = vpack.c.bf16 %v429, %v425
    %v574 = vpack.c.bf16 %v540, %v536
    %v575 = vpack.c.bf16 %v542, %v538
    %v608 = vunpack.c.l.b16 %v544
    %v609 = vunpack.c.l.b16 %v545
    %v610 = vunpack.c.l.b16 %v546
    %v611 = vunpack.c.l.b16 %v547
    %v612 = vunpack.c.h.b16 %v544
    %v613 = vunpack.c.h.b16 %v545
    %v614 = vunpack.c.h.b16 %v546
    %v615 = vunpack.c.h.b16 %v547
    %v616 = vunpack.c.l.b16 %v548
    %v617 = vunpack.c.l.b16 %v549
    %v618 = vunpack.c.l.b16 %v550
    %v619 = vunpack.c.l.b16 %v551
    %v620 = vunpack.c.h.b16 %v548
    %v621 = vunpack.c.h.b16 %v549
    %v622 = vunpack.c.h.b16 %v550
    %v623 = vunpack.c.h.b16 %v551
    %v624 = vunpack.c.l.b16 %v552
    %v625 = vunpack.c.l.b16 %v553
    %v626 = vunpack.c.l.b16 %v554
    %v627 = vunpack.c.l.b16 %v555
    %v628 = vunpack.c.h.b16 %v552
    %v629 = vunpack.c.h.b16 %v553
    %v630 = vunpack.c.h.b16 %v554
    %v631 = vunpack.c.h.b16 %v555
    %v632 = vunpack.c.l.b16 %v556
    %v633 = vunpack.c.l.b16 %v557
    %v634 = vunpack.c.l.b16 %v558
    %v635 = vunpack.c.l.b16 %v559
    %v636 = vunpack.c.h.b16 %v556
    %v637 = vunpack.c.h.b16 %v557
    %v638 = vunpack.c.h.b16 %v558
    %v639 = vunpack.c.h.b16 %v559
    %v640 = vunpack.c.l.b16 %v560
    %v641 = vunpack.c.l.b16 %v561
    %v642 = vunpack.c.l.b16 %v562
    %v643 = vunpack.c.l.b16 %v563
    %v644 = vunpack.c.h.b16 %v560
    %v645 = vunpack.c.h.b16 %v561
    %v646 = vunpack.c.h.b16 %v562
    %v647 = vunpack.c.h.b16 %v563
    %v648 = vunpack.c.l.b16 %v564
    %v649 = vunpack.c.l.b16 %v565
    %v650 = vunpack.c.l.b16 %v566
    %v651 = vunpack.c.l.b16 %v567
    %v652 = vunpack.c.h.b16 %v564
    %v653 = vunpack.c.h.b16 %v565
    %v654 = vunpack.c.h.b16 %v566
    %v655 = vunpack.c.h.b16 %v567
    %v656 = vunpack.c.l.b16 %v568
    %v657 = vunpack.c.l.b16 %v569
    %v658 = vunpack.c.l.b16 %v570
    %v659 = vunpack.c.l.b16 %v571
    %v660 = vunpack.c.h.b16 %v568
    %v661 = vunpack.c.h.b16 %v569
    %v662 = vunpack.c.h.b16 %v570
    %v663 = vunpack.c.h.b16 %v571
    %v664 = vunpack.c.l.b16 %v572
    %v665 = vunpack.c.l.b16 %v573
    %v666 = vunpack.c.l.b16 %v574
    %v667 = vunpack.c.l.b16 %v575
    %v668 = vunpack.c.h.b16 %v572
    %v669 = vunpack.c.h.b16 %v573
    %v670 = vunpack.c.h.b16 %v574
    %v671 = vunpack.c.h.b16 %v575
    %v672 = vpack.c.b16 %v609, %v608
    %v673 = vpack.c.b16 %v611, %v610
    %v674 = vpack.c.b16 %v613, %v612
    %v675 = vpack.c.b16 %v615, %v614
    %v676 = vpack.c.b16 %v617, %v616
    %v677 = vpack.c.b16 %v619, %v618
    %v678 = vpack.c.b16 %v621, %v620
    %v679 = vpack.c.b16 %v623, %v622
    %v680 = vpack.c.b16 %v625, %v624
    %v681 = vpack.c.b16 %v627, %v626
    %v682 = vpack.c.b16 %v629, %v628
    %v683 = vpack.c.b16 %v631, %v630
    %v684 = vpack.c.b16 %v633, %v632
    %v685 = vpack.c.b16 %v635, %v634
    %v686 = vpack.c.b16 %v637, %v636
    %v687 = vpack.c.b16 %v639, %v638
    %v688 = vpack.c.b16 %v641, %v640
    %v689 = vpack.c.b16 %v643, %v642
    %v690 = vpack.c.b16 %v645, %v644
    %v691 = vpack.c.b16 %v647, %v646
    %v692 = vpack.c.b16 %v649, %v648
    %v693 = vpack.c.b16 %v651, %v650
    %v694 = vpack.c.b16 %v653, %v652
    %v695 = vpack.c.b16 %v655, %v654
    %v696 = vpack.c.b16 %v657, %v656
    %v697 = vpack.c.b16 %v659, %v658
    %v698 = vpack.c.b16 %v661, %v660
    %v699 = vpack.c.b16 %v663, %v662
    %v700 = vpack.c.b16 %v665, %v664
    %v701 = vpack.c.b16 %v667, %v666
    %v702 = vpack.c.b16 %v669, %v668
    %v703 = vpack.c.b16 %v671, %v670
    %736 = vst [vmem:[#allocation2] sm:$0xff] %v672
    %737 = vst [vmem:[#allocation2 + $0x8] sm:$0xff] %v673
    %738 = vst [vmem:[#allocation2 + $0x10] sm:$0xff] %v674
    %739 = vst [vmem:[#allocation2 + $0x18] sm:$0xff] %v675
    %740 = vst [vmem:[#allocation2 + $0x20] sm:$0xff] %v676
    %741 = vst [vmem:[#allocation2 + $0x28] sm:$0xff] %v677
    %742 = vst [vmem:[#allocation2 + $0x30] sm:$0xff] %v678
    %743 = vst [vmem:[#allocation2 + $0x38] sm:$0xff] %v679
    %744 = vst [vmem:[#allocation2 + $0x40] sm:$0xff] %v680
    %745 = vst [vmem:[#allocation2 + $0x48] sm:$0xff] %v681
    %746 = vst [vmem:[#allocation2 + $0x50] sm:$0xff] %v682
    %747 = vst [vmem:[#allocation2 + $0x58] sm:$0xff] %v683
    %748 = vst [vmem:[#allocation2 + $0x60] sm:$0xff] %v684
    %749 = vst [vmem:[#allocation2 + $0x68] sm:$0xff] %v685
    %750 = vst [vmem:[#allocation2 + $0x70] sm:$0xff] %v686
    %751 = vst [vmem:[#allocation2 + $0x78] sm:$0xff] %v687
    %752 = vst [vmem:[#allocation2 + $0x80] sm:$0xff] %v688
    %753 = vst [vmem:[#allocation2 + $0x88] sm:$0xff] %v689
    %754 = vst [vmem:[#allocation2 + $0x90] sm:$0xff] %v690
    %755 = vst [vmem:[#allocation2 + $0x98] sm:$0xff] %v691
    %756 = vst [vmem:[#allocation2 + $0xa0] sm:$0xff] %v692
    %757 = vst [vmem:[#allocation2 + $0xa8] sm:$0xff] %v693
    %758 = vst [vmem:[#allocation2 + $0xb0] sm:$0xff] %v694
    %759 = vst [vmem:[#allocation2 + $0xb8] sm:$0xff] %v695
    %760 = vst [vmem:[#allocation2 + $0xc0] sm:$0xff] %v696
    %761 = vst [vmem:[#allocation2 + $0xc8] sm:$0xff] %v697
    %762 = vst [vmem:[#allocation2 + $0xd0] sm:$0xff] %v698
    %763 = vst [vmem:[#allocation2 + $0xd8] sm:$0xff] %v699
    %764 = vst [vmem:[#allocation2 + $0xe0] sm:$0xff] %v700
    %765 = vst [vmem:[#allocation2 + $0xe8] sm:$0xff] %v701
    %766 = vst [vmem:[#allocation2 + $0xf0] sm:$0xff] %v702
    %767 = vst [vmem:[#allocation2 + $0xf8] sm:$0xff] %v703
    %v768 = vld [vmem:[%s2] sm:$0xff]
    %v769 = vld [vmem:[%s2 + $0x8] sm:$0xff]
    %v770 = vld [vmem:[%s2 + $0x10] sm:$0xff]
    %v771 = vld [vmem:[%s2 + $0x18] sm:$0xff]
    %v772 = vld [vmem:[%s2 + $0x20] sm:$0xff]
    %v773 = vld [vmem:[%s2 + $0x28] sm:$0xff]
    %v774 = vld [vmem:[%s2 + $0x30] sm:$0xff]
    %v775 = vld [vmem:[%s2 + $0x38] sm:$0xff]
    %v776 = vld [vmem:[%s2 + $0x40] sm:$0xff]
    %v777 = vld [vmem:[%s2 + $0x48] sm:$0xff]
    %v778 = vld [vmem:[%s2 + $0x50] sm:$0xff]
    %v779 = vld [vmem:[%s2 + $0x58] sm:$0xff]
    %v780 = vld [vmem:[%s2 + $0x60] sm:$0xff]
    %v781 = vld [vmem:[%s2 + $0x68] sm:$0xff]
    %v782 = vld [vmem:[%s2 + $0x70] sm:$0xff]
    %v783 = vld [vmem:[%s2 + $0x78] sm:$0xff]
    %v784 = vld [vmem:[%s2 + $0x80] sm:$0xff]
    %v785 = vld [vmem:[%s2 + $0x88] sm:$0xff]
    %v786 = vld [vmem:[%s2 + $0x90] sm:$0xff]
    %v787 = vld [vmem:[%s2 + $0x98] sm:$0xff]
    %v788 = vld [vmem:[%s2 + $0xa0] sm:$0xff]
    %v789 = vld [vmem:[%s2 + $0xa8] sm:$0xff]
    %v790 = vld [vmem:[%s2 + $0xb0] sm:$0xff]
    %v791 = vld [vmem:[%s2 + $0xb8] sm:$0xff]
    %v792 = vld [vmem:[%s2 + $0xc0] sm:$0xff]
    %v793 = vld [vmem:[%s2 + $0xc8] sm:$0xff]
    %v794 = vld [vmem:[%s2 + $0xd0] sm:$0xff]
    %v795 = vld [vmem:[%s2 + $0xd8] sm:$0xff]
    %v796 = vld [vmem:[%s2 + $0xe0] sm:$0xff]
    %v797 = vld [vmem:[%s2 + $0xe8] sm:$0xff]
    %v798 = vld [vmem:[%s2 + $0xf0] sm:$0xff]
    %v799 = vld [vmem:[%s2 + $0xf8] sm:$0xff]
    %v800 = vld [vmem:[#allocation2] sm:$0xff]
    %v801 = vld [vmem:[#allocation2 + $0x8] sm:$0xff]
    %v802 = vld [vmem:[#allocation2 + $0x10] sm:$0xff]
    %v803 = vld [vmem:[#allocation2 + $0x18] sm:$0xff]
    %v804 = vunpack.c.l.bf16 %v800
    %v805 = vunpack.c.h.bf16 %v800
    %v806 = vunpack.c.l.bf16 %v801
    %v807 = vunpack.c.h.bf16 %v801
    %v808 = vunpack.c.l.bf16 %v802
    %v809 = vunpack.c.h.bf16 %v802
    %v810 = vunpack.c.l.bf16 %v803
    %v811 = vunpack.c.h.bf16 %v803
    %v844 = vunpack.c.l.b16 %v768
    %v845 = vunpack.c.h.b16 %v768
    %v846 = vunpack.c.l.b16 %v769
    %v847 = vunpack.c.h.b16 %v769
    %v848 = vunpack.c.l.b16 %v770
    %v849 = vunpack.c.h.b16 %v770
    %v850 = vunpack.c.l.b16 %v771
    %v851 = vunpack.c.h.b16 %v771
    %v852 = vunpack.c.l.b16 %v772
    %v853 = vunpack.c.h.b16 %v772
    %v854 = vunpack.c.l.b16 %v773
    %v855 = vunpack.c.h.b16 %v773
    %v856 = vunpack.c.l.b16 %v774
    %v857 = vunpack.c.h.b16 %v774
    %v858 = vunpack.c.l.b16 %v775
    %v859 = vunpack.c.h.b16 %v775
    %v860 = vunpack.c.l.b16 %v776
    %v861 = vunpack.c.h.b16 %v776
    %v862 = vunpack.c.l.b16 %v777
    %v863 = vunpack.c.h.b16 %v777
    %v864 = vunpack.c.l.b16 %v778
    %v865 = vunpack.c.h.b16 %v778
    %v866 = vunpack.c.l.b16 %v779
    %v867 = vunpack.c.h.b16 %v779
    %v868 = vunpack.c.l.b16 %v780
    %v869 = vunpack.c.h.b16 %v780
    %v870 = vunpack.c.l.b16 %v781
    %v871 = vunpack.c.h.b16 %v781
    %v872 = vunpack.c.l.b16 %v782
    %v873 = vunpack.c.h.b16 %v782
    %v874 = vunpack.c.l.b16 %v783
    %v875 = vunpack.c.h.b16 %v783
    %v876 = vunpack.c.l.b16 %v784
    %v877 = vunpack.c.h.b16 %v784
    %v878 = vunpack.c.l.b16 %v785
    %v879 = vunpack.c.h.b16 %v785
    %v880 = vunpack.c.l.b16 %v786
    %v881 = vunpack.c.h.b16 %v786
    %v882 = vunpack.c.l.b16 %v787
    %v883 = vunpack.c.h.b16 %v787
    %v884 = vunpack.c.l.b16 %v788
    %v885 = vunpack.c.h.b16 %v788
    %v886 = vunpack.c.l.b16 %v789
    %v887 = vunpack.c.h.b16 %v789
    %v888 = vunpack.c.l.b16 %v790
    %v889 = vunpack.c.h.b16 %v790
    %v890 = vunpack.c.l.b16 %v791
    %v891 = vunpack.c.h.b16 %v791
    %v892 = vunpack.c.l.b16 %v792
    %v893 = vunpack.c.h.b16 %v792
    %v894 = vunpack.c.l.b16 %v793
    %v895 = vunpack.c.h.b16 %v793
    %v896 = vunpack.c.l.b16 %v794
    %v897 = vunpack.c.h.b16 %v794
    %v898 = vunpack.c.l.b16 %v795
    %v899 = vunpack.c.h.b16 %v795
    %v900 = vunpack.c.l.b16 %v796
    %v901 = vunpack.c.h.b16 %v796
    %v902 = vunpack.c.l.b16 %v797
    %v903 = vunpack.c.h.b16 %v797
    %v904 = vunpack.c.l.b16 %v798
    %v905 = vunpack.c.h.b16 %v798
    %v906 = vunpack.c.l.b16 %v799
    %v907 = vunpack.c.h.b16 %v799
    %v908 = vpack.c.b16 %v848, %v844
    %v909 = vpack.c.b16 %v849, %v845
    %v910 = vpack.c.b16 %v850, %v846
    %v911 = vpack.c.b16 %v851, %v847
    %v912 = vpack.c.b16 %v856, %v852
    %v913 = vpack.c.b16 %v857, %v853
    %v914 = vpack.c.b16 %v858, %v854
    %v915 = vpack.c.b16 %v859, %v855
    %v916 = vpack.c.b16 %v864, %v860
    %v917 = vpack.c.b16 %v865, %v861
    %v918 = vpack.c.b16 %v866, %v862
    %v919 = vpack.c.b16 %v867, %v863
    %v920 = vpack.c.b16 %v872, %v868
    %v921 = vpack.c.b16 %v873, %v869
    %v922 = vpack.c.b16 %v874, %v870
    %v923 = vpack.c.b16 %v875, %v871
    %v924 = vpack.c.b16 %v880, %v876
    %v925 = vpack.c.b16 %v881, %v877
    %v926 = vpack.c.b16 %v882, %v878
    %v927 = vpack.c.b16 %v883, %v879
    %v928 = vpack.c.b16 %v888, %v884
    %v929 = vpack.c.b16 %v889, %v885
    %v930 = vpack.c.b16 %v890, %v886
    %v931 = vpack.c.b16 %v891, %v887
    %v932 = vpack.c.b16 %v896, %v892
    %v933 = vpack.c.b16 %v897, %v893
    %v934 = vpack.c.b16 %v898, %v894
    %v935 = vpack.c.b16 %v899, %v895
    %v936 = vpack.c.b16 %v904, %v900
    %v937 = vpack.c.b16 %v905, %v901
    %v938 = vpack.c.b16 %v906, %v902
    %v939 = vpack.c.b16 %v907, %v903
    %972 = vmatprep.subr.bf16.mxu0 %v937
    %973 = vmatpush1.bf16.msra.mxu0 %v936
    %974 = vmatprep.subr.bf16.mxu0 %v933
    %975 = vmatpush1.bf16.msra.mxu0 %v932
    %976 = vmatprep.subr.bf16.mxu0 %v929
    %977 = vmatpush1.bf16.msra.mxu0 %v928
    %978 = vmatprep.subr.bf16.mxu0 %v925
    %979 = vmatpush1.bf16.msra.mxu0 %v924
    %980 = vmatprep.subr.bf16.mxu0 %v921
    %981 = vmatpush1.bf16.msra.mxu0 %v920
    %982 = vmatprep.subr.bf16.mxu0 %v917
    %983 = vmatpush1.bf16.msra.mxu0 %v916
    %984 = vmatprep.subr.bf16.mxu0 %v913
    %985 = vmatpush1.bf16.msra.mxu0 %v912
    %986 = vmatprep.subr.bf16.mxu0 %v909
    %987 = vmatpush1.bf16.msra.mxu0 %v908
    %988 = vmatprep.subr.bf16.mxu0 0
    %989 = vmatpush2.bf16.msra.mxu0 0
    %990 = vmatprep.subr.bf16.mxu0 0
    %991 = vmatpush2.bf16.msra.mxu0 0
    %992 = vmatprep.subr.bf16.mxu0 0
    %993 = vmatpush2.bf16.msra.mxu0 0
    %994 = vmatprep.subr.bf16.mxu0 0
    %995 = vmatpush2.bf16.msra.mxu0 0
    %996 = vmatprep.subr.bf16.mxu0 0
    %997 = vmatpush2.bf16.msra.mxu0 0
    %998 = vmatprep.subr.bf16.mxu0 0
    %999 = vmatpush2.bf16.msra.mxu0 0
    %1000 = vmatprep.subr.bf16.mxu0 0
    %1001 = vmatpush2.bf16.msra.mxu0 0
    %1002 = vmatprep.subr.bf16.mxu0 0
    %1003 = vmatpush2.bf16.msra.mxu0 0
    %1004 = vmatprep.mubr.bf16.mxu0 0
    %1005 = vmatmul.mubr.bf16.gmra.mxu0 0
    %v1006 = vpop.f32.mrf.mxu0
    %v1007 = vadd.f32 0.0, %v1006
    %v1008 = vpop.f32.mrf.mxu0
    %v1009 = vadd.f32 0.0, %v1008
    %v1010 = vpop.f32.mrf.mxu0
    %v1011 = vadd.f32 0.0, %v1010
    %v1012 = vpop.f32.mrf.mxu0
    %v1013 = vadd.f32 0.0, %v1012
    %1014 = vdwg.mxu0
    %1015 = vmatprep.subr.bf16.mxu0 %v939
    %1016 = vmatpush1.bf16.msra.mxu0 %v938
    %1017 = vmatprep.subr.bf16.mxu0 %v935
    %1018 = vmatpush1.bf16.msra.mxu0 %v934
    %1019 = vmatprep.subr.bf16.mxu0 %v931
    %1020 = vmatpush1.bf16.msra.mxu0 %v930
    %1021 = vmatprep.subr.bf16.mxu0 %v927
    %1022 = vmatpush1.bf16.msra.mxu0 %v926
    %1023 = vmatprep.subr.bf16.mxu0 %v923
    %1024 = vmatpush1.bf16.msra.mxu0 %v922
    %1025 = vmatprep.subr.bf16.mxu0 %v919
    %1026 = vmatpush1.bf16.msra.mxu0 %v918
    %1027 = vmatprep.subr.bf16.mxu0 %v915
    %1028 = vmatpush1.bf16.msra.mxu0 %v914
    %1029 = vmatprep.subr.bf16.mxu0 %v911
    %1030 = vmatpush1.bf16.msra.mxu0 %v910
    %1031 = vmatprep.subr.bf16.mxu0 0
    %1032 = vmatpush2.bf16.msra.mxu0 0
    %1033 = vmatprep.subr.bf16.mxu0 0
    %1034 = vmatpush2.bf16.msra.mxu0 0
    %1035 = vmatprep.subr.bf16.mxu0 0
    %1036 = vmatpush2.bf16.msra.mxu0 0
    %1037 = vmatprep.subr.bf16.mxu0 0
    %1038 = vmatpush2.bf16.msra.mxu0 0
    %1039 = vmatprep.subr.bf16.mxu0 0
    %1040 = vmatpush2.bf16.msra.mxu0 0
    %1041 = vmatprep.subr.bf16.mxu0 0
    %1042 = vmatpush2.bf16.msra.mxu0 0
    %1043 = vmatprep.subr.bf16.mxu0 0
    %1044 = vmatpush2.bf16.msra.mxu0 0
    %1045 = vmatprep.subr.bf16.mxu0 0
    %1046 = vmatpush2.bf16.msra.mxu0 0
    %1047 = vmatprep.mubr.bf16.mxu0 0
    %1048 = vmatmul.mubr.bf16.gmra.mxu0 0
    %v1049 = vpop.f32.mrf.mxu0
    %v1050 = vadd.f32 0.0, %v1049
    %v1051 = vpop.f32.mrf.mxu0
    %v1052 = vadd.f32 0.0, %v1051
    %v1053 = vpop.f32.mrf.mxu0
    %v1054 = vadd.f32 0.0, %v1053
    %v1055 = vpop.f32.mrf.mxu0
    %v1056 = vadd.f32 0.0, %v1055
    %1057 = vdwg.mxu0
    %v1058 = vadd.f32 %v804, %v1007
    %v1059 = vadd.f32 %v805, %v1009
    %v1060 = vadd.f32 %v806, %v1050
    %v1061 = vadd.f32 %v807, %v1052
    %v1062 = vadd.f32 %v808, %v1011
    %v1063 = vadd.f32 %v809, %v1013
    %v1064 = vadd.f32 %v810, %v1054
    %v1065 = vadd.f32 %v811, %v1056
    %v1066 = vxor.u32 %v1058, 2147483648
    %v1067 = vxor.u32 %v1059, 2147483648
    %v1068 = vxor.u32 %v1060, 2147483648
    %v1069 = vxor.u32 %v1062, 2147483648
    %v1070 = vxor.u32 %v1063, 2147483648
    %v1071 = vxor.u32 %v1064, 2147483648
    %v1072 = vmul.f32 %v1066, 1.442695
    %v1073 = vpow.pop %v1072
    %v1074 = vmul.f32 %v1067, 1.442695
    %v1075 = vpow.pop %v1074
    %v1076 = vmul.f32 %v1068, 1.442695
    %v1077 = vpow.pop %v1076
    %v1078 = vmul.f32 %v1069, 1.442695
    %v1079 = vpow.pop %v1078
    %v1080 = vmul.f32 %v1070, 1.442695
    %v1081 = vpow.pop %v1080
    %v1082 = vmul.f32 %v1071, 1.442695
    %v1083 = vpow.pop %v1082
    %v1084 = vadd.f32 %v1073, 1.0
    %v1085 = vadd.f32 %v1075, 1.0
    %v1086 = vadd.f32 %v1077, 1.0
    %v1087 = vadd.f32 %v1079, 1.0
    %v1088 = vadd.f32 %v1081, 1.0
    %v1089 = vadd.f32 %v1083, 1.0
    %v1090 = vrcp.pop %v1084
    %v1091 = vmul.f32 1.0, %v1090
    %v1092 = vrcp.pop %v1085
    %v1093 = vmul.f32 1.0, %v1092
    %v1094 = vrcp.pop %v1086
    %v1095 = vmul.f32 1.0, %v1094
    %v1096 = vrcp.pop %v1087
    %v1097 = vmul.f32 1.0, %v1096
    %v1098 = vrcp.pop %v1088
    %v1099 = vmul.f32 1.0, %v1098
    %v1100 = vrcp.pop %v1089
    %v1101 = vmul.f32 1.0, %v1100
    %v1102 = vtanh.pop %v1061
    %v1103 = vtanh.pop %v1065
    %v1104 = vmul.f32 %v1093, 0.0
    %v1105 = vmul.f32 %v1099, 0.0
    %v1106 = vmul.f32 %v1091, %v1102
    %v1107 = vmul.f32 %v1097, %v1103
    %v1108 = vadd.f32 %v1104, %v1106
    %v1109 = vadd.f32 %v1105, %v1107
    %v1110 = vtanh.pop %v1108
    %v1111 = vtanh.pop %v1109
    %v1112 = vmul.f32 %v1095, %v1110
    %v1113 = vmul.f32 %v1101, %v1111
    %v1114 = vpack.c.bf16 %v1113, %v1112
    %v1116 = vunpack.c.l.b16 %v1114
    %v1117 = vunpack.c.h.b16 %v1114
    %v1118 = vpack.c.b16 %v1116, %v1116
    %v1119 = vpack.c.b16 %v1117, %v1117
    %1122 = vst [vmem:[#allocation3] sm:$0xf] %v1118
    %1123 = vst [vmem:[#allocation3 + $0x4] sm:$0xf] %v1119
    %s1124 = scalar_lea.vmem [#allocation2], 32
    %v1125 = vld [vmem:[%s1124] sm:$0xff]
    %v1126 = vld [vmem:[%s1124 + $0x8] sm:$0xff]
    %v1127 = vld [vmem:[%s1124 + $0x10] sm:$0xff]
    %v1128 = vld [vmem:[%s1124 + $0x18] sm:$0xff]
    %v1129 = vunpack.c.l.bf16 %v1125
    %v1130 = vunpack.c.h.bf16 %v1125
    %v1131 = vunpack.c.l.bf16 %v1126
    %v1132 = vunpack.c.h.bf16 %v1126
    %v1133 = vunpack.c.l.bf16 %v1127
    %v1134 = vunpack.c.h.bf16 %v1127
    %v1135 = vunpack.c.l.bf16 %v1128
    %v1136 = vunpack.c.h.bf16 %v1128
    %1137 = vmatprep.subr.bf16.mxu0 %v937
    %1138 = vmatpush1.bf16.msra.mxu0 %v936
    %1139 = vmatprep.subr.bf16.mxu0 %v933
    %1140 = vmatpush1.bf16.msra.mxu0 %v932
    %1141 = vmatprep.subr.bf16.mxu0 %v929
    %1142 = vmatpush1.bf16.msra.mxu0 %v928
    %1143 = vmatprep.subr.bf16.mxu0 %v925
    %1144 = vmatpush1.bf16.msra.mxu0 %v924
    %1145 = vmatprep.subr.bf16.mxu0 %v921
    %1146 = vmatpush1.bf16.msra.mxu0 %v920
    %1147 = vmatprep.subr.bf16.mxu0 %v917
    %1148 = vmatpush1.bf16.msra.mxu0 %v916
    %1149 = vmatprep.subr.bf16.mxu0 %v913
    %1150 = vmatpush1.bf16.msra.mxu0 %v912
    %1151 = vmatprep.subr.bf16.mxu0 %v909
    %1152 = vmatpush1.bf16.msra.mxu0 %v908
    %1153 = vmatprep.subr.bf16.mxu0 0
    %1154 = vmatpush2.bf16.msra.mxu0 0
    %1155 = vmatprep.subr.bf16.mxu0 0
    %1156 = vmatpush2.bf16.msra.mxu0 0
    %1157 = vmatprep.subr.bf16.mxu0 0
    %1158 = vmatpush2.bf16.msra.mxu0 0
    %1159 = vmatprep.subr.bf16.mxu0 0
    %1160 = vmatpush2.bf16.msra.mxu0 0
    %1161 = vmatprep.subr.bf16.mxu0 0
    %1162 = vmatpush2.bf16.msra.mxu0 0
    %1163 = vmatprep.subr.bf16.mxu0 0
    %1164 = vmatpush2.bf16.msra.mxu0 0
    %1165 = vmatprep.subr.bf16.mxu0 0
    %1166 = vmatpush2.bf16.msra.mxu0 0
    %1167 = vmatprep.subr.bf16.mxu0 0
    %1168 = vmatpush2.bf16.msra.mxu0 0
    %1169 = vmatprep.mubr.bf16.mxu0 0
    %1170 = vmatmul.mubr.bf16.gmra.mxu0 %v1114
    %v1171 = vpop.f32.mrf.mxu0
    %v1172 = vadd.f32 0.0, %v1171
    %v1173 = vpop.f32.mrf.mxu0
    %v1174 = vadd.f32 0.0, %v1173
    %v1175 = vpop.f32.mrf.mxu0
    %v1176 = vadd.f32 0.0, %v1175
    %v1177 = vpop.f32.mrf.mxu0
    %v1178 = vadd.f32 0.0, %v1177
    %1179 = vdwg.mxu0
    %1180 = vmatprep.subr.bf16.mxu0 %v939
    %1181 = vmatpush1.bf16.msra.mxu0 %v938
    %1182 = vmatprep.subr.bf16.mxu0 %v935
    %1183 = vmatpush1.bf16.msra.mxu0 %v934
    %1184 = vmatprep.subr.bf16.mxu0 %v931
    %1185 = vmatpush1.bf16.msra.mxu0 %v930
    %1186 = vmatprep.subr.bf16.mxu0 %v927
    %1187 = vmatpush1.bf16.msra.mxu0 %v926
    %1188 = vmatprep.subr.bf16.mxu0 %v923
    %1189 = vmatpush1.bf16.msra.mxu0 %v922
    %1190 = vmatprep.subr.bf16.mxu0 %v919
    %1191 = vmatpush1.bf16.msra.mxu0 %v918
    %1192 = vmatprep.subr.bf16.mxu0 %v915
    %1193 = vmatpush1.bf16.msra.mxu0 %v914
    %1194 = vmatprep.subr.bf16.mxu0 %v911
    %1195 = vmatpush1.bf16.msra.mxu0 %v910
    %1196 = vmatprep.subr.bf16.mxu0 0
    %1197 = vmatpush2.bf16.msra.mxu0 0
    %1198 = vmatprep.subr.bf16.mxu0 0
    %1199 = vmatpush2.bf16.msra.mxu0 0
    %1200 = vmatprep.subr.bf16.mxu0 0
    %1201 = vmatpush2.bf16.msra.mxu0 0
    %1202 = vmatprep.subr.bf16.mxu0 0
    %1203 = vmatpush2.bf16.msra.mxu0 0
    %1204 = vmatprep.subr.bf16.mxu0 0
    %1205 = vmatpush2.bf16.msra.mxu0 0
    %1206 = vmatprep.subr.bf16.mxu0 0
    %1207 = vmatpush2.bf16.msra.mxu0 0
    %1208 = vmatprep.subr.bf16.mxu0 0
    %1209 = vmatpush2.bf16.msra.mxu0 0
    %1210 = vmatprep.subr.bf16.mxu0 0
    %1211 = vmatpush2.bf16.msra.mxu0 0
    %1212 = vmatprep.mubr.bf16.mxu0 0
    %1213 = vmatmul.mubr.bf16.gmra.mxu0 %v1114
    %v1214 = vpop.f32.mrf.mxu0
    %v1215 = vadd.f32 0.0, %v1214
    %v1216 = vpop.f32.mrf.mxu0
    %v1217 = vadd.f32 0.0, %v1216
    %v1218 = vpop.f32.mrf.mxu0
    %v1219 = vadd.f32 0.0, %v1218
    %v1220 = vpop.f32.mrf.mxu0
    %v1221 = vadd.f32 0.0, %v1220
    %1222 = vdwg.mxu0
    %v1223 = vadd.f32 %v1129, %v1172
    %v1224 = vadd.f32 %v1130, %v1174
    %v1225 = vadd.f32 %v1131, %v1215
    %v1226 = vadd.f32 %v1132, %v1217
    %v1227 = vadd.f32 %v1133, %v1176
    %v1228 = vadd.f32 %v1134, %v1178
    %v1229 = vadd.f32 %v1135, %v1219
    %v1230 = vadd.f32 %v1136, %v1221
    %v1231 = vxor.u32 %v1223, 2147483648
    %v1232 = vxor.u32 %v1224, 2147483648
    %v1233 = vxor.u32 %v1225, 2147483648
    %v1234 = vxor.u32 %v1227, 2147483648
    %v1235 = vxor.u32 %v1228, 2147483648
    %v1236 = vxor.u32 %v1229, 2147483648
    %v1237 = vmul.f32 %v1231, 1.442695
    %v1238 = vpow.pop %v1237
    %v1239 = vmul.f32 %v1232, 1.442695
    %v1240 = vpow.pop %v1239
    %v1241 = vmul.f32 %v1233, 1.442695
    %v1242 = vpow.pop %v1241
    %v1243 = vmul.f32 %v1234, 1.442695
    %v1244 = vpow.pop %v1243
    %v1245 = vmul.f32 %v1235, 1.442695
    %v1246 = vpow.pop %v1245
    %v1247 = vmul.f32 %v1236, 1.442695
    %v1248 = vpow.pop %v1247
    %v1249 = vadd.f32 %v1238, 1.0
    %v1250 = vadd.f32 %v1240, 1.0
    %v1251 = vadd.f32 %v1242, 1.0
    %v1252 = vadd.f32 %v1244, 1.0
    %v1253 = vadd.f32 %v1246, 1.0
    %v1254 = vadd.f32 %v1248, 1.0
    %v1255 = vrcp.pop %v1249
    %v1256 = vmul.f32 1.0, %v1255
    %v1257 = vrcp.pop %v1250
    %v1258 = vmul.f32 1.0, %v1257
    %v1259 = vrcp.pop %v1251
    %v1260 = vmul.f32 1.0, %v1259
    %v1261 = vrcp.pop %v1252
    %v1262 = vmul.f32 1.0, %v1261
    %v1263 = vrcp.pop %v1253
    %v1264 = vmul.f32 1.0, %v1263
    %v1265 = vrcp.pop %v1254
    %v1266 = vmul.f32 1.0, %v1265
    %v1267 = vtanh.pop %v1226
    %v1268 = vtanh.pop %v1230
    %v1269 = vmul.f32 %v1258, %v1108
    %v1270 = vmul.f32 %v1264, %v1109
    %v1271 = vmul.f32 %v1256, %v1267
    %v1272 = vmul.f32 %v1262, %v1268
    %v1273 = vadd.f32 %v1269, %v1271
    %v1274 = vadd.f32 %v1270, %v1272
    %v1275 = vtanh.pop %v1273
    %v1276 = vtanh.pop %v1274
    %v1277 = vmul.f32 %v1260, %v1275
    %v1278 = vmul.f32 %v1266, %v1276
    %v1279 = vpack.c.bf16 %v1278, %v1277
    %v1281 = vunpack.c.l.b16 %v1279
    %v1282 = vunpack.c.h.b16 %v1279
    %v1283 = vpack.c.b16 %v1281, %v1281
    %v1284 = vpack.c.b16 %v1282, %v1282
    %s1287 = scalar_lea.vmem [#allocation3], 8
    %1288 = vst [vmem:[%s1287] sm:$0xf] %v1283
    %1289 = vst [vmem:[%s1287 + $0x4] sm:$0xf] %v1284
    %s1290 = scalar_lea.vmem [#allocation2], 64
    %v1291 = vld [vmem:[%s1290] sm:$0xff]
    %v1292 = vld [vmem:[%s1290 + $0x8] sm:$0xff]
    %v1293 = vld [vmem:[%s1290 + $0x10] sm:$0xff]
    %v1294 = vld [vmem:[%s1290 + $0x18] sm:$0xff]
    %v1295 = vunpack.c.l.bf16 %v1291
    %v1296 = vunpack.c.h.bf16 %v1291
    %v1297 = vunpack.c.l.bf16 %v1292
    %v1298 = vunpack.c.h.bf16 %v1292
    %v1299 = vunpack.c.l.bf16 %v1293
    %v1300 = vunpack.c.h.bf16 %v1293
    %v1301 = vunpack.c.l.bf16 %v1294
    %v1302 = vunpack.c.h.bf16 %v1294
    %1303 = vmatprep.subr.bf16.mxu0 %v937
    %1304 = vmatpush1.bf16.msra.mxu0 %v936
    %1305 = vmatprep.subr.bf16.mxu0 %v933
    %1306 = vmatpush1.bf16.msra.mxu0 %v932
    %1307 = vmatprep.subr.bf16.mxu0 %v929
    %1308 = vmatpush1.bf16.msra.mxu0 %v928
    %1309 = vmatprep.subr.bf16.mxu0 %v925
    %1310 = vmatpush1.bf16.msra.mxu0 %v924
    %1311 = vmatprep.subr.bf16.mxu0 %v921
    %1312 = vmatpush1.bf16.msra.mxu0 %v920
    %1313 = vmatprep.subr.bf16.mxu0 %v917
    %1314 = vmatpush1.bf16.msra.mxu0 %v916
    %1315 = vmatprep.subr.bf16.mxu0 %v913
    %1316 = vmatpush1.bf16.msra.mxu0 %v912
    %1317 = vmatprep.subr.bf16.mxu0 %v909
    %1318 = vmatpush1.bf16.msra.mxu0 %v908
    %1319 = vmatprep.subr.bf16.mxu0 0
    %1320 = vmatpush2.bf16.msra.mxu0 0
    %1321 = vmatprep.subr.bf16.mxu0 0
    %1322 = vmatpush2.bf16.msra.mxu0 0
    %1323 = vmatprep.subr.bf16.mxu0 0
    %1324 = vmatpush2.bf16.msra.mxu0 0
    %1325 = vmatprep.subr.bf16.mxu0 0
    %1326 = vmatpush2.bf16.msra.mxu0 0
    %1327 = vmatprep.subr.bf16.mxu0 0
    %1328 = vmatpush2.bf16.msra.mxu0 0
    %1329 = vmatprep.subr.bf16.mxu0 0
    %1330 = vmatpush2.bf16.msra.mxu0 0
    %1331 = vmatprep.subr.bf16.mxu0 0
    %1332 = vmatpush2.bf16.msra.mxu0 0
    %1333 = vmatprep.subr.bf16.mxu0 0
    %1334 = vmatpush2.bf16.msra.mxu0 0
    %1335 = vmatprep.mubr.bf16.mxu0 0
    %1336 = vmatmul.mubr.bf16.gmra.mxu0 %v1279
    %v1337 = vpop.f32.mrf.mxu0
    %v1338 = vadd.f32 0.0, %v1337
    %v1339 = vpop.f32.mrf.mxu0
    %v1340 = vadd.f32 0.0, %v1339
    %v1341 = vpop.f32.mrf.mxu0
    %v1342 = vadd.f32 0.0, %v1341
    %v1343 = vpop.f32.mrf.mxu0
    %v1344 = vadd.f32 0.0, %v1343
    %1345 = vdwg.mxu0
    %1346 = vmatprep.subr.bf16.mxu0 %v939
    %1347 = vmatpush1.bf16.msra.mxu0 %v938
    %1348 = vmatprep.subr.bf16.mxu0 %v935
    %1349 = vmatpush1.bf16.msra.mxu0 %v934
    %1350 = vmatprep.subr.bf16.mxu0 %v931
    %1351 = vmatpush1.bf16.msra.mxu0 %v930
    %1352 = vmatprep.subr.bf16.mxu0 %v927
    %1353 = vmatpush1.bf16.msra.mxu0 %v926
    %1354 = vmatprep.subr.bf16.mxu0 %v923
    %1355 = vmatpush1.bf16.msra.mxu0 %v922
    %1356 = vmatprep.subr.bf16.mxu0 %v919
    %1357 = vmatpush1.bf16.msra.mxu0 %v918
    %1358 = vmatprep.subr.bf16.mxu0 %v915
    %1359 = vmatpush1.bf16.msra.mxu0 %v914
    %1360 = vmatprep.subr.bf16.mxu0 %v911
    %1361 = vmatpush1.bf16.msra.mxu0 %v910
    %1362 = vmatprep.subr.bf16.mxu0 0
    %1363 = vmatpush2.bf16.msra.mxu0 0
    %1364 = vmatprep.subr.bf16.mxu0 0
    %1365 = vmatpush2.bf16.msra.mxu0 0
    %1366 = vmatprep.subr.bf16.mxu0 0
    %1367 = vmatpush2.bf16.msra.mxu0 0
    %1368 = vmatprep.subr.bf16.mxu0 0
    %1369 = vmatpush2.bf16.msra.mxu0 0
    %1370 = vmatprep.subr.bf16.mxu0 0
    %1371 = vmatpush2.bf16.msra.mxu0 0
    %1372 = vmatprep.subr.bf16.mxu0 0
    %1373 = vmatpush2.bf16.msra.mxu0 0
    %1374 = vmatprep.subr.bf16.mxu0 0
    %1375 = vmatpush2.bf16.msra.mxu0 0
    %1376 = vmatprep.subr.bf16.mxu0 0
    %1377 = vmatpush2.bf16.msra.mxu0 0
    %1378 = vmatprep.mubr.bf16.mxu0 0
    %1379 = vmatmul.mubr.bf16.gmra.mxu0 %v1279
    %v1380 = vpop.f32.mrf.mxu0
    %v1381 = vadd.f32 0.0, %v1380
    %v1382 = vpop.f32.mrf.mxu0
    %v1383 = vadd.f32 0.0, %v1382
    %v1384 = vpop.f32.mrf.mxu0
    %v1385 = vadd.f32 0.0, %v1384
    %v1386 = vpop.f32.mrf.mxu0
    %v1387 = vadd.f32 0.0, %v1386
    %1388 = vdwg.mxu0
    %v1389 = vadd.f32 %v1295, %v1338
    %v1390 = vadd.f32 %v1296, %v1340
    %v1391 = vadd.f32 %v1297, %v1381
    %v1392 = vadd.f32 %v1298, %v1383
    %v1393 = vadd.f32 %v1299, %v1342
    %v1394 = vadd.f32 %v1300, %v1344
    %v1395 = vadd.f32 %v1301, %v1385
    %v1396 = vadd.f32 %v1302, %v1387
    %v1397 = vxor.u32 %v1389, 2147483648
    %v1398 = vxor.u32 %v1390, 2147483648
    %v1399 = vxor.u32 %v1391, 2147483648
    %v1400 = vxor.u32 %v1393, 2147483648
    %v1401 = vxor.u32 %v1394, 2147483648
    %v1402 = vxor.u32 %v1395, 2147483648
    %v1403 = vmul.f32 %v1397, 1.442695
    %v1404 = vpow.pop %v1403
    %v1405 = vmul.f32 %v1398, 1.442695
    %v1406 = vpow.pop %v1405
    %v1407 = vmul.f32 %v1399, 1.442695
    %v1408 = vpow.pop %v1407
    %v1409 = vmul.f32 %v1400, 1.442695
    %v1410 = vpow.pop %v1409
    %v1411 = vmul.f32 %v1401, 1.442695
    %v1412 = vpow.pop %v1411
    %v1413 = vmul.f32 %v1402, 1.442695
    %v1414 = vpow.pop %v1413
    %v1415 = vadd.f32 %v1404, 1.0
    %v1416 = vadd.f32 %v1406, 1.0
    %v1417 = vadd.f32 %v1408, 1.0
    %v1418 = vadd.f32 %v1410, 1.0
    %v1419 = vadd.f32 %v1412, 1.0
    %v1420 = vadd.f32 %v1414, 1.0
    %v1421 = vrcp.pop %v1415
    %v1422 = vmul.f32 1.0, %v1421
    %v1423 = vrcp.pop %v1416
    %v1424 = vmul.f32 1.0, %v1423
    %v1425 = vrcp.pop %v1417
    %v1426 = vmul.f32 1.0, %v1425
    %v1427 = vrcp.pop %v1418
    %v1428 = vmul.f32 1.0, %v1427
    %v1429 = vrcp.pop %v1419
    %v1430 = vmul.f32 1.0, %v1429
    %v1431 = vrcp.pop %v1420
    %v1432 = vmul.f32 1.0, %v1431
    %v1433 = vtanh.pop %v1392
    %v1434 = vtanh.pop %v1396
    %v1435 = vmul.f32 %v1424, %v1273
    %v1436 = vmul.f32 %v1430, %v1274
    %v1437 = vmul.f32 %v1422, %v1433
    %v1438 = vmul.f32 %v1428, %v1434
    %v1439 = vadd.f32 %v1435, %v1437
    %v1440 = vadd.f32 %v1436, %v1438
    %v1441 = vtanh.pop %v1439
    %v1442 = vtanh.pop %v1440
    %v1443 = vmul.f32 %v1426, %v1441
    %v1444 = vmul.f32 %v1432, %v1442
    %v1445 = vpack.c.bf16 %v1444, %v1443
    %v1447 = vunpack.c.l.b16 %v1445
    %v1448 = vunpack.c.h.b16 %v1445
    %v1449 = vpack.c.b16 %v1447, %v1447
    %v1450 = vpack.c.b16 %v1448, %v1448
    %s1453 = scalar_lea.vmem [#allocation3], 16
    %1454 = vst [vmem:[%s1453] sm:$0xf] %v1449
    %1455 = vst [vmem:[%s1453 + $0x4] sm:$0xf] %v1450
    %s1456 = scalar_lea.vmem [#allocation2], 96
    %v1457 = vld [vmem:[%s1456] sm:$0xff]
    %v1458 = vld [vmem:[%s1456 + $0x8] sm:$0xff]
    %v1459 = vld [vmem:[%s1456 + $0x10] sm:$0xff]
    %v1460 = vld [vmem:[%s1456 + $0x18] sm:$0xff]
    %v1461 = vunpack.c.l.bf16 %v1457
    %v1462 = vunpack.c.h.bf16 %v1457
    %v1463 = vunpack.c.l.bf16 %v1458
    %v1464 = vunpack.c.h.bf16 %v1458
    %v1465 = vunpack.c.l.bf16 %v1459
    %v1466 = vunpack.c.h.bf16 %v1459
    %v1467 = vunpack.c.l.bf16 %v1460
    %v1468 = vunpack.c.h.bf16 %v1460
    %1469 = vmatprep.subr.bf16.mxu0 %v937
    %1470 = vmatpush1.bf16.msra.mxu0 %v936
    %1471 = vmatprep.subr.bf16.mxu0 %v933
    %1472 = vmatpush1.bf16.msra.mxu0 %v932
    %1473 = vmatprep.subr.bf16.mxu0 %v929
    %1474 = vmatpush1.bf16.msra.mxu0 %v928
    %1475 = vmatprep.subr.bf16.mxu0 %v925
    %1476 = vmatpush1.bf16.msra.mxu0 %v924
    %1477 = vmatprep.subr.bf16.mxu0 %v921
    %1478 = vmatpush1.bf16.msra.mxu0 %v920
    %1479 = vmatprep.subr.bf16.mxu0 %v917
    %1480 = vmatpush1.bf16.msra.mxu0 %v916
    %1481 = vmatprep.subr.bf16.mxu0 %v913
    %1482 = vmatpush1.bf16.msra.mxu0 %v912
    %1483 = vmatprep.subr.bf16.mxu0 %v909
    %1484 = vmatpush1.bf16.msra.mxu0 %v908
    %1485 = vmatprep.subr.bf16.mxu0 0
    %1486 = vmatpush2.bf16.msra.mxu0 0
    %1487 = vmatprep.subr.bf16.mxu0 0
    %1488 = vmatpush2.bf16.msra.mxu0 0
    %1489 = vmatprep.subr.bf16.mxu0 0
    %1490 = vmatpush2.bf16.msra.mxu0 0
    %1491 = vmatprep.subr.bf16.mxu0 0
    %1492 = vmatpush2.bf16.msra.mxu0 0
    %1493 = vmatprep.subr.bf16.mxu0 0
    %1494 = vmatpush2.bf16.msra.mxu0 0
    %1495 = vmatprep.subr.bf16.mxu0 0
    %1496 = vmatpush2.bf16.msra.mxu0 0
    %1497 = vmatprep.subr.bf16.mxu0 0
    %1498 = vmatpush2.bf16.msra.mxu0 0
    %1499 = vmatprep.subr.bf16.mxu0 0
    %1500 = vmatpush2.bf16.msra.mxu0 0
    %1501 = vmatprep.mubr.bf16.mxu0 0
    %1502 = vmatmul.mubr.bf16.gmra.mxu0 %v1445
    %v1503 = vpop.f32.mrf.mxu0
    %v1504 = vadd.f32 0.0, %v1503
    %v1505 = vpop.f32.mrf.mxu0
    %v1506 = vadd.f32 0.0, %v1505
    %v1507 = vpop.f32.mrf.mxu0
    %v1508 = vadd.f32 0.0, %v1507
    %v1509 = vpop.f32.mrf.mxu0
    %v1510 = vadd.f32 0.0, %v1509
    %1511 = vdwg.mxu0
    %1512 = vmatprep.subr.bf16.mxu0 %v939
    %1513 = vmatpush1.bf16.msra.mxu0 %v938
    %1514 = vmatprep.subr.bf16.mxu0 %v935
    %1515 = vmatpush1.bf16.msra.mxu0 %v934
    %1516 = vmatprep.subr.bf16.mxu0 %v931
    %1517 = vmatpush1.bf16.msra.mxu0 %v930
    %1518 = vmatprep.subr.bf16.mxu0 %v927
    %1519 = vmatpush1.bf16.msra.mxu0 %v926
    %1520 = vmatprep.subr.bf16.mxu0 %v923
    %1521 = vmatpush1.bf16.msra.mxu0 %v922
    %1522 = vmatprep.subr.bf16.mxu0 %v919
    %1523 = vmatpush1.bf16.msra.mxu0 %v918
    %1524 = vmatprep.subr.bf16.mxu0 %v915
    %1525 = vmatpush1.bf16.msra.mxu0 %v914
    %1526 = vmatprep.subr.bf16.mxu0 %v911
    %1527 = vmatpush1.bf16.msra.mxu0 %v910
    %1528 = vmatprep.subr.bf16.mxu0 0
    %1529 = vmatpush2.bf16.msra.mxu0 0
    %1530 = vmatprep.subr.bf16.mxu0 0
    %1531 = vmatpush2.bf16.msra.mxu0 0
    %1532 = vmatprep.subr.bf16.mxu0 0
    %1533 = vmatpush2.bf16.msra.mxu0 0
    %1534 = vmatprep.subr.bf16.mxu0 0
    %1535 = vmatpush2.bf16.msra.mxu0 0
    %1536 = vmatprep.subr.bf16.mxu0 0
    %1537 = vmatpush2.bf16.msra.mxu0 0
    %1538 = vmatprep.subr.bf16.mxu0 0
    %1539 = vmatpush2.bf16.msra.mxu0 0
    %1540 = vmatprep.subr.bf16.mxu0 0
    %1541 = vmatpush2.bf16.msra.mxu0 0
    %1542 = vmatprep.subr.bf16.mxu0 0
    %1543 = vmatpush2.bf16.msra.mxu0 0
    %1544 = vmatprep.mubr.bf16.mxu0 0
    %1545 = vmatmul.mubr.bf16.gmra.mxu0 %v1445
    %v1546 = vpop.f32.mrf.mxu0
    %v1547 = vadd.f32 0.0, %v1546
    %v1548 = vpop.f32.mrf.mxu0
    %v1549 = vadd.f32 0.0, %v1548
    %v1550 = vpop.f32.mrf.mxu0
    %v1551 = vadd.f32 0.0, %v1550
    %v1552 = vpop.f32.mrf.mxu0
    %v1553 = vadd.f32 0.0, %v1552
    %1554 = vdwg.mxu0
    %v1555 = vadd.f32 %v1461, %v1504
    %v1556 = vadd.f32 %v1462, %v1506
    %v1557 = vadd.f32 %v1463, %v1547
    %v1558 = vadd.f32 %v1464, %v1549
    %v1559 = vadd.f32 %v1465, %v1508
    %v1560 = vadd.f32 %v1466, %v1510
    %v1561 = vadd.f32 %v1467, %v1551
    %v1562 = vadd.f32 %v1468, %v1553
    %v1563 = vxor.u32 %v1555, 2147483648
    %v1564 = vxor.u32 %v1556, 2147483648
    %v1565 = vxor.u32 %v1557, 2147483648
    %v1566 = vxor.u32 %v1559, 2147483648
    %v1567 = vxor.u32 %v1560, 2147483648
    %v1568 = vxor.u32 %v1561, 2147483648
    %v1569 = vmul.f32 %v1563, 1.442695
    %v1570 = vpow.pop %v1569
    %v1571 = vmul.f32 %v1564, 1.442695
    %v1572 = vpow.pop %v1571
    %v1573 = vmul.f32 %v1565, 1.442695
    %v1574 = vpow.pop %v1573
    %v1575 = vmul.f32 %v1566, 1.442695
    %v1576 = vpow.pop %v1575
    %v1577 = vmul.f32 %v1567, 1.442695
    %v1578 = vpow.pop %v1577
    %v1579 = vmul.f32 %v1568, 1.442695
    %v1580 = vpow.pop %v1579
    %v1581 = vadd.f32 %v1570, 1.0
    %v1582 = vadd.f32 %v1572, 1.0
    %v1583 = vadd.f32 %v1574, 1.0
    %v1584 = vadd.f32 %v1576, 1.0
    %v1585 = vadd.f32 %v1578, 1.0
    %v1586 = vadd.f32 %v1580, 1.0
    %v1587 = vrcp.pop %v1581
    %v1588 = vmul.f32 1.0, %v1587
    %v1589 = vrcp.pop %v1582
    %v1590 = vmul.f32 1.0, %v1589
    %v1591 = vrcp.pop %v1583
    %v1592 = vmul.f32 1.0, %v1591
    %v1593 = vrcp.pop %v1584
    %v1594 = vmul.f32 1.0, %v1593
    %v1595 = vrcp.pop %v1585
    %v1596 = vmul.f32 1.0, %v1595
    %v1597 = vrcp.pop %v1586
    %v1598 = vmul.f32 1.0, %v1597
    %v1599 = vtanh.pop %v1558
    %v1600 = vtanh.pop %v1562
    %v1601 = vmul.f32 %v1590, %v1439
    %v1602 = vmul.f32 %v1596, %v1440
    %v1603 = vmul.f32 %v1588, %v1599
    %v1604 = vmul.f32 %v1594, %v1600
    %v1605 = vadd.f32 %v1601, %v1603
    %v1606 = vadd.f32 %v1602, %v1604
    %v1607 = vtanh.pop %v1605
    %v1608 = vtanh.pop %v1606
    %v1609 = vmul.f32 %v1592, %v1607
    %v1610 = vmul.f32 %v1598, %v1608
    %v1611 = vpack.c.bf16 %v1610, %v1609
    %v1613 = vunpack.c.l.b16 %v1611
    %v1614 = vunpack.c.h.b16 %v1611
    %v1615 = vpack.c.b16 %v1613, %v1613
    %v1616 = vpack.c.b16 %v1614, %v1614
    %s1619 = scalar_lea.vmem [#allocation3], 24
    %1620 = vst [vmem:[%s1619] sm:$0xf] %v1615
    %1621 = vst [vmem:[%s1619 + $0x4] sm:$0xf] %v1616
    %s1622 = scalar_lea.vmem [#allocation2], 128
    %v1623 = vld [vmem:[%s1622] sm:$0xff]
    %v1624 = vld [vmem:[%s1622 + $0x8] sm:$0xff]
    %v1625 = vld [vmem:[%s1622 + $0x10] sm:$0xff]
    %v1626 = vld [vmem:[%s1622 + $0x18] sm:$0xff]
    %v1627 = vunpack.c.l.bf16 %v1623
    %v1628 = vunpack.c.h.bf16 %v1623
    %v1629 = vunpack.c.l.bf16 %v1624
    %v1630 = vunpack.c.h.bf16 %v1624
    %v1631 = vunpack.c.l.bf16 %v1625
    %v1632 = vunpack.c.h.bf16 %v1625
    %v1633 = vunpack.c.l.bf16 %v1626
    %v1634 = vunpack.c.h.bf16 %v1626
    %1635 = vmatprep.subr.bf16.mxu0 %v937
    %1636 = vmatpush1.bf16.msra.mxu0 %v936
    %1637 = vmatprep.subr.bf16.mxu0 %v933
    %1638 = vmatpush1.bf16.msra.mxu0 %v932
    %1639 = vmatprep.subr.bf16.mxu0 %v929
    %1640 = vmatpush1.bf16.msra.mxu0 %v928
    %1641 = vmatprep.subr.bf16.mxu0 %v925
    %1642 = vmatpush1.bf16.msra.mxu0 %v924
    %1643 = vmatprep.subr.bf16.mxu0 %v921
    %1644 = vmatpush1.bf16.msra.mxu0 %v920
    %1645 = vmatprep.subr.bf16.mxu0 %v917
    %1646 = vmatpush1.bf16.msra.mxu0 %v916
    %1647 = vmatprep.subr.bf16.mxu0 %v913
    %1648 = vmatpush1.bf16.msra.mxu0 %v912
    %1649 = vmatprep.subr.bf16.mxu0 %v909
    %1650 = vmatpush1.bf16.msra.mxu0 %v908
    %1651 = vmatprep.subr.bf16.mxu0 0
    %1652 = vmatpush2.bf16.msra.mxu0 0
    %1653 = vmatprep.subr.bf16.mxu0 0
    %1654 = vmatpush2.bf16.msra.mxu0 0
    %1655 = vmatprep.subr.bf16.mxu0 0
    %1656 = vmatpush2.bf16.msra.mxu0 0
    %1657 = vmatprep.subr.bf16.mxu0 0
    %1658 = vmatpush2.bf16.msra.mxu0 0
    %1659 = vmatprep.subr.bf16.mxu0 0
    %1660 = vmatpush2.bf16.msra.mxu0 0
    %1661 = vmatprep.subr.bf16.mxu0 0
    %1662 = vmatpush2.bf16.msra.mxu0 0
    %1663 = vmatprep.subr.bf16.mxu0 0
    %1664 = vmatpush2.bf16.msra.mxu0 0
    %1665 = vmatprep.subr.bf16.mxu0 0
    %1666 = vmatpush2.bf16.msra.mxu0 0
    %1667 = vmatprep.mubr.bf16.mxu0 0
    %1668 = vmatmul.mubr.bf16.gmra.mxu0 %v1611
    %v1669 = vpop.f32.mrf.mxu0
    %v1670 = vadd.f32 0.0, %v1669
    %v1671 = vpop.f32.mrf.mxu0
    %v1672 = vadd.f32 0.0, %v1671
    %v1673 = vpop.f32.mrf.mxu0
    %v1674 = vadd.f32 0.0, %v1673
    %v1675 = vpop.f32.mrf.mxu0
    %v1676 = vadd.f32 0.0, %v1675
    %1677 = vdwg.mxu0
    %1678 = vmatprep.subr.bf16.mxu0 %v939
    %1679 = vmatpush1.bf16.msra.mxu0 %v938
    %1680 = vmatprep.subr.bf16.mxu0 %v935
    %1681 = vmatpush1.bf16.msra.mxu0 %v934
    %1682 = vmatprep.subr.bf16.mxu0 %v931
    %1683 = vmatpush1.bf16.msra.mxu0 %v930
    %1684 = vmatprep.subr.bf16.mxu0 %v927
    %1685 = vmatpush1.bf16.msra.mxu0 %v926
    %1686 = vmatprep.subr.bf16.mxu0 %v923
    %1687 = vmatpush1.bf16.msra.mxu0 %v922
    %1688 = vmatprep.subr.bf16.mxu0 %v919
    %1689 = vmatpush1.bf16.msra.mxu0 %v918
    %1690 = vmatprep.subr.bf16.mxu0 %v915
    %1691 = vmatpush1.bf16.msra.mxu0 %v914
    %1692 = vmatprep.subr.bf16.mxu0 %v911
    %1693 = vmatpush1.bf16.msra.mxu0 %v910
    %1694 = vmatprep.subr.bf16.mxu0 0
    %1695 = vmatpush2.bf16.msra.mxu0 0
    %1696 = vmatprep.subr.bf16.mxu0 0
    %1697 = vmatpush2.bf16.msra.mxu0 0
    %1698 = vmatprep.subr.bf16.mxu0 0
    %1699 = vmatpush2.bf16.msra.mxu0 0
    %1700 = vmatprep.subr.bf16.mxu0 0
    %1701 = vmatpush2.bf16.msra.mxu0 0
    %1702 = vmatprep.subr.bf16.mxu0 0
    %1703 = vmatpush2.bf16.msra.mxu0 0
    %1704 = vmatprep.subr.bf16.mxu0 0
    %1705 = vmatpush2.bf16.msra.mxu0 0
    %1706 = vmatprep.subr.bf16.mxu0 0
    %1707 = vmatpush2.bf16.msra.mxu0 0
    %1708 = vmatprep.subr.bf16.mxu0 0
    %1709 = vmatpush2.bf16.msra.mxu0 0
    %1710 = vmatprep.mubr.bf16.mxu0 0
    %1711 = vmatmul.mubr.bf16.gmra.mxu0 %v1611
    %v1712 = vpop.f32.mrf.mxu0
    %v1713 = vadd.f32 0.0, %v1712
    %v1714 = vpop.f32.mrf.mxu0
    %v1715 = vadd.f32 0.0, %v1714
    %v1716 = vpop.f32.mrf.mxu0
    %v1717 = vadd.f32 0.0, %v1716
    %v1718 = vpop.f32.mrf.mxu0
    %v1719 = vadd.f32 0.0, %v1718
    %1720 = vdwg.mxu0
    %v1721 = vadd.f32 %v1627, %v1670
    %v1722 = vadd.f32 %v1628, %v1672
    %v1723 = vadd.f32 %v1629, %v1713
    %v1724 = vadd.f32 %v1630, %v1715
    %v1725 = vadd.f32 %v1631, %v1674
    %v1726 = vadd.f32 %v1632, %v1676
    %v1727 = vadd.f32 %v1633, %v1717
    %v1728 = vadd.f32 %v1634, %v1719
    %v1729 = vxor.u32 %v1721, 2147483648
    %v1730 = vxor.u32 %v1722, 2147483648
    %v1731 = vxor.u32 %v1723, 2147483648
    %v1732 = vxor.u32 %v1725, 2147483648
    %v1733 = vxor.u32 %v1726, 2147483648
    %v1734 = vxor.u32 %v1727, 2147483648
    %v1735 = vmul.f32 %v1729, 1.442695
    %v1736 = vpow.pop %v1735
    %v1737 = vmul.f32 %v1730, 1.442695
    %v1738 = vpow.pop %v1737
    %v1739 = vmul.f32 %v1731, 1.442695
    %v1740 = vpow.pop %v1739
    %v1741 = vmul.f32 %v1732, 1.442695
    %v1742 = vpow.pop %v1741
    %v1743 = vmul.f32 %v1733, 1.442695
    %v1744 = vpow.pop %v1743
    %v1745 = vmul.f32 %v1734, 1.442695
    %v1746 = vpow.pop %v1745
    %v1747 = vadd.f32 %v1736, 1.0
    %v1748 = vadd.f32 %v1738, 1.0
    %v1749 = vadd.f32 %v1740, 1.0
    %v1750 = vadd.f32 %v1742, 1.0
    %v1751 = vadd.f32 %v1744, 1.0
    %v1752 = vadd.f32 %v1746, 1.0
    %v1753 = vrcp.pop %v1747
    %v1754 = vmul.f32 1.0, %v1753
    %v1755 = vrcp.pop %v1748
    %v1756 = vmul.f32 1.0, %v1755
    %v1757 = vrcp.pop %v1749
    %v1758 = vmul.f32 1.0, %v1757
    %v1759 = vrcp.pop %v1750
    %v1760 = vmul.f32 1.0, %v1759
    %v1761 = vrcp.pop %v1751
    %v1762 = vmul.f32 1.0, %v1761
    %v1763 = vrcp.pop %v1752
    %v1764 = vmul.f32 1.0, %v1763
    %v1765 = vtanh.pop %v1724
    %v1766 = vtanh.pop %v1728
    %v1767 = vmul.f32 %v1756, %v1605
    %v1768 = vmul.f32 %v1762, %v1606
    %v1769 = vmul.f32 %v1754, %v1765
    %v1770 = vmul.f32 %v1760, %v1766
    %v1771 = vadd.f32 %v1767, %v1769
    %v1772 = vadd.f32 %v1768, %v1770
    %v1773 = vtanh.pop %v1771
    %v1774 = vtanh.pop %v1772
    %v1775 = vmul.f32 %v1758, %v1773
    %v1776 = vmul.f32 %v1764, %v1774
    %v1777 = vpack.c.bf16 %v1776, %v1775
    %v1779 = vunpack.c.l.b16 %v1777
    %v1780 = vunpack.c.h.b16 %v1777
    %v1781 = vpack.c.b16 %v1779, %v1779
    %v1782 = vpack.c.b16 %v1780, %v1780
    %s1785 = scalar_lea.vmem [#allocation3], 32
    %1786 = vst [vmem:[%s1785] sm:$0xf] %v1781
    %1787 = vst [vmem:[%s1785 + $0x4] sm:$0xf] %v1782
    %s1788 = scalar_lea.vmem [#allocation2], 160
    %v1789 = vld [vmem:[%s1788] sm:$0xff]
    %v1790 = vld [vmem:[%s1788 + $0x8] sm:$0xff]
    %v1791 = vld [vmem:[%s1788 + $0x10] sm:$0xff]
    %v1792 = vld [vmem:[%s1788 + $0x18] sm:$0xff]
    %v1793 = vunpack.c.l.bf16 %v1789
    %v1794 = vunpack.c.h.bf16 %v1789
    %v1795 = vunpack.c.l.bf16 %v1790
    %v1796 = vunpack.c.h.bf16 %v1790
    %v1797 = vunpack.c.l.bf16 %v1791
    %v1798 = vunpack.c.h.bf16 %v1791
    %v1799 = vunpack.c.l.bf16 %v1792
    %v1800 = vunpack.c.h.bf16 %v1792
    %1801 = vmatprep.subr.bf16.mxu0 %v937
    %1802 = vmatpush1.bf16.msra.mxu0 %v936
    %1803 = vmatprep.subr.bf16.mxu0 %v933
    %1804 = vmatpush1.bf16.msra.mxu0 %v932
    %1805 = vmatprep.subr.bf16.mxu0 %v929
    %1806 = vmatpush1.bf16.msra.mxu0 %v928
    %1807 = vmatprep.subr.bf16.mxu0 %v925
    %1808 = vmatpush1.bf16.msra.mxu0 %v924
    %1809 = vmatprep.subr.bf16.mxu0 %v921
    %1810 = vmatpush1.bf16.msra.mxu0 %v920
    %1811 = vmatprep.subr.bf16.mxu0 %v917
    %1812 = vmatpush1.bf16.msra.mxu0 %v916
    %1813 = vmatprep.subr.bf16.mxu0 %v913
    %1814 = vmatpush1.bf16.msra.mxu0 %v912
    %1815 = vmatprep.subr.bf16.mxu0 %v909
    %1816 = vmatpush1.bf16.msra.mxu0 %v908
    %1817 = vmatprep.subr.bf16.mxu0 0
    %1818 = vmatpush2.bf16.msra.mxu0 0
    %1819 = vmatprep.subr.bf16.mxu0 0
    %1820 = vmatpush2.bf16.msra.mxu0 0
    %1821 = vmatprep.subr.bf16.mxu0 0
    %1822 = vmatpush2.bf16.msra.mxu0 0
    %1823 = vmatprep.subr.bf16.mxu0 0
    %1824 = vmatpush2.bf16.msra.mxu0 0
    %1825 = vmatprep.subr.bf16.mxu0 0
    %1826 = vmatpush2.bf16.msra.mxu0 0
    %1827 = vmatprep.subr.bf16.mxu0 0
    %1828 = vmatpush2.bf16.msra.mxu0 0
    %1829 = vmatprep.subr.bf16.mxu0 0
    %1830 = vmatpush2.bf16.msra.mxu0 0
    %1831 = vmatprep.subr.bf16.mxu0 0
    %1832 = vmatpush2.bf16.msra.mxu0 0
    %1833 = vmatprep.mubr.bf16.mxu0 0
    %1834 = vmatmul.mubr.bf16.gmra.mxu0 %v1777
    %v1835 = vpop.f32.mrf.mxu0
    %v1836 = vadd.f32 0.0, %v1835
    %v1837 = vpop.f32.mrf.mxu0
    %v1838 = vadd.f32 0.0, %v1837
    %v1839 = vpop.f32.mrf.mxu0
    %v1840 = vadd.f32 0.0, %v1839
    %v1841 = vpop.f32.mrf.mxu0
    %v1842 = vadd.f32 0.0, %v1841
    %1843 = vdwg.mxu0
    %1844 = vmatprep.subr.bf16.mxu0 %v939
    %1845 = vmatpush1.bf16.msra.mxu0 %v938
    %1846 = vmatprep.subr.bf16.mxu0 %v935
    %1847 = vmatpush1.bf16.msra.mxu0 %v934
    %1848 = vmatprep.subr.bf16.mxu0 %v931
    %1849 = vmatpush1.bf16.msra.mxu0 %v930
    %1850 = vmatprep.subr.bf16.mxu0 %v927
    %1851 = vmatpush1.bf16.msra.mxu0 %v926
    %1852 = vmatprep.subr.bf16.mxu0 %v923
    %1853 = vmatpush1.bf16.msra.mxu0 %v922
    %1854 = vmatprep.subr.bf16.mxu0 %v919
    %1855 = vmatpush1.bf16.msra.mxu0 %v918
    %1856 = vmatprep.subr.bf16.mxu0 %v915
    %1857 = vmatpush1.bf16.msra.mxu0 %v914
    %1858 = vmatprep.subr.bf16.mxu0 %v911
    %1859 = vmatpush1.bf16.msra.mxu0 %v910
    %1860 = vmatprep.subr.bf16.mxu0 0
    %1861 = vmatpush2.bf16.msra.mxu0 0
    %1862 = vmatprep.subr.bf16.mxu0 0
    %1863 = vmatpush2.bf16.msra.mxu0 0
    %1864 = vmatprep.subr.bf16.mxu0 0
    %1865 = vmatpush2.bf16.msra.mxu0 0
    %1866 = vmatprep.subr.bf16.mxu0 0
    %1867 = vmatpush2.bf16.msra.mxu0 0
    %1868 = vmatprep.subr.bf16.mxu0 0
    %1869 = vmatpush2.bf16.msra.mxu0 0
    %1870 = vmatprep.subr.bf16.mxu0 0
    %1871 = vmatpush2.bf16.msra.mxu0 0
    %1872 = vmatprep.subr.bf16.mxu0 0
    %1873 = vmatpush2.bf16.msra.mxu0 0
    %1874 = vmatprep.subr.bf16.mxu0 0
    %1875 = vmatpush2.bf16.msra.mxu0 0
    %1876 = vmatprep.mubr.bf16.mxu0 0
    %1877 = vmatmul.mubr.bf16.gmra.mxu0 %v1777
    %v1878 = vpop.f32.mrf.mxu0
    %v1879 = vadd.f32 0.0, %v1878
    %v1880 = vpop.f32.mrf.mxu0
    %v1881 = vadd.f32 0.0, %v1880
    %v1882 = vpop.f32.mrf.mxu0
    %v1883 = vadd.f32 0.0, %v1882
    %v1884 = vpop.f32.mrf.mxu0
    %v1885 = vadd.f32 0.0, %v1884
    %1886 = vdwg.mxu0
    %v1887 = vadd.f32 %v1793, %v1836
    %v1888 = vadd.f32 %v1794, %v1838
    %v1889 = vadd.f32 %v1795, %v1879
    %v1890 = vadd.f32 %v1796, %v1881
    %v1891 = vadd.f32 %v1797, %v1840
    %v1892 = vadd.f32 %v1798, %v1842
    %v1893 = vadd.f32 %v1799, %v1883
    %v1894 = vadd.f32 %v1800, %v1885
    %v1895 = vxor.u32 %v1887, 2147483648
    %v1896 = vxor.u32 %v1888, 2147483648
    %v1897 = vxor.u32 %v1889, 2147483648
    %v1898 = vxor.u32 %v1891, 2147483648
    %v1899 = vxor.u32 %v1892, 2147483648
    %v1900 = vxor.u32 %v1893, 2147483648
    %v1901 = vmul.f32 %v1895, 1.442695
    %v1902 = vpow.pop %v1901
    %v1903 = vmul.f32 %v1896, 1.442695
    %v1904 = vpow.pop %v1903
    %v1905 = vmul.f32 %v1897, 1.442695
    %v1906 = vpow.pop %v1905
    %v1907 = vmul.f32 %v1898, 1.442695
    %v1908 = vpow.pop %v1907
    %v1909 = vmul.f32 %v1899, 1.442695
    %v1910 = vpow.pop %v1909
    %v1911 = vmul.f32 %v1900, 1.442695
    %v1912 = vpow.pop %v1911
    %v1913 = vadd.f32 %v1902, 1.0
    %v1914 = vadd.f32 %v1904, 1.0
    %v1915 = vadd.f32 %v1906, 1.0
    %v1916 = vadd.f32 %v1908, 1.0
    %v1917 = vadd.f32 %v1910, 1.0
    %v1918 = vadd.f32 %v1912, 1.0
    %v1919 = vrcp.pop %v1913
    %v1920 = vmul.f32 1.0, %v1919
    %v1921 = vrcp.pop %v1914
    %v1922 = vmul.f32 1.0, %v1921
    %v1923 = vrcp.pop %v1915
    %v1924 = vmul.f32 1.0, %v1923
    %v1925 = vrcp.pop %v1916
    %v1926 = vmul.f32 1.0, %v1925
    %v1927 = vrcp.pop %v1917
    %v1928 = vmul.f32 1.0, %v1927
    %v1929 = vrcp.pop %v1918
    %v1930 = vmul.f32 1.0, %v1929
    %v1931 = vtanh.pop %v1890
    %v1932 = vtanh.pop %v1894
    %v1933 = vmul.f32 %v1922, %v1771
    %v1934 = vmul.f32 %v1928, %v1772
    %v1935 = vmul.f32 %v1920, %v1931
    %v1936 = vmul.f32 %v1926, %v1932
    %v1937 = vadd.f32 %v1933, %v1935
    %v1938 = vadd.f32 %v1934, %v1936
    %v1939 = vtanh.pop %v1937
    %v1940 = vtanh.pop %v1938
    %v1941 = vmul.f32 %v1924, %v1939
    %v1942 = vmul.f32 %v1930, %v1940
    %v1943 = vpack.c.bf16 %v1942, %v1941
    %v1945 = vunpack.c.l.b16 %v1943
    %v1946 = vunpack.c.h.b16 %v1943
    %v1947 = vpack.c.b16 %v1945, %v1945
    %v1948 = vpack.c.b16 %v1946, %v1946
    %s1951 = scalar_lea.vmem [#allocation3], 40
    %1952 = vst [vmem:[%s1951] sm:$0xf] %v1947
    %1953 = vst [vmem:[%s1951 + $0x4] sm:$0xf] %v1948
    %s1954 = scalar_lea.vmem [#allocation2], 192
    %v1955 = vld [vmem:[%s1954] sm:$0xff]
    %v1956 = vld [vmem:[%s1954 + $0x8] sm:$0xff]
    %v1957 = vld [vmem:[%s1954 + $0x10] sm:$0xff]
    %v1958 = vld [vmem:[%s1954 + $0x18] sm:$0xff]
    %v1959 = vunpack.c.l.bf16 %v1955
    %v1960 = vunpack.c.h.bf16 %v1955
    %v1961 = vunpack.c.l.bf16 %v1956
    %v1962 = vunpack.c.h.bf16 %v1956
    %v1963 = vunpack.c.l.bf16 %v1957
    %v1964 = vunpack.c.h.bf16 %v1957
    %v1965 = vunpack.c.l.bf16 %v1958
    %v1966 = vunpack.c.h.bf16 %v1958
    %1967 = vmatprep.subr.bf16.mxu0 %v937
    %1968 = vmatpush1.bf16.msra.mxu0 %v936
    %1969 = vmatprep.subr.bf16.mxu0 %v933
    %1970 = vmatpush1.bf16.msra.mxu0 %v932
    %1971 = vmatprep.subr.bf16.mxu0 %v929
    %1972 = vmatpush1.bf16.msra.mxu0 %v928
    %1973 = vmatprep.subr.bf16.mxu0 %v925
    %1974 = vmatpush1.bf16.msra.mxu0 %v924
    %1975 = vmatprep.subr.bf16.mxu0 %v921
    %1976 = vmatpush1.bf16.msra.mxu0 %v920
    %1977 = vmatprep.subr.bf16.mxu0 %v917
    %1978 = vmatpush1.bf16.msra.mxu0 %v916
    %1979 = vmatprep.subr.bf16.mxu0 %v913
    %1980 = vmatpush1.bf16.msra.mxu0 %v912
    %1981 = vmatprep.subr.bf16.mxu0 %v909
    %1982 = vmatpush1.bf16.msra.mxu0 %v908
    %1983 = vmatprep.subr.bf16.mxu0 0
    %1984 = vmatpush2.bf16.msra.mxu0 0
    %1985 = vmatprep.subr.bf16.mxu0 0
    %1986 = vmatpush2.bf16.msra.mxu0 0
    %1987 = vmatprep.subr.bf16.mxu0 0
    %1988 = vmatpush2.bf16.msra.mxu0 0
    %1989 = vmatprep.subr.bf16.mxu0 0
    %1990 = vmatpush2.bf16.msra.mxu0 0
    %1991 = vmatprep.subr.bf16.mxu0 0
    %1992 = vmatpush2.bf16.msra.mxu0 0
    %1993 = vmatprep.subr.bf16.mxu0 0
    %1994 = vmatpush2.bf16.msra.mxu0 0
    %1995 = vmatprep.subr.bf16.mxu0 0
    %1996 = vmatpush2.bf16.msra.mxu0 0
    %1997 = vmatprep.subr.bf16.mxu0 0
    %1998 = vmatpush2.bf16.msra.mxu0 0
    %1999 = vmatprep.mubr.bf16.mxu0 0
    %2000 = vmatmul.mubr.bf16.gmra.mxu0 %v1943
    %v2001 = vpop.f32.mrf.mxu0
    %v2002 = vadd.f32 0.0, %v2001
    %v2003 = vpop.f32.mrf.mxu0
    %v2004 = vadd.f32 0.0, %v2003
    %v2005 = vpop.f32.mrf.mxu0
    %v2006 = vadd.f32 0.0, %v2005
    %v2007 = vpop.f32.mrf.mxu0
    %v2008 = vadd.f32 0.0, %v2007
    %2009 = vdwg.mxu0
    %2010 = vmatprep.subr.bf16.mxu0 %v939
    %2011 = vmatpush1.bf16.msra.mxu0 %v938
    %2012 = vmatprep.subr.bf16.mxu0 %v935
    %2013 = vmatpush1.bf16.msra.mxu0 %v934
    %2014 = vmatprep.subr.bf16.mxu0 %v931
    %2015 = vmatpush1.bf16.msra.mxu0 %v930
    %2016 = vmatprep.subr.bf16.mxu0 %v927
    %2017 = vmatpush1.bf16.msra.mxu0 %v926
    %2018 = vmatprep.subr.bf16.mxu0 %v923
    %2019 = vmatpush1.bf16.msra.mxu0 %v922
    %2020 = vmatprep.subr.bf16.mxu0 %v919
    %2021 = vmatpush1.bf16.msra.mxu0 %v918
    %2022 = vmatprep.subr.bf16.mxu0 %v915
    %2023 = vmatpush1.bf16.msra.mxu0 %v914
    %2024 = vmatprep.subr.bf16.mxu0 %v911
    %2025 = vmatpush1.bf16.msra.mxu0 %v910
    %2026 = vmatprep.subr.bf16.mxu0 0
    %2027 = vmatpush2.bf16.msra.mxu0 0
    %2028 = vmatprep.subr.bf16.mxu0 0
    %2029 = vmatpush2.bf16.msra.mxu0 0
    %2030 = vmatprep.subr.bf16.mxu0 0
    %2031 = vmatpush2.bf16.msra.mxu0 0
    %2032 = vmatprep.subr.bf16.mxu0 0
    %2033 = vmatpush2.bf16.msra.mxu0 0
    %2034 = vmatprep.subr.bf16.mxu0 0
    %2035 = vmatpush2.bf16.msra.mxu0 0
    %2036 = vmatprep.subr.bf16.mxu0 0
    %2037 = vmatpush2.bf16.msra.mxu0 0
    %2038 = vmatprep.subr.bf16.mxu0 0
    %2039 = vmatpush2.bf16.msra.mxu0 0
    %2040 = vmatprep.subr.bf16.mxu0 0
    %2041 = vmatpush2.bf16.msra.mxu0 0
    %2042 = vmatprep.mubr.bf16.mxu0 0
    %2043 = vmatmul.mubr.bf16.gmra.mxu0 %v1943
    %v2044 = vpop.f32.mrf.mxu0
    %v2045 = vadd.f32 0.0, %v2044
    %v2046 = vpop.f32.mrf.mxu0
    %v2047 = vadd.f32 0.0, %v2046
    %v2048 = vpop.f32.mrf.mxu0
    %v2049 = vadd.f32 0.0, %v2048
    %v2050 = vpop.f32.mrf.mxu0
    %v2051 = vadd.f32 0.0, %v2050
    %2052 = vdwg.mxu0
    %v2053 = vadd.f32 %v1959, %v2002
    %v2054 = vadd.f32 %v1960, %v2004
    %v2055 = vadd.f32 %v1961, %v2045
    %v2056 = vadd.f32 %v1962, %v2047
    %v2057 = vadd.f32 %v1963, %v2006
    %v2058 = vadd.f32 %v1964, %v2008
    %v2059 = vadd.f32 %v1965, %v2049
    %v2060 = vadd.f32 %v1966, %v2051
    %v2061 = vxor.u32 %v2053, 2147483648
    %v2062 = vxor.u32 %v2054, 2147483648
    %v2063 = vxor.u32 %v2055, 2147483648
    %v2064 = vxor.u32 %v2057, 2147483648
    %v2065 = vxor.u32 %v2058, 2147483648
    %v2066 = vxor.u32 %v2059, 2147483648
    %v2067 = vmul.f32 %v2061, 1.442695
    %v2068 = vpow.pop %v2067
    %v2069 = vmul.f32 %v2062, 1.442695
    %v2070 = vpow.pop %v2069
    %v2071 = vmul.f32 %v2063, 1.442695
    %v2072 = vpow.pop %v2071
    %v2073 = vmul.f32 %v2064, 1.442695
    %v2074 = vpow.pop %v2073
    %v2075 = vmul.f32 %v2065, 1.442695
    %v2076 = vpow.pop %v2075
    %v2077 = vmul.f32 %v2066, 1.442695
    %v2078 = vpow.pop %v2077
    %v2079 = vadd.f32 %v2068, 1.0
    %v2080 = vadd.f32 %v2070, 1.0
    %v2081 = vadd.f32 %v2072, 1.0
    %v2082 = vadd.f32 %v2074, 1.0
    %v2083 = vadd.f32 %v2076, 1.0
    %v2084 = vadd.f32 %v2078, 1.0
    %v2085 = vrcp.pop %v2079
    %v2086 = vmul.f32 1.0, %v2085
    %v2087 = vrcp.pop %v2080
    %v2088 = vmul.f32 1.0, %v2087
    %v2089 = vrcp.pop %v2081
    %v2090 = vmul.f32 1.0, %v2089
    %v2091 = vrcp.pop %v2082
    %v2092 = vmul.f32 1.0, %v2091
    %v2093 = vrcp.pop %v2083
    %v2094 = vmul.f32 1.0, %v2093
    %v2095 = vrcp.pop %v2084
    %v2096 = vmul.f32 1.0, %v2095
    %v2097 = vtanh.pop %v2056
    %v2098 = vtanh.pop %v2060
    %v2099 = vmul.f32 %v2088, %v1937
    %v2100 = vmul.f32 %v2094, %v1938
    %v2101 = vmul.f32 %v2086, %v2097
    %v2102 = vmul.f32 %v2092, %v2098
    %v2103 = vadd.f32 %v2099, %v2101
    %v2104 = vadd.f32 %v2100, %v2102
    %v2105 = vtanh.pop %v2103
    %v2106 = vtanh.pop %v2104
    %v2107 = vmul.f32 %v2090, %v2105
    %v2108 = vmul.f32 %v2096, %v2106
    %v2109 = vpack.c.bf16 %v2108, %v2107
    %v2111 = vunpack.c.l.b16 %v2109
    %v2112 = vunpack.c.h.b16 %v2109
    %v2113 = vpack.c.b16 %v2111, %v2111
    %v2114 = vpack.c.b16 %v2112, %v2112
    %s2117 = scalar_lea.vmem [#allocation3], 48
    %2118 = vst [vmem:[%s2117] sm:$0xf] %v2113
    %2119 = vst [vmem:[%s2117 + $0x4] sm:$0xf] %v2114
    %s2120 = scalar_lea.vmem [#allocation2], 224
    %v2121 = vld [vmem:[%s2120] sm:$0xff]
    %v2122 = vld [vmem:[%s2120 + $0x8] sm:$0xff]
    %v2123 = vld [vmem:[%s2120 + $0x10] sm:$0xff]
    %v2124 = vld [vmem:[%s2120 + $0x18] sm:$0xff]
    %v2125 = vunpack.c.l.bf16 %v2121
    %v2126 = vunpack.c.h.bf16 %v2121
    %v2127 = vunpack.c.l.bf16 %v2122
    %v2128 = vunpack.c.h.bf16 %v2122
    %v2129 = vunpack.c.l.bf16 %v2123
    %v2130 = vunpack.c.h.bf16 %v2123
    %v2131 = vunpack.c.l.bf16 %v2124
    %v2132 = vunpack.c.h.bf16 %v2124
    %2133 = vmatprep.subr.bf16.mxu0 %v937
    %2134 = vmatpush1.bf16.msra.mxu0 %v936
    %2135 = vmatprep.subr.bf16.mxu0 %v933
    %2136 = vmatpush1.bf16.msra.mxu0 %v932
    %2137 = vmatprep.subr.bf16.mxu0 %v929
    %2138 = vmatpush1.bf16.msra.mxu0 %v928
    %2139 = vmatprep.subr.bf16.mxu0 %v925
    %2140 = vmatpush1.bf16.msra.mxu0 %v924
    %2141 = vmatprep.subr.bf16.mxu0 %v921
    %2142 = vmatpush1.bf16.msra.mxu0 %v920
    %2143 = vmatprep.subr.bf16.mxu0 %v917
    %2144 = vmatpush1.bf16.msra.mxu0 %v916
    %2145 = vmatprep.subr.bf16.mxu0 %v913
    %2146 = vmatpush1.bf16.msra.mxu0 %v912
    %2147 = vmatprep.subr.bf16.mxu0 %v909
    %2148 = vmatpush1.bf16.msra.mxu0 %v908
    %2149 = vmatprep.subr.bf16.mxu0 0
    %2150 = vmatpush2.bf16.msra.mxu0 0
    %2151 = vmatprep.subr.bf16.mxu0 0
    %2152 = vmatpush2.bf16.msra.mxu0 0
    %2153 = vmatprep.subr.bf16.mxu0 0
    %2154 = vmatpush2.bf16.msra.mxu0 0
    %2155 = vmatprep.subr.bf16.mxu0 0
    %2156 = vmatpush2.bf16.msra.mxu0 0
    %2157 = vmatprep.subr.bf16.mxu0 0
    %2158 = vmatpush2.bf16.msra.mxu0 0
    %2159 = vmatprep.subr.bf16.mxu0 0
    %2160 = vmatpush2.bf16.msra.mxu0 0
    %2161 = vmatprep.subr.bf16.mxu0 0
    %2162 = vmatpush2.bf16.msra.mxu0 0
    %2163 = vmatprep.subr.bf16.mxu0 0
    %2164 = vmatpush2.bf16.msra.mxu0 0
    %2165 = vmatprep.mubr.bf16.mxu0 0
    %2166 = vmatmul.mubr.bf16.gmra.mxu0 %v2109
    %v2167 = vpop.f32.mrf.mxu0
    %v2168 = vadd.f32 0.0, %v2167
    %v2169 = vpop.f32.mrf.mxu0
    %v2170 = vadd.f32 0.0, %v2169
    %v2171 = vpop.f32.mrf.mxu0
    %v2172 = vadd.f32 0.0, %v2171
    %v2173 = vpop.f32.mrf.mxu0
    %v2174 = vadd.f32 0.0, %v2173
    %2175 = vdwg.mxu0
    %2176 = vmatprep.subr.bf16.mxu0 %v939
    %2177 = vmatpush1.bf16.msra.mxu0 %v938
    %2178 = vmatprep.subr.bf16.mxu0 %v935
    %2179 = vmatpush1.bf16.msra.mxu0 %v934
    %2180 = vmatprep.subr.bf16.mxu0 %v931
    %2181 = vmatpush1.bf16.msra.mxu0 %v930
    %2182 = vmatprep.subr.bf16.mxu0 %v927
    %2183 = vmatpush1.bf16.msra.mxu0 %v926
    %2184 = vmatprep.subr.bf16.mxu0 %v923
    %2185 = vmatpush1.bf16.msra.mxu0 %v922
    %2186 = vmatprep.subr.bf16.mxu0 %v919
    %2187 = vmatpush1.bf16.msra.mxu0 %v918
    %2188 = vmatprep.subr.bf16.mxu0 %v915
    %2189 = vmatpush1.bf16.msra.mxu0 %v914
    %2190 = vmatprep.subr.bf16.mxu0 %v911
    %2191 = vmatpush1.bf16.msra.mxu0 %v910
    %2192 = vmatprep.subr.bf16.mxu0 0
    %2193 = vmatpush2.bf16.msra.mxu0 0
    %2194 = vmatprep.subr.bf16.mxu0 0
    %2195 = vmatpush2.bf16.msra.mxu0 0
    %2196 = vmatprep.subr.bf16.mxu0 0
    %2197 = vmatpush2.bf16.msra.mxu0 0
    %2198 = vmatprep.subr.bf16.mxu0 0
    %2199 = vmatpush2.bf16.msra.mxu0 0
    %2200 = vmatprep.subr.bf16.mxu0 0
    %2201 = vmatpush2.bf16.msra.mxu0 0
    %2202 = vmatprep.subr.bf16.mxu0 0
    %2203 = vmatpush2.bf16.msra.mxu0 0
    %2204 = vmatprep.subr.bf16.mxu0 0
    %2205 = vmatpush2.bf16.msra.mxu0 0
    %2206 = vmatprep.subr.bf16.mxu0 0
    %2207 = vmatpush2.bf16.msra.mxu0 0
    %2208 = vmatprep.mubr.bf16.mxu0 0
    %2209 = vmatmul.mubr.bf16.gmra.mxu0 %v2109
    %v2210 = vpop.f32.mrf.mxu0
    %v2211 = vadd.f32 0.0, %v2210
    %v2212 = vpop.f32.mrf.mxu0
    %v2213 = vadd.f32 0.0, %v2212
    %v2214 = vpop.f32.mrf.mxu0
    %v2215 = vadd.f32 0.0, %v2214
    %v2216 = vpop.f32.mrf.mxu0
    %v2217 = vadd.f32 0.0, %v2216
    %2218 = vdwg.mxu0
    %v2219 = vadd.f32 %v2125, %v2168
    %v2220 = vadd.f32 %v2126, %v2170
    %v2221 = vadd.f32 %v2127, %v2211
    %v2222 = vadd.f32 %v2128, %v2213
    %v2223 = vadd.f32 %v2129, %v2172
    %v2224 = vadd.f32 %v2130, %v2174
    %v2225 = vadd.f32 %v2131, %v2215
    %v2226 = vadd.f32 %v2132, %v2217
    %v2227 = vxor.u32 %v2219, 2147483648
    %v2228 = vxor.u32 %v2220, 2147483648
    %v2229 = vxor.u32 %v2221, 2147483648
    %v2230 = vxor.u32 %v2223, 2147483648
    %v2231 = vxor.u32 %v2224, 2147483648
    %v2232 = vxor.u32 %v2225, 2147483648
    %v2233 = vmul.f32 %v2227, 1.442695
    %v2234 = vpow.pop %v2233
    %v2235 = vmul.f32 %v2228, 1.442695
    %v2236 = vpow.pop %v2235
    %v2237 = vmul.f32 %v2229, 1.442695
    %v2238 = vpow.pop %v2237
    %v2239 = vmul.f32 %v2230, 1.442695
    %v2240 = vpow.pop %v2239
    %v2241 = vmul.f32 %v2231, 1.442695
    %v2242 = vpow.pop %v2241
    %v2243 = vmul.f32 %v2232, 1.442695
    %v2244 = vpow.pop %v2243
    %v2245 = vadd.f32 %v2234, 1.0
    %v2246 = vadd.f32 %v2236, 1.0
    %v2247 = vadd.f32 %v2238, 1.0
    %v2248 = vadd.f32 %v2240, 1.0
    %v2249 = vadd.f32 %v2242, 1.0
    %v2250 = vadd.f32 %v2244, 1.0
    %v2251 = vrcp.pop %v2245
    %v2252 = vmul.f32 1.0, %v2251
    %v2253 = vrcp.pop %v2246
    %v2254 = vmul.f32 1.0, %v2253
    %v2255 = vrcp.pop %v2247
    %v2256 = vmul.f32 1.0, %v2255
    %v2257 = vrcp.pop %v2248
    %v2258 = vmul.f32 1.0, %v2257
    %v2259 = vrcp.pop %v2249
    %v2260 = vmul.f32 1.0, %v2259
    %v2261 = vrcp.pop %v2250
    %v2262 = vmul.f32 1.0, %v2261
    %v2263 = vtanh.pop %v2222
    %v2264 = vtanh.pop %v2226
    %v2265 = vmul.f32 %v2254, %v2103
    %v2266 = vmul.f32 %v2260, %v2104
    %v2267 = vmul.f32 %v2252, %v2263
    %v2268 = vmul.f32 %v2258, %v2264
    %v2269 = vadd.f32 %v2265, %v2267
    %v2270 = vadd.f32 %v2266, %v2268
    %v2271 = vtanh.pop %v2269
    %v2272 = vtanh.pop %v2270
    %v2273 = vmul.f32 %v2256, %v2271
    %v2274 = vmul.f32 %v2262, %v2272
    %v2275 = vpack.c.bf16 %v2274, %v2273
    %v2277 = vunpack.c.l.b16 %v2275
    %v2278 = vunpack.c.h.b16 %v2275
    %v2279 = vpack.c.b16 %v2277, %v2277
    %v2280 = vpack.c.b16 %v2278, %v2278
    %s2283 = scalar_lea.vmem [#allocation3], 56
    %2284 = vst [vmem:[%s2283] sm:$0xf] %v2279
    %2285 = vst [vmem:[%s2283 + $0x4] sm:$0xf] %v2280
    %2286 = vst [vmem:[%s10] sm:$0xff] %v2273
    %2287 = vst [vmem:[%s10 + $0x8] sm:$0xff] %v2274
    %2288 = vst [vmem:[%s11] sm:$0xff] %v2269
    %2289 = vst [vmem:[%s11 + $0x8] sm:$0xff] %v2270
    %v2290 = vld [vmem:[#allocation3] sm:$0xf]
    %v2291 = vld [vmem:[#allocation3 + $0x4] sm:$0xf]
    %v2292 = vld [vmem:[#allocation3 + $0x8] sm:$0xf]
    %v2293 = vld [vmem:[#allocation3 + $0xc] sm:$0xf]
    %v2294 = vld [vmem:[#allocation3 + $0x10] sm:$0xf]
    %v2295 = vld [vmem:[#allocation3 + $0x14] sm:$0xf]
    %v2296 = vld [vmem:[#allocation3 + $0x18] sm:$0xf]
    %v2297 = vld [vmem:[#allocation3 + $0x1c] sm:$0xf]
    %v2298 = vld [vmem:[#allocation3 + $0x20] sm:$0xf]
    %v2299 = vld [vmem:[#allocation3 + $0x24] sm:$0xf]
    %v2300 = vld [vmem:[#allocation3 + $0x28] sm:$0xf]
    %v2301 = vld [vmem:[#allocation3 + $0x2c] sm:$0xf]
    %v2302 = vld [vmem:[#allocation3 + $0x30] sm:$0xf]
    %v2303 = vld [vmem:[#allocation3 + $0x34] sm:$0xf]
    %v2304 = vld [vmem:[#allocation3 + $0x38] sm:$0xf]
    %v2305 = vld [vmem:[#allocation3 + $0x3c] sm:$0xf]
    %v2306 = vld [vmem:[%s4] sm:$0xff]
    %v2307 = vld [vmem:[%s4 + $0x8] sm:$0xff]
    %v2308 = vld [vmem:[%s4 + $0x10] sm:$0xff]
    %v2309 = vld [vmem:[%s4 + $0x18] sm:$0xff]
    %v2310 = vld [vmem:[%s4 + $0x20] sm:$0xff]
    %v2311 = vld [vmem:[%s4 + $0x28] sm:$0xff]
    %v2312 = vld [vmem:[%s4 + $0x30] sm:$0xff]
    %v2313 = vld [vmem:[%s4 + $0x38] sm:$0xff]
    %v2314 = vld [vmem:[%s4 + $0x40] sm:$0xff]
    %v2315 = vld [vmem:[%s4 + $0x48] sm:$0xff]
    %v2316 = vld [vmem:[%s4 + $0x50] sm:$0xff]
    %v2317 = vld [vmem:[%s4 + $0x58] sm:$0xff]
    %v2318 = vld [vmem:[%s4 + $0x60] sm:$0xff]
    %v2319 = vld [vmem:[%s4 + $0x68] sm:$0xff]
    %v2320 = vld [vmem:[%s4 + $0x70] sm:$0xff]
    %v2321 = vld [vmem:[%s4 + $0x78] sm:$0xff]
    %v2322 = vld [vmem:[%s4 + $0x80] sm:$0xff]
    %v2323 = vld [vmem:[%s4 + $0x88] sm:$0xff]
    %v2324 = vld [vmem:[%s4 + $0x90] sm:$0xff]
    %v2325 = vld [vmem:[%s4 + $0x98] sm:$0xff]
    %v2326 = vld [vmem:[%s4 + $0xa0] sm:$0xff]
    %v2327 = vld [vmem:[%s4 + $0xa8] sm:$0xff]
    %v2328 = vld [vmem:[%s4 + $0xb0] sm:$0xff]
    %v2329 = vld [vmem:[%s4 + $0xb8] sm:$0xff]
    %v2330 = vld [vmem:[%s4 + $0xc0] sm:$0xff]
    %v2331 = vld [vmem:[%s4 + $0xc8] sm:$0xff]
    %v2332 = vld [vmem:[%s4 + $0xd0] sm:$0xff]
    %v2333 = vld [vmem:[%s4 + $0xd8] sm:$0xff]
    %v2334 = vld [vmem:[%s4 + $0xe0] sm:$0xff]
    %v2335 = vld [vmem:[%s4 + $0xe8] sm:$0xff]
    %v2336 = vld [vmem:[%s4 + $0xf0] sm:$0xff]
    %v2337 = vld [vmem:[%s4 + $0xf8] sm:$0xff]
    %v2338 = vld [vmem:[%s6] sm:$0xf]
    %v2340 = vlaneseq
    %v2341 = vshrl.u32 %v2340, 7
    %v2342 = vsub.s32 0, %v2341
    %v2343 = vrot.slane %v2338, %v2342
    %v2344 = vlaneseq
    %v2345 = vshrl.u32 %v2344, 7
    %v2346 = vsub.s32 1, %v2345
    %v2347 = vrot.slane %v2338, %v2346
    %v2348 = vlaneseq
    %v2349 = vshrl.u32 %v2348, 7
    %v2350 = vsub.s32 2, %v2349
    %v2351 = vrot.slane %v2338, %v2350
    %v2352 = vlaneseq
    %v2353 = vshrl.u32 %v2352, 7
    %v2354 = vsub.s32 3, %v2353
    %v2355 = vrot.slane %v2338, %v2354
    %v2376 = vunpack.c.l.b16 %v2290
    %v2377 = vunpack.c.l.b16 %v2291
    %v2378 = vunpack.c.l.b16 %v2292
    %v2379 = vunpack.c.l.b16 %v2293
    %v2380 = vunpack.c.l.b16 %v2294
    %v2381 = vunpack.c.l.b16 %v2295
    %v2382 = vunpack.c.l.b16 %v2296
    %v2383 = vunpack.c.l.b16 %v2297
    %v2384 = vunpack.c.l.b16 %v2298
    %v2385 = vunpack.c.l.b16 %v2299
    %v2386 = vunpack.c.l.b16 %v2300
    %v2387 = vunpack.c.l.b16 %v2301
    %v2388 = vunpack.c.l.b16 %v2302
    %v2389 = vunpack.c.l.b16 %v2303
    %v2390 = vunpack.c.l.b16 %v2304
    %v2391 = vunpack.c.l.b16 %v2305
    %v2392 = vpack.c.b16 %v2377, %v2376
    %v2393 = vpack.c.b16 %v2379, %v2378
    %v2394 = vpack.c.b16 %v2381, %v2380
    %v2395 = vpack.c.b16 %v2383, %v2382
    %v2396 = vpack.c.b16 %v2385, %v2384
    %v2397 = vpack.c.b16 %v2387, %v2386
    %v2398 = vpack.c.b16 %v2389, %v2388
    %v2399 = vpack.c.b16 %v2391, %v2390
    %v2440 = vunpack.c.l.b16 %v2306
    %v2441 = vunpack.c.h.b16 %v2306
    %v2442 = vunpack.c.l.b16 %v2307
    %v2443 = vunpack.c.h.b16 %v2307
    %v2444 = vunpack.c.l.b16 %v2308
    %v2445 = vunpack.c.h.b16 %v2308
    %v2446 = vunpack.c.l.b16 %v2309
    %v2447 = vunpack.c.h.b16 %v2309
    %v2448 = vunpack.c.l.b16 %v2310
    %v2449 = vunpack.c.h.b16 %v2310
    %v2450 = vunpack.c.l.b16 %v2311
    %v2451 = vunpack.c.h.b16 %v2311
    %v2452 = vunpack.c.l.b16 %v2312
    %v2453 = vunpack.c.h.b16 %v2312
    %v2454 = vunpack.c.l.b16 %v2313
    %v2455 = vunpack.c.h.b16 %v2313
    %v2456 = vunpack.c.l.b16 %v2314
    %v2457 = vunpack.c.h.b16 %v2314
    %v2458 = vunpack.c.l.b16 %v2315
    %v2459 = vunpack.c.h.b16 %v2315
    %v2460 = vunpack.c.l.b16 %v2316
    %v2461 = vunpack.c.h.b16 %v2316
    %v2462 = vunpack.c.l.b16 %v2317
    %v2463 = vunpack.c.h.b16 %v2317
    %v2464 = vunpack.c.l.b16 %v2318
    %v2465 = vunpack.c.h.b16 %v2318
    %v2466 = vunpack.c.l.b16 %v2319
    %v2467 = vunpack.c.h.b16 %v2319
    %v2468 = vunpack.c.l.b16 %v2320
    %v2469 = vunpack.c.h.b16 %v2320
    %v2470 = vunpack.c.l.b16 %v2321
    %v2471 = vunpack.c.h.b16 %v2321
    %v2472 = vunpack.c.l.b16 %v2322
    %v2473 = vunpack.c.h.b16 %v2322
    %v2474 = vunpack.c.l.b16 %v2323
    %v2475 = vunpack.c.h.b16 %v2323
    %v2476 = vunpack.c.l.b16 %v2324
    %v2477 = vunpack.c.h.b16 %v2324
    %v2478 = vunpack.c.l.b16 %v2325
    %v2479 = vunpack.c.h.b16 %v2325
    %v2480 = vunpack.c.l.b16 %v2326
    %v2481 = vunpack.c.h.b16 %v2326
    %v2482 = vunpack.c.l.b16 %v2327
    %v2483 = vunpack.c.h.b16 %v2327
    %v2484 = vunpack.c.l.b16 %v2328
    %v2485 = vunpack.c.h.b16 %v2328
    %v2486 = vunpack.c.l.b16 %v2329
    %v2487 = vunpack.c.h.b16 %v2329
    %v2488 = vunpack.c.l.b16 %v2330
    %v2489 = vunpack.c.h.b16 %v2330
    %v2490 = vunpack.c.l.b16 %v2331
    %v2491 = vunpack.c.h.b16 %v2331
    %v2492 = vunpack.c.l.b16 %v2332
    %v2493 = vunpack.c.h.b16 %v2332
    %v2494 = vunpack.c.l.b16 %v2333
    %v2495 = vunpack.c.h.b16 %v2333
    %v2496 = vunpack.c.l.b16 %v2334
    %v2497 = vunpack.c.h.b16 %v2334
    %v2498 = vunpack.c.l.b16 %v2335
    %v2499 = vunpack.c.h.b16 %v2335
    %v2500 = vunpack.c.l.b16 %v2336
    %v2501 = vunpack.c.h.b16 %v2336
    %v2502 = vunpack.c.l.b16 %v2337
    %v2503 = vunpack.c.h.b16 %v2337
    %v2504 = vpack.c.b16 %v2444, %v2440
    %v2505 = vpack.c.b16 %v2445, %v2441
    %v2506 = vpack.c.b16 %v2446, %v2442
    %v2507 = vpack.c.b16 %v2447, %v2443
    %v2508 = vpack.c.b16 %v2452, %v2448
    %v2509 = vpack.c.b16 %v2453, %v2449
    %v2510 = vpack.c.b16 %v2454, %v2450
    %v2511 = vpack.c.b16 %v2455, %v2451
    %v2512 = vpack.c.b16 %v2460, %v2456
    %v2513 = vpack.c.b16 %v2461, %v2457
    %v2514 = vpack.c.b16 %v2462, %v2458
    %v2515 = vpack.c.b16 %v2463, %v2459
    %v2516 = vpack.c.b16 %v2468, %v2464
    %v2517 = vpack.c.b16 %v2469, %v2465
    %v2518 = vpack.c.b16 %v2470, %v2466
    %v2519 = vpack.c.b16 %v2471, %v2467
    %v2520 = vpack.c.b16 %v2476, %v2472
    %v2521 = vpack.c.b16 %v2477, %v2473
    %v2522 = vpack.c.b16 %v2478, %v2474
    %v2523 = vpack.c.b16 %v2479, %v2475
    %v2524 = vpack.c.b16 %v2484, %v2480
    %v2525 = vpack.c.b16 %v2485, %v2481
    %v2526 = vpack.c.b16 %v2486, %v2482
    %v2527 = vpack.c.b16 %v2487, %v2483
    %v2528 = vpack.c.b16 %v2492, %v2488
    %v2529 = vpack.c.b16 %v2493, %v2489
    %v2530 = vpack.c.b16 %v2494, %v2490
    %v2531 = vpack.c.b16 %v2495, %v2491
    %v2532 = vpack.c.b16 %v2500, %v2496
    %v2533 = vpack.c.b16 %v2501, %v2497
    %v2534 = vpack.c.b16 %v2502, %v2498
    %v2535 = vpack.c.b16 %v2503, %v2499
    %2568 = vmatprep.subr.bf16.mxu0 %v2533
    %2569 = vmatpush1.bf16.msra.mxu0 %v2532
    %2570 = vmatprep.subr.bf16.mxu0 %v2529
    %2571 = vmatpush1.bf16.msra.mxu0 %v2528
    %2572 = vmatprep.subr.bf16.mxu0 %v2525
    %2573 = vmatpush1.bf16.msra.mxu0 %v2524
    %2574 = vmatprep.subr.bf16.mxu0 %v2521
    %2575 = vmatpush1.bf16.msra.mxu0 %v2520
    %2576 = vmatprep.subr.bf16.mxu0 %v2517
    %2577 = vmatpush1.bf16.msra.mxu0 %v2516
    %2578 = vmatprep.subr.bf16.mxu0 %v2513
    %2579 = vmatpush1.bf16.msra.mxu0 %v2512
    %2580 = vmatprep.subr.bf16.mxu0 %v2509
    %2581 = vmatpush1.bf16.msra.mxu0 %v2508
    %2582 = vmatprep.subr.bf16.mxu0 %v2505
    %2583 = vmatpush1.bf16.msra.mxu0 %v2504
    %2584 = vmatprep.subr.bf16.mxu0 0
    %2585 = vmatpush2.bf16.msra.mxu0 0
    %2586 = vmatprep.subr.bf16.mxu0 0
    %2587 = vmatpush2.bf16.msra.mxu0 0
    %2588 = vmatprep.subr.bf16.mxu0 0
    %2589 = vmatpush2.bf16.msra.mxu0 0
    %2590 = vmatprep.subr.bf16.mxu0 0
    %2591 = vmatpush2.bf16.msra.mxu0 0
    %2592 = vmatprep.subr.bf16.mxu0 0
    %2593 = vmatpush2.bf16.msra.mxu0 0
    %2594 = vmatprep.subr.bf16.mxu0 0
    %2595 = vmatpush2.bf16.msra.mxu0 0
    %2596 = vmatprep.subr.bf16.mxu0 0
    %2597 = vmatpush2.bf16.msra.mxu0 0
    %2598 = vmatprep.subr.bf16.mxu0 0
    %2599 = vmatpush2.bf16.msra.mxu0 0
    %2600 = vmatprep.mubr.bf16.mxu0 0
    %2601 = vmatmul.mubr.bf16.gmra.mxu0 %v2392
    %v2602 = vpop.f32.mrf.mxu0
    %v2603 = vadd.f32 %v2343, %v2602
    %v2604 = vpop.f32.mrf.mxu0
    %v2605 = vadd.f32 %v2347, %v2604
    %v2606 = vpop.f32.mrf.mxu0
    %v2607 = vadd.f32 %v2343, %v2606
    %v2608 = vpop.f32.mrf.mxu0
    %v2609 = vadd.f32 %v2347, %v2608
    %2610 = vmatprep.mubr.bf16.mxu0 0
    %2611 = vmatmul.mubr.bf16.gmra.mxu0 %v2393
    %v2612 = vpop.f32.mrf.mxu0
    %v2613 = vadd.f32 %v2343, %v2612
    %v2614 = vpop.f32.mrf.mxu0
    %v2615 = vadd.f32 %v2347, %v2614
    %v2616 = vpop.f32.mrf.mxu0
    %v2617 = vadd.f32 %v2343, %v2616
    %v2618 = vpop.f32.mrf.mxu0
    %v2619 = vadd.f32 %v2347, %v2618
    %2620 = vmatprep.mubr.bf16.mxu0 0
    %2621 = vmatmul.mubr.bf16.gmra.mxu0 %v2394
    %v2622 = vpop.f32.mrf.mxu0
    %v2623 = vadd.f32 %v2343, %v2622
    %v2624 = vpop.f32.mrf.mxu0
    %v2625 = vadd.f32 %v2347, %v2624
    %v2626 = vpop.f32.mrf.mxu0
    %v2627 = vadd.f32 %v2343, %v2626
    %v2628 = vpop.f32.mrf.mxu0
    %v2629 = vadd.f32 %v2347, %v2628
    %2630 = vmatprep.mubr.bf16.mxu0 0
    %2631 = vmatmul.mubr.bf16.gmra.mxu0 %v2395
    %v2632 = vpop.f32.mrf.mxu0
    %v2633 = vadd.f32 %v2343, %v2632
    %v2634 = vpop.f32.mrf.mxu0
    %v2635 = vadd.f32 %v2347, %v2634
    %v2636 = vpop.f32.mrf.mxu0
    %v2637 = vadd.f32 %v2343, %v2636
    %v2638 = vpop.f32.mrf.mxu0
    %v2639 = vadd.f32 %v2347, %v2638
    %2640 = vmatprep.mubr.bf16.mxu0 0
    %2641 = vmatmul.mubr.bf16.gmra.mxu0 %v2396
    %v2642 = vpop.f32.mrf.mxu0
    %v2643 = vadd.f32 %v2343, %v2642
    %v2644 = vpop.f32.mrf.mxu0
    %v2645 = vadd.f32 %v2347, %v2644
    %v2646 = vpop.f32.mrf.mxu0
    %v2647 = vadd.f32 %v2343, %v2646
    %v2648 = vpop.f32.mrf.mxu0
    %v2649 = vadd.f32 %v2347, %v2648
    %2650 = vmatprep.mubr.bf16.mxu0 0
    %2651 = vmatmul.mubr.bf16.gmra.mxu0 %v2397
    %v2652 = vpop.f32.mrf.mxu0
    %v2653 = vadd.f32 %v2343, %v2652
    %v2654 = vpop.f32.mrf.mxu0
    %v2655 = vadd.f32 %v2347, %v2654
    %v2656 = vpop.f32.mrf.mxu0
    %v2657 = vadd.f32 %v2343, %v2656
    %v2658 = vpop.f32.mrf.mxu0
    %v2659 = vadd.f32 %v2347, %v2658
    %2660 = vmatprep.mubr.bf16.mxu0 0
    %2661 = vmatmul.mubr.bf16.gmra.mxu0 %v2398
    %v2662 = vpop.f32.mrf.mxu0
    %v2663 = vadd.f32 %v2343, %v2662
    %v2664 = vpop.f32.mrf.mxu0
    %v2665 = vadd.f32 %v2347, %v2664
    %v2666 = vpop.f32.mrf.mxu0
    %v2667 = vadd.f32 %v2343, %v2666
    %v2668 = vpop.f32.mrf.mxu0
    %v2669 = vadd.f32 %v2347, %v2668
    %2670 = vmatprep.mubr.bf16.mxu0 0
    %2671 = vmatmul.mubr.bf16.gmra.mxu0 %v2399
    %v2672 = vpop.f32.mrf.mxu0
    %v2673 = vadd.f32 %v2343, %v2672
    %v2674 = vpop.f32.mrf.mxu0
    %v2675 = vadd.f32 %v2347, %v2674
    %v2676 = vpop.f32.mrf.mxu0
    %v2677 = vadd.f32 %v2343, %v2676
    %v2678 = vpop.f32.mrf.mxu0
    %v2679 = vadd.f32 %v2347, %v2678
    %2680 = vdwg.mxu0
    %2681 = vmatprep.subr.bf16.mxu0 %v2535
    %2682 = vmatpush1.bf16.msra.mxu0 %v2534
    %2683 = vmatprep.subr.bf16.mxu0 %v2531
    %2684 = vmatpush1.bf16.msra.mxu0 %v2530
    %2685 = vmatprep.subr.bf16.mxu0 %v2527
    %2686 = vmatpush1.bf16.msra.mxu0 %v2526
    %2687 = vmatprep.subr.bf16.mxu0 %v2523
    %2688 = vmatpush1.bf16.msra.mxu0 %v2522
    %2689 = vmatprep.subr.bf16.mxu0 %v2519
    %2690 = vmatpush1.bf16.msra.mxu0 %v2518
    %2691 = vmatprep.subr.bf16.mxu0 %v2515
    %2692 = vmatpush1.bf16.msra.mxu0 %v2514
    %2693 = vmatprep.subr.bf16.mxu0 %v2511
    %2694 = vmatpush1.bf16.msra.mxu0 %v2510
    %2695 = vmatprep.subr.bf16.mxu0 %v2507
    %2696 = vmatpush1.bf16.msra.mxu0 %v2506
    %2697 = vmatprep.subr.bf16.mxu0 0
    %2698 = vmatpush2.bf16.msra.mxu0 0
    %2699 = vmatprep.subr.bf16.mxu0 0
    %2700 = vmatpush2.bf16.msra.mxu0 0
    %2701 = vmatprep.subr.bf16.mxu0 0
    %2702 = vmatpush2.bf16.msra.mxu0 0
    %2703 = vmatprep.subr.bf16.mxu0 0
    %2704 = vmatpush2.bf16.msra.mxu0 0
    %2705 = vmatprep.subr.bf16.mxu0 0
    %2706 = vmatpush2.bf16.msra.mxu0 0
    %2707 = vmatprep.subr.bf16.mxu0 0
    %2708 = vmatpush2.bf16.msra.mxu0 0
    %2709 = vmatprep.subr.bf16.mxu0 0
    %2710 = vmatpush2.bf16.msra.mxu0 0
    %2711 = vmatprep.subr.bf16.mxu0 0
    %2712 = vmatpush2.bf16.msra.mxu0 0
    %2713 = vmatprep.mubr.bf16.mxu0 0
    %2714 = vmatmul.mubr.bf16.gmra.mxu0 %v2392
    %v2715 = vpop.f32.mrf.mxu0
    %v2716 = vadd.f32 %v2351, %v2715
    %v2717 = vpop.f32.mrf.mxu0
    %v2718 = vadd.f32 %v2355, %v2717
    %v2719 = vpop.f32.mrf.mxu0
    %v2720 = vadd.f32 %v2351, %v2719
    %v2721 = vpop.f32.mrf.mxu0
    %v2722 = vadd.f32 %v2355, %v2721
    %2723 = vmatprep.mubr.bf16.mxu0 0
    %2724 = vmatmul.mubr.bf16.gmra.mxu0 %v2393
    %v2725 = vpop.f32.mrf.mxu0
    %v2726 = vadd.f32 %v2351, %v2725
    %v2727 = vpop.f32.mrf.mxu0
    %v2728 = vadd.f32 %v2355, %v2727
    %v2729 = vpop.f32.mrf.mxu0
    %v2730 = vadd.f32 %v2351, %v2729
    %v2731 = vpop.f32.mrf.mxu0
    %v2732 = vadd.f32 %v2355, %v2731
    %2733 = vmatprep.mubr.bf16.mxu0 0
    %2734 = vmatmul.mubr.bf16.gmra.mxu0 %v2394
    %v2735 = vpop.f32.mrf.mxu0
    %v2736 = vadd.f32 %v2351, %v2735
    %v2737 = vpop.f32.mrf.mxu0
    %v2738 = vadd.f32 %v2355, %v2737
    %v2739 = vpop.f32.mrf.mxu0
    %v2740 = vadd.f32 %v2351, %v2739
    %v2741 = vpop.f32.mrf.mxu0
    %v2742 = vadd.f32 %v2355, %v2741
    %2743 = vmatprep.mubr.bf16.mxu0 0
    %2744 = vmatmul.mubr.bf16.gmra.mxu0 %v2395
    %v2745 = vpop.f32.mrf.mxu0
    %v2746 = vadd.f32 %v2351, %v2745
    %v2747 = vpop.f32.mrf.mxu0
    %v2748 = vadd.f32 %v2355, %v2747
    %v2749 = vpop.f32.mrf.mxu0
    %v2750 = vadd.f32 %v2351, %v2749
    %v2751 = vpop.f32.mrf.mxu0
    %v2752 = vadd.f32 %v2355, %v2751
    %2753 = vmatprep.mubr.bf16.mxu0 0
    %2754 = vmatmul.mubr.bf16.gmra.mxu0 %v2396
    %v2755 = vpop.f32.mrf.mxu0
    %v2756 = vadd.f32 %v2351, %v2755
    %v2757 = vpop.f32.mrf.mxu0
    %v2758 = vadd.f32 %v2355, %v2757
    %v2759 = vpop.f32.mrf.mxu0
    %v2760 = vadd.f32 %v2351, %v2759
    %v2761 = vpop.f32.mrf.mxu0
    %v2762 = vadd.f32 %v2355, %v2761
    %2763 = vmatprep.mubr.bf16.mxu0 0
    %2764 = vmatmul.mubr.bf16.gmra.mxu0 %v2397
    %v2765 = vpop.f32.mrf.mxu0
    %v2766 = vadd.f32 %v2351, %v2765
    %v2767 = vpop.f32.mrf.mxu0
    %v2768 = vadd.f32 %v2355, %v2767
    %v2769 = vpop.f32.mrf.mxu0
    %v2770 = vadd.f32 %v2351, %v2769
    %v2771 = vpop.f32.mrf.mxu0
    %v2772 = vadd.f32 %v2355, %v2771
    %2773 = vmatprep.mubr.bf16.mxu0 0
    %2774 = vmatmul.mubr.bf16.gmra.mxu0 %v2398
    %v2775 = vpop.f32.mrf.mxu0
    %v2776 = vadd.f32 %v2351, %v2775
    %v2777 = vpop.f32.mrf.mxu0
    %v2778 = vadd.f32 %v2355, %v2777
    %v2779 = vpop.f32.mrf.mxu0
    %v2780 = vadd.f32 %v2351, %v2779
    %v2781 = vpop.f32.mrf.mxu0
    %v2782 = vadd.f32 %v2355, %v2781
    %2783 = vmatprep.mubr.bf16.mxu0 0
    %2784 = vmatmul.mubr.bf16.gmra.mxu0 %v2399
    %v2785 = vpop.f32.mrf.mxu0
    %v2786 = vadd.f32 %v2351, %v2785
    %v2787 = vpop.f32.mrf.mxu0
    %v2788 = vadd.f32 %v2355, %v2787
    %v2789 = vpop.f32.mrf.mxu0
    %v2790 = vadd.f32 %v2351, %v2789
    %v2791 = vpop.f32.mrf.mxu0
    %v2792 = vadd.f32 %v2355, %v2791
    %2793 = vdwg.mxu0
    %v2794 = vpack.c.bf16 %v2607, %v2603
    %v2795 = vpack.c.bf16 %v2609, %v2605
    %v2796 = vpack.c.bf16 %v2720, %v2716
    %v2797 = vpack.c.bf16 %v2722, %v2718
    %v2798 = vpack.c.bf16 %v2617, %v2613
    %v2799 = vpack.c.bf16 %v2619, %v2615
    %v2800 = vpack.c.bf16 %v2730, %v2726
    %v2801 = vpack.c.bf16 %v2732, %v2728
    %v2802 = vpack.c.bf16 %v2627, %v2623
    %v2803 = vpack.c.bf16 %v2629, %v2625
    %v2804 = vpack.c.bf16 %v2740, %v2736
    %v2805 = vpack.c.bf16 %v2742, %v2738
    %v2806 = vpack.c.bf16 %v2637, %v2633
    %v2807 = vpack.c.bf16 %v2639, %v2635
    %v2808 = vpack.c.bf16 %v2750, %v2746
    %v2809 = vpack.c.bf16 %v2752, %v2748
    %v2810 = vpack.c.bf16 %v2647, %v2643
    %v2811 = vpack.c.bf16 %v2649, %v2645
    %v2812 = vpack.c.bf16 %v2760, %v2756
    %v2813 = vpack.c.bf16 %v2762, %v2758
    %v2814 = vpack.c.bf16 %v2657, %v2653
    %v2815 = vpack.c.bf16 %v2659, %v2655
    %v2816 = vpack.c.bf16 %v2770, %v2766
    %v2817 = vpack.c.bf16 %v2772, %v2768
    %v2818 = vpack.c.bf16 %v2667, %v2663
    %v2819 = vpack.c.bf16 %v2669, %v2665
    %v2820 = vpack.c.bf16 %v2780, %v2776
    %v2821 = vpack.c.bf16 %v2782, %v2778
    %v2822 = vpack.c.bf16 %v2677, %v2673
    %v2823 = vpack.c.bf16 %v2679, %v2675
    %v2824 = vpack.c.bf16 %v2790, %v2786
    %v2825 = vpack.c.bf16 %v2792, %v2788
    %v2858 = vunpack.c.l.b16 %v2794
    %v2859 = vunpack.c.l.b16 %v2795
    %v2860 = vunpack.c.l.b16 %v2796
    %v2861 = vunpack.c.l.b16 %v2797
    %v2862 = vunpack.c.h.b16 %v2794
    %v2863 = vunpack.c.h.b16 %v2795
    %v2864 = vunpack.c.h.b16 %v2796
    %v2865 = vunpack.c.h.b16 %v2797
    %v2866 = vunpack.c.l.b16 %v2798
    %v2867 = vunpack.c.l.b16 %v2799
    %v2868 = vunpack.c.l.b16 %v2800
    %v2869 = vunpack.c.l.b16 %v2801
    %v2870 = vunpack.c.h.b16 %v2798
    %v2871 = vunpack.c.h.b16 %v2799
    %v2872 = vunpack.c.h.b16 %v2800
    %v2873 = vunpack.c.h.b16 %v2801
    %v2874 = vunpack.c.l.b16 %v2802
    %v2875 = vunpack.c.l.b16 %v2803
    %v2876 = vunpack.c.l.b16 %v2804
    %v2877 = vunpack.c.l.b16 %v2805
    %v2878 = vunpack.c.h.b16 %v2802
    %v2879 = vunpack.c.h.b16 %v2803
    %v2880 = vunpack.c.h.b16 %v2804
    %v2881 = vunpack.c.h.b16 %v2805
    %v2882 = vunpack.c.l.b16 %v2806
    %v2883 = vunpack.c.l.b16 %v2807
    %v2884 = vunpack.c.l.b16 %v2808
    %v2885 = vunpack.c.l.b16 %v2809
    %v2886 = vunpack.c.h.b16 %v2806
    %v2887 = vunpack.c.h.b16 %v2807
    %v2888 = vunpack.c.h.b16 %v2808
    %v2889 = vunpack.c.h.b16 %v2809
    %v2890 = vunpack.c.l.b16 %v2810
    %v2891 = vunpack.c.l.b16 %v2811
    %v2892 = vunpack.c.l.b16 %v2812
    %v2893 = vunpack.c.l.b16 %v2813
    %v2894 = vunpack.c.h.b16 %v2810
    %v2895 = vunpack.c.h.b16 %v2811
    %v2896 = vunpack.c.h.b16 %v2812
    %v2897 = vunpack.c.h.b16 %v2813
    %v2898 = vunpack.c.l.b16 %v2814
    %v2899 = vunpack.c.l.b16 %v2815
    %v2900 = vunpack.c.l.b16 %v2816
    %v2901 = vunpack.c.l.b16 %v2817
    %v2902 = vunpack.c.h.b16 %v2814
    %v2903 = vunpack.c.h.b16 %v2815
    %v2904 = vunpack.c.h.b16 %v2816
    %v2905 = vunpack.c.h.b16 %v2817
    %v2906 = vunpack.c.l.b16 %v2818
    %v2907 = vunpack.c.l.b16 %v2819
    %v2908 = vunpack.c.l.b16 %v2820
    %v2909 = vunpack.c.l.b16 %v2821
    %v2910 = vunpack.c.h.b16 %v2818
    %v2911 = vunpack.c.h.b16 %v2819
    %v2912 = vunpack.c.h.b16 %v2820
    %v2913 = vunpack.c.h.b16 %v2821
    %v2914 = vunpack.c.l.b16 %v2822
    %v2915 = vunpack.c.l.b16 %v2823
    %v2916 = vunpack.c.l.b16 %v2824
    %v2917 = vunpack.c.l.b16 %v2825
    %v2918 = vunpack.c.h.b16 %v2822
    %v2919 = vunpack.c.h.b16 %v2823
    %v2920 = vunpack.c.h.b16 %v2824
    %v2921 = vunpack.c.h.b16 %v2825
    %v2922 = vpack.c.b16 %v2859, %v2858
    %v2923 = vpack.c.b16 %v2861, %v2860
    %v2924 = vpack.c.b16 %v2863, %v2862
    %v2925 = vpack.c.b16 %v2865, %v2864
    %v2926 = vpack.c.b16 %v2867, %v2866
    %v2927 = vpack.c.b16 %v2869, %v2868
    %v2928 = vpack.c.b16 %v2871, %v2870
    %v2929 = vpack.c.b16 %v2873, %v2872
    %v2930 = vpack.c.b16 %v2875, %v2874
    %v2931 = vpack.c.b16 %v2877, %v2876
    %v2932 = vpack.c.b16 %v2879, %v2878
    %v2933 = vpack.c.b16 %v2881, %v2880
    %v2934 = vpack.c.b16 %v2883, %v2882
    %v2935 = vpack.c.b16 %v2885, %v2884
    %v2936 = vpack.c.b16 %v2887, %v2886
    %v2937 = vpack.c.b16 %v2889, %v2888
    %v2938 = vpack.c.b16 %v2891, %v2890
    %v2939 = vpack.c.b16 %v2893, %v2892
    %v2940 = vpack.c.b16 %v2895, %v2894
    %v2941 = vpack.c.b16 %v2897, %v2896
    %v2942 = vpack.c.b16 %v2899, %v2898
    %v2943 = vpack.c.b16 %v2901, %v2900
    %v2944 = vpack.c.b16 %v2903, %v2902
    %v2945 = vpack.c.b16 %v2905, %v2904
    %v2946 = vpack.c.b16 %v2907, %v2906
    %v2947 = vpack.c.b16 %v2909, %v2908
    %v2948 = vpack.c.b16 %v2911, %v2910
    %v2949 = vpack.c.b16 %v2913, %v2912
    %v2950 = vpack.c.b16 %v2915, %v2914
    %v2951 = vpack.c.b16 %v2917, %v2916
    %v2952 = vpack.c.b16 %v2919, %v2918
    %v2953 = vpack.c.b16 %v2921, %v2920
    %2986 = vst [vmem:[#allocation2] sm:$0xff] %v2922
    %2987 = vst [vmem:[#allocation2 + $0x8] sm:$0xff] %v2923
    %2988 = vst [vmem:[#allocation2 + $0x10] sm:$0xff] %v2924
    %2989 = vst [vmem:[#allocation2 + $0x18] sm:$0xff] %v2925
    %2990 = vst [vmem:[#allocation2 + $0x20] sm:$0xff] %v2926
    %2991 = vst [vmem:[#allocation2 + $0x28] sm:$0xff] %v2927
    %2992 = vst [vmem:[#allocation2 + $0x30] sm:$0xff] %v2928
    %2993 = vst [vmem:[#allocation2 + $0x38] sm:$0xff] %v2929
    %2994 = vst [vmem:[#allocation2 + $0x40] sm:$0xff] %v2930
    %2995 = vst [vmem:[#allocation2 + $0x48] sm:$0xff] %v2931
    %2996 = vst [vmem:[#allocation2 + $0x50] sm:$0xff] %v2932
    %2997 = vst [vmem:[#allocation2 + $0x58] sm:$0xff] %v2933
    %2998 = vst [vmem:[#allocation2 + $0x60] sm:$0xff] %v2934
    %2999 = vst [vmem:[#allocation2 + $0x68] sm:$0xff] %v2935
    %3000 = vst [vmem:[#allocation2 + $0x70] sm:$0xff] %v2936
    %3001 = vst [vmem:[#allocation2 + $0x78] sm:$0xff] %v2937
    %3002 = vst [vmem:[#allocation2 + $0x80] sm:$0xff] %v2938
    %3003 = vst [vmem:[#allocation2 + $0x88] sm:$0xff] %v2939
    %3004 = vst [vmem:[#allocation2 + $0x90] sm:$0xff] %v2940
    %3005 = vst [vmem:[#allocation2 + $0x98] sm:$0xff] %v2941
    %3006 = vst [vmem:[#allocation2 + $0xa0] sm:$0xff] %v2942
    %3007 = vst [vmem:[#allocation2 + $0xa8] sm:$0xff] %v2943
    %3008 = vst [vmem:[#allocation2 + $0xb0] sm:$0xff] %v2944
    %3009 = vst [vmem:[#allocation2 + $0xb8] sm:$0xff] %v2945
    %3010 = vst [vmem:[#allocation2 + $0xc0] sm:$0xff] %v2946
    %3011 = vst [vmem:[#allocation2 + $0xc8] sm:$0xff] %v2947
    %3012 = vst [vmem:[#allocation2 + $0xd0] sm:$0xff] %v2948
    %3013 = vst [vmem:[#allocation2 + $0xd8] sm:$0xff] %v2949
    %3014 = vst [vmem:[#allocation2 + $0xe0] sm:$0xff] %v2950
    %3015 = vst [vmem:[#allocation2 + $0xe8] sm:$0xff] %v2951
    %3016 = vst [vmem:[#allocation2 + $0xf0] sm:$0xff] %v2952
    %3017 = vst [vmem:[#allocation2 + $0xf8] sm:$0xff] %v2953
    %v3018 = vld [vmem:[%s5] sm:$0xff]
    %v3019 = vld [vmem:[%s5 + $0x8] sm:$0xff]
    %v3020 = vld [vmem:[%s5 + $0x10] sm:$0xff]
    %v3021 = vld [vmem:[%s5 + $0x18] sm:$0xff]
    %v3022 = vld [vmem:[%s5 + $0x20] sm:$0xff]
    %v3023 = vld [vmem:[%s5 + $0x28] sm:$0xff]
    %v3024 = vld [vmem:[%s5 + $0x30] sm:$0xff]
    %v3025 = vld [vmem:[%s5 + $0x38] sm:$0xff]
    %v3026 = vld [vmem:[%s5 + $0x40] sm:$0xff]
    %v3027 = vld [vmem:[%s5 + $0x48] sm:$0xff]
    %v3028 = vld [vmem:[%s5 + $0x50] sm:$0xff]
    %v3029 = vld [vmem:[%s5 + $0x58] sm:$0xff]
    %v3030 = vld [vmem:[%s5 + $0x60] sm:$0xff]
    %v3031 = vld [vmem:[%s5 + $0x68] sm:$0xff]
    %v3032 = vld [vmem:[%s5 + $0x70] sm:$0xff]
    %v3033 = vld [vmem:[%s5 + $0x78] sm:$0xff]
    %v3034 = vld [vmem:[%s5 + $0x80] sm:$0xff]
    %v3035 = vld [vmem:[%s5 + $0x88] sm:$0xff]
    %v3036 = vld [vmem:[%s5 + $0x90] sm:$0xff]
    %v3037 = vld [vmem:[%s5 + $0x98] sm:$0xff]
    %v3038 = vld [vmem:[%s5 + $0xa0] sm:$0xff]
    %v3039 = vld [vmem:[%s5 + $0xa8] sm:$0xff]
    %v3040 = vld [vmem:[%s5 + $0xb0] sm:$0xff]
    %v3041 = vld [vmem:[%s5 + $0xb8] sm:$0xff]
    %v3042 = vld [vmem:[%s5 + $0xc0] sm:$0xff]
    %v3043 = vld [vmem:[%s5 + $0xc8] sm:$0xff]
    %v3044 = vld [vmem:[%s5 + $0xd0] sm:$0xff]
    %v3045 = vld [vmem:[%s5 + $0xd8] sm:$0xff]
    %v3046 = vld [vmem:[%s5 + $0xe0] sm:$0xff]
    %v3047 = vld [vmem:[%s5 + $0xe8] sm:$0xff]
    %v3048 = vld [vmem:[%s5 + $0xf0] sm:$0xff]
    %v3049 = vld [vmem:[%s5 + $0xf8] sm:$0xff]
    %v3050 = vld [vmem:[#allocation2] sm:$0xff]
    %v3051 = vld [vmem:[#allocation2 + $0x8] sm:$0xff]
    %v3052 = vld [vmem:[#allocation2 + $0x10] sm:$0xff]
    %v3053 = vld [vmem:[#allocation2 + $0x18] sm:$0xff]
    %v3054 = vunpack.c.l.bf16 %v3050
    %v3055 = vunpack.c.h.bf16 %v3050
    %v3056 = vunpack.c.l.bf16 %v3051
    %v3057 = vunpack.c.h.bf16 %v3051
    %v3058 = vunpack.c.l.bf16 %v3052
    %v3059 = vunpack.c.h.bf16 %v3052
    %v3060 = vunpack.c.l.bf16 %v3053
    %v3061 = vunpack.c.h.bf16 %v3053
    %v3094 = vunpack.c.l.b16 %v3018
    %v3095 = vunpack.c.h.b16 %v3018
    %v3096 = vunpack.c.l.b16 %v3019
    %v3097 = vunpack.c.h.b16 %v3019
    %v3098 = vunpack.c.l.b16 %v3020
    %v3099 = vunpack.c.h.b16 %v3020
    %v3100 = vunpack.c.l.b16 %v3021
    %v3101 = vunpack.c.h.b16 %v3021
    %v3102 = vunpack.c.l.b16 %v3022
    %v3103 = vunpack.c.h.b16 %v3022
    %v3104 = vunpack.c.l.b16 %v3023
    %v3105 = vunpack.c.h.b16 %v3023
    %v3106 = vunpack.c.l.b16 %v3024
    %v3107 = vunpack.c.h.b16 %v3024
    %v3108 = vunpack.c.l.b16 %v3025
    %v3109 = vunpack.c.h.b16 %v3025
    %v3110 = vunpack.c.l.b16 %v3026
    %v3111 = vunpack.c.h.b16 %v3026
    %v3112 = vunpack.c.l.b16 %v3027
    %v3113 = vunpack.c.h.b16 %v3027
    %v3114 = vunpack.c.l.b16 %v3028
    %v3115 = vunpack.c.h.b16 %v3028
    %v3116 = vunpack.c.l.b16 %v3029
    %v3117 = vunpack.c.h.b16 %v3029
    %v3118 = vunpack.c.l.b16 %v3030
    %v3119 = vunpack.c.h.b16 %v3030
    %v3120 = vunpack.c.l.b16 %v3031
    %v3121 = vunpack.c.h.b16 %v3031
    %v3122 = vunpack.c.l.b16 %v3032
    %v3123 = vunpack.c.h.b16 %v3032
    %v3124 = vunpack.c.l.b16 %v3033
    %v3125 = vunpack.c.h.b16 %v3033
    %v3126 = vunpack.c.l.b16 %v3034
    %v3127 = vunpack.c.h.b16 %v3034
    %v3128 = vunpack.c.l.b16 %v3035
    %v3129 = vunpack.c.h.b16 %v3035
    %v3130 = vunpack.c.l.b16 %v3036
    %v3131 = vunpack.c.h.b16 %v3036
    %v3132 = vunpack.c.l.b16 %v3037
    %v3133 = vunpack.c.h.b16 %v3037
    %v3134 = vunpack.c.l.b16 %v3038
    %v3135 = vunpack.c.h.b16 %v3038
    %v3136 = vunpack.c.l.b16 %v3039
    %v3137 = vunpack.c.h.b16 %v3039
    %v3138 = vunpack.c.l.b16 %v3040
    %v3139 = vunpack.c.h.b16 %v3040
    %v3140 = vunpack.c.l.b16 %v3041
    %v3141 = vunpack.c.h.b16 %v3041
    %v3142 = vunpack.c.l.b16 %v3042
    %v3143 = vunpack.c.h.b16 %v3042
    %v3144 = vunpack.c.l.b16 %v3043
    %v3145 = vunpack.c.h.b16 %v3043
    %v3146 = vunpack.c.l.b16 %v3044
    %v3147 = vunpack.c.h.b16 %v3044
    %v3148 = vunpack.c.l.b16 %v3045
    %v3149 = vunpack.c.h.b16 %v3045
    %v3150 = vunpack.c.l.b16 %v3046
    %v3151 = vunpack.c.h.b16 %v3046
    %v3152 = vunpack.c.l.b16 %v3047
    %v3153 = vunpack.c.h.b16 %v3047
    %v3154 = vunpack.c.l.b16 %v3048
    %v3155 = vunpack.c.h.b16 %v3048
    %v3156 = vunpack.c.l.b16 %v3049
    %v3157 = vunpack.c.h.b16 %v3049
    %v3158 = vpack.c.b16 %v3098, %v3094
    %v3159 = vpack.c.b16 %v3099, %v3095
    %v3160 = vpack.c.b16 %v3100, %v3096
    %v3161 = vpack.c.b16 %v3101, %v3097
    %v3162 = vpack.c.b16 %v3106, %v3102
    %v3163 = vpack.c.b16 %v3107, %v3103
    %v3164 = vpack.c.b16 %v3108, %v3104
    %v3165 = vpack.c.b16 %v3109, %v3105
    %v3166 = vpack.c.b16 %v3114, %v3110
    %v3167 = vpack.c.b16 %v3115, %v3111
    %v3168 = vpack.c.b16 %v3116, %v3112
    %v3169 = vpack.c.b16 %v3117, %v3113
    %v3170 = vpack.c.b16 %v3122, %v3118
    %v3171 = vpack.c.b16 %v3123, %v3119
    %v3172 = vpack.c.b16 %v3124, %v3120
    %v3173 = vpack.c.b16 %v3125, %v3121
    %v3174 = vpack.c.b16 %v3130, %v3126
    %v3175 = vpack.c.b16 %v3131, %v3127
    %v3176 = vpack.c.b16 %v3132, %v3128
    %v3177 = vpack.c.b16 %v3133, %v3129
    %v3178 = vpack.c.b16 %v3138, %v3134
    %v3179 = vpack.c.b16 %v3139, %v3135
    %v3180 = vpack.c.b16 %v3140, %v3136
    %v3181 = vpack.c.b16 %v3141, %v3137
    %v3182 = vpack.c.b16 %v3146, %v3142
    %v3183 = vpack.c.b16 %v3147, %v3143
    %v3184 = vpack.c.b16 %v3148, %v3144
    %v3185 = vpack.c.b16 %v3149, %v3145
    %v3186 = vpack.c.b16 %v3154, %v3150
    %v3187 = vpack.c.b16 %v3155, %v3151
    %v3188 = vpack.c.b16 %v3156, %v3152
    %v3189 = vpack.c.b16 %v3157, %v3153
    %3222 = vmatprep.subr.bf16.mxu0 %v3187
    %3223 = vmatpush1.bf16.msra.mxu0 %v3186
    %3224 = vmatprep.subr.bf16.mxu0 %v3183
    %3225 = vmatpush1.bf16.msra.mxu0 %v3182
    %3226 = vmatprep.subr.bf16.mxu0 %v3179
    %3227 = vmatpush1.bf16.msra.mxu0 %v3178
    %3228 = vmatprep.subr.bf16.mxu0 %v3175
    %3229 = vmatpush1.bf16.msra.mxu0 %v3174
    %3230 = vmatprep.subr.bf16.mxu0 %v3171
    %3231 = vmatpush1.bf16.msra.mxu0 %v3170
    %3232 = vmatprep.subr.bf16.mxu0 %v3167
    %3233 = vmatpush1.bf16.msra.mxu0 %v3166
    %3234 = vmatprep.subr.bf16.mxu0 %v3163
    %3235 = vmatpush1.bf16.msra.mxu0 %v3162
    %3236 = vmatprep.subr.bf16.mxu0 %v3159
    %3237 = vmatpush1.bf16.msra.mxu0 %v3158
    %3238 = vmatprep.subr.bf16.mxu0 0
    %3239 = vmatpush2.bf16.msra.mxu0 0
    %3240 = vmatprep.subr.bf16.mxu0 0
    %3241 = vmatpush2.bf16.msra.mxu0 0
    %3242 = vmatprep.subr.bf16.mxu0 0
    %3243 = vmatpush2.bf16.msra.mxu0 0
    %3244 = vmatprep.subr.bf16.mxu0 0
    %3245 = vmatpush2.bf16.msra.mxu0 0
    %3246 = vmatprep.subr.bf16.mxu0 0
    %3247 = vmatpush2.bf16.msra.mxu0 0
    %3248 = vmatprep.subr.bf16.mxu0 0
    %3249 = vmatpush2.bf16.msra.mxu0 0
    %3250 = vmatprep.subr.bf16.mxu0 0
    %3251 = vmatpush2.bf16.msra.mxu0 0
    %3252 = vmatprep.subr.bf16.mxu0 0
    %3253 = vmatpush2.bf16.msra.mxu0 0
    %3254 = vmatprep.mubr.bf16.mxu0 0
    %3255 = vmatmul.mubr.bf16.gmra.mxu0 0
    %v3256 = vpop.f32.mrf.mxu0
    %v3257 = vadd.f32 0.0, %v3256
    %v3258 = vpop.f32.mrf.mxu0
    %v3259 = vadd.f32 0.0, %v3258
    %v3260 = vpop.f32.mrf.mxu0
    %v3261 = vadd.f32 0.0, %v3260
    %v3262 = vpop.f32.mrf.mxu0
    %v3263 = vadd.f32 0.0, %v3262
    %3264 = vdwg.mxu0
    %3265 = vmatprep.subr.bf16.mxu0 %v3189
    %3266 = vmatpush1.bf16.msra.mxu0 %v3188
    %3267 = vmatprep.subr.bf16.mxu0 %v3185
    %3268 = vmatpush1.bf16.msra.mxu0 %v3184
    %3269 = vmatprep.subr.bf16.mxu0 %v3181
    %3270 = vmatpush1.bf16.msra.mxu0 %v3180
    %3271 = vmatprep.subr.bf16.mxu0 %v3177
    %3272 = vmatpush1.bf16.msra.mxu0 %v3176
    %3273 = vmatprep.subr.bf16.mxu0 %v3173
    %3274 = vmatpush1.bf16.msra.mxu0 %v3172
    %3275 = vmatprep.subr.bf16.mxu0 %v3169
    %3276 = vmatpush1.bf16.msra.mxu0 %v3168
    %3277 = vmatprep.subr.bf16.mxu0 %v3165
    %3278 = vmatpush1.bf16.msra.mxu0 %v3164
    %3279 = vmatprep.subr.bf16.mxu0 %v3161
    %3280 = vmatpush1.bf16.msra.mxu0 %v3160
    %3281 = vmatprep.subr.bf16.mxu0 0
    %3282 = vmatpush2.bf16.msra.mxu0 0
    %3283 = vmatprep.subr.bf16.mxu0 0
    %3284 = vmatpush2.bf16.msra.mxu0 0
    %3285 = vmatprep.subr.bf16.mxu0 0
    %3286 = vmatpush2.bf16.msra.mxu0 0
    %3287 = vmatprep.subr.bf16.mxu0 0
    %3288 = vmatpush2.bf16.msra.mxu0 0
    %3289 = vmatprep.subr.bf16.mxu0 0
    %3290 = vmatpush2.bf16.msra.mxu0 0
    %3291 = vmatprep.subr.bf16.mxu0 0
    %3292 = vmatpush2.bf16.msra.mxu0 0
    %3293 = vmatprep.subr.bf16.mxu0 0
    %3294 = vmatpush2.bf16.msra.mxu0 0
    %3295 = vmatprep.subr.bf16.mxu0 0
    %3296 = vmatpush2.bf16.msra.mxu0 0
    %3297 = vmatprep.mubr.bf16.mxu0 0
    %3298 = vmatmul.mubr.bf16.gmra.mxu0 0
    %v3299 = vpop.f32.mrf.mxu0
    %v3300 = vadd.f32 0.0, %v3299
    %v3301 = vpop.f32.mrf.mxu0
    %v3302 = vadd.f32 0.0, %v3301
    %v3303 = vpop.f32.mrf.mxu0
    %v3304 = vadd.f32 0.0, %v3303
    %v3305 = vpop.f32.mrf.mxu0
    %v3306 = vadd.f32 0.0, %v3305
    %3307 = vdwg.mxu0
    %v3308 = vadd.f32 %v3054, %v3257
    %v3309 = vadd.f32 %v3055, %v3259
    %v3310 = vadd.f32 %v3056, %v3300
    %v3311 = vadd.f32 %v3057, %v3302
    %v3312 = vadd.f32 %v3058, %v3261
    %v3313 = vadd.f32 %v3059, %v3263
    %v3314 = vadd.f32 %v3060, %v3304
    %v3315 = vadd.f32 %v3061, %v3306
    %v3316 = vxor.u32 %v3308, 2147483648
    %v3317 = vxor.u32 %v3309, 2147483648
    %v3318 = vxor.u32 %v3310, 2147483648
    %v3319 = vxor.u32 %v3312, 2147483648
    %v3320 = vxor.u32 %v3313, 2147483648
    %v3321 = vxor.u32 %v3314, 2147483648
    %v3322 = vmul.f32 %v3316, 1.442695
    %v3323 = vpow.pop %v3322
    %v3324 = vmul.f32 %v3317, 1.442695
    %v3325 = vpow.pop %v3324
    %v3326 = vmul.f32 %v3318, 1.442695
    %v3327 = vpow.pop %v3326
    %v3328 = vmul.f32 %v3319, 1.442695
    %v3329 = vpow.pop %v3328
    %v3330 = vmul.f32 %v3320, 1.442695
    %v3331 = vpow.pop %v3330
    %v3332 = vmul.f32 %v3321, 1.442695
    %v3333 = vpow.pop %v3332
    %v3334 = vadd.f32 %v3323, 1.0
    %v3335 = vadd.f32 %v3325, 1.0
    %v3336 = vadd.f32 %v3327, 1.0
    %v3337 = vadd.f32 %v3329, 1.0
    %v3338 = vadd.f32 %v3331, 1.0
    %v3339 = vadd.f32 %v3333, 1.0
    %v3340 = vrcp.pop %v3334
    %v3341 = vmul.f32 1.0, %v3340
    %v3342 = vrcp.pop %v3335
    %v3343 = vmul.f32 1.0, %v3342
    %v3344 = vrcp.pop %v3336
    %v3345 = vmul.f32 1.0, %v3344
    %v3346 = vrcp.pop %v3337
    %v3347 = vmul.f32 1.0, %v3346
    %v3348 = vrcp.pop %v3338
    %v3349 = vmul.f32 1.0, %v3348
    %v3350 = vrcp.pop %v3339
    %v3351 = vmul.f32 1.0, %v3350
    %v3352 = vtanh.pop %v3311
    %v3353 = vtanh.pop %v3315
    %v3354 = vmul.f32 %v3343, 0.0
    %v3355 = vmul.f32 %v3349, 0.0
    %v3356 = vmul.f32 %v3341, %v3352
    %v3357 = vmul.f32 %v3347, %v3353
    %v3358 = vadd.f32 %v3354, %v3356
    %v3359 = vadd.f32 %v3355, %v3357
    %v3360 = vtanh.pop %v3358
    %v3361 = vtanh.pop %v3359
    %v3362 = vmul.f32 %v3345, %v3360
    %v3363 = vmul.f32 %v3351, %v3361
    %v3364 = vpack.c.bf16 %v3363, %v3362
    %v3366 = vunpack.c.l.b16 %v3364
    %v3367 = vunpack.c.h.b16 %v3364
    %v3368 = vpack.c.b16 %v3366, %v3366
    %v3369 = vpack.c.b16 %v3367, %v3367
    %3372 = vst [vmem:[#allocation3] sm:$0xf] %v3368
    %3373 = vst [vmem:[#allocation3 + $0x4] sm:$0xf] %v3369
    %v3374 = vld [vmem:[%s1124] sm:$0xff]
    %v3375 = vld [vmem:[%s1124 + $0x8] sm:$0xff]
    %v3376 = vld [vmem:[%s1124 + $0x10] sm:$0xff]
    %v3377 = vld [vmem:[%s1124 + $0x18] sm:$0xff]
    %v3378 = vunpack.c.l.bf16 %v3374
    %v3379 = vunpack.c.h.bf16 %v3374
    %v3380 = vunpack.c.l.bf16 %v3375
    %v3381 = vunpack.c.h.bf16 %v3375
    %v3382 = vunpack.c.l.bf16 %v3376
    %v3383 = vunpack.c.h.bf16 %v3376
    %v3384 = vunpack.c.l.bf16 %v3377
    %v3385 = vunpack.c.h.bf16 %v3377
    %3386 = vmatprep.subr.bf16.mxu0 %v3187
    %3387 = vmatpush1.bf16.msra.mxu0 %v3186
    %3388 = vmatprep.subr.bf16.mxu0 %v3183
    %3389 = vmatpush1.bf16.msra.mxu0 %v3182
    %3390 = vmatprep.subr.bf16.mxu0 %v3179
    %3391 = vmatpush1.bf16.msra.mxu0 %v3178
    %3392 = vmatprep.subr.bf16.mxu0 %v3175
    %3393 = vmatpush1.bf16.msra.mxu0 %v3174
    %3394 = vmatprep.subr.bf16.mxu0 %v3171
    %3395 = vmatpush1.bf16.msra.mxu0 %v3170
    %3396 = vmatprep.subr.bf16.mxu0 %v3167
    %3397 = vmatpush1.bf16.msra.mxu0 %v3166
    %3398 = vmatprep.subr.bf16.mxu0 %v3163
    %3399 = vmatpush1.bf16.msra.mxu0 %v3162
    %3400 = vmatprep.subr.bf16.mxu0 %v3159
    %3401 = vmatpush1.bf16.msra.mxu0 %v3158
    %3402 = vmatprep.subr.bf16.mxu0 0
    %3403 = vmatpush2.bf16.msra.mxu0 0
    %3404 = vmatprep.subr.bf16.mxu0 0
    %3405 = vmatpush2.bf16.msra.mxu0 0
    %3406 = vmatprep.subr.bf16.mxu0 0
    %3407 = vmatpush2.bf16.msra.mxu0 0
    %3408 = vmatprep.subr.bf16.mxu0 0
    %3409 = vmatpush2.bf16.msra.mxu0 0
    %3410 = vmatprep.subr.bf16.mxu0 0
    %3411 = vmatpush2.bf16.msra.mxu0 0
    %3412 = vmatprep.subr.bf16.mxu0 0
    %3413 = vmatpush2.bf16.msra.mxu0 0
    %3414 = vmatprep.subr.bf16.mxu0 0
    %3415 = vmatpush2.bf16.msra.mxu0 0
    %3416 = vmatprep.subr.bf16.mxu0 0
    %3417 = vmatpush2.bf16.msra.mxu0 0
    %3418 = vmatprep.mubr.bf16.mxu0 0
    %3419 = vmatmul.mubr.bf16.gmra.mxu0 %v3364
    %v3420 = vpop.f32.mrf.mxu0
    %v3421 = vadd.f32 0.0, %v3420
    %v3422 = vpop.f32.mrf.mxu0
    %v3423 = vadd.f32 0.0, %v3422
    %v3424 = vpop.f32.mrf.mxu0
    %v3425 = vadd.f32 0.0, %v3424
    %v3426 = vpop.f32.mrf.mxu0
    %v3427 = vadd.f32 0.0, %v3426
    %3428 = vdwg.mxu0
    %3429 = vmatprep.subr.bf16.mxu0 %v3189
    %3430 = vmatpush1.bf16.msra.mxu0 %v3188
    %3431 = vmatprep.subr.bf16.mxu0 %v3185
    %3432 = vmatpush1.bf16.msra.mxu0 %v3184
    %3433 = vmatprep.subr.bf16.mxu0 %v3181
    %3434 = vmatpush1.bf16.msra.mxu0 %v3180
    %3435 = vmatprep.subr.bf16.mxu0 %v3177
    %3436 = vmatpush1.bf16.msra.mxu0 %v3176
    %3437 = vmatprep.subr.bf16.mxu0 %v3173
    %3438 = vmatpush1.bf16.msra.mxu0 %v3172
    %3439 = vmatprep.subr.bf16.mxu0 %v3169
    %3440 = vmatpush1.bf16.msra.mxu0 %v3168
    %3441 = vmatprep.subr.bf16.mxu0 %v3165
    %3442 = vmatpush1.bf16.msra.mxu0 %v3164
    %3443 = vmatprep.subr.bf16.mxu0 %v3161
    %3444 = vmatpush1.bf16.msra.mxu0 %v3160
    %3445 = vmatprep.subr.bf16.mxu0 0
    %3446 = vmatpush2.bf16.msra.mxu0 0
    %3447 = vmatprep.subr.bf16.mxu0 0
    %3448 = vmatpush2.bf16.msra.mxu0 0
    %3449 = vmatprep.subr.bf16.mxu0 0
    %3450 = vmatpush2.bf16.msra.mxu0 0
    %3451 = vmatprep.subr.bf16.mxu0 0
    %3452 = vmatpush2.bf16.msra.mxu0 0
    %3453 = vmatprep.subr.bf16.mxu0 0
    %3454 = vmatpush2.bf16.msra.mxu0 0
    %3455 = vmatprep.subr.bf16.mxu0 0
    %3456 = vmatpush2.bf16.msra.mxu0 0
    %3457 = vmatprep.subr.bf16.mxu0 0
    %3458 = vmatpush2.bf16.msra.mxu0 0
    %3459 = vmatprep.subr.bf16.mxu0 0
    %3460 = vmatpush2.bf16.msra.mxu0 0
    %3461 = vmatprep.mubr.bf16.mxu0 0
    %3462 = vmatmul.mubr.bf16.gmra.mxu0 %v3364
    %v3463 = vpop.f32.mrf.mxu0
    %v3464 = vadd.f32 0.0, %v3463
    %v3465 = vpop.f32.mrf.mxu0
    %v3466 = vadd.f32 0.0, %v3465
    %v3467 = vpop.f32.mrf.mxu0
    %v3468 = vadd.f32 0.0, %v3467
    %v3469 = vpop.f32.mrf.mxu0
    %v3470 = vadd.f32 0.0, %v3469
    %3471 = vdwg.mxu0
    %v3472 = vadd.f32 %v3378, %v3421
    %v3473 = vadd.f32 %v3379, %v3423
    %v3474 = vadd.f32 %v3380, %v3464
    %v3475 = vadd.f32 %v3381, %v3466
    %v3476 = vadd.f32 %v3382, %v3425
    %v3477 = vadd.f32 %v3383, %v3427
    %v3478 = vadd.f32 %v3384, %v3468
    %v3479 = vadd.f32 %v3385, %v3470
    %v3480 = vxor.u32 %v3472, 2147483648
    %v3481 = vxor.u32 %v3473, 2147483648
    %v3482 = vxor.u32 %v3474, 2147483648
    %v3483 = vxor.u32 %v3476, 2147483648
    %v3484 = vxor.u32 %v3477, 2147483648
    %v3485 = vxor.u32 %v3478, 2147483648
    %v3486 = vmul.f32 %v3480, 1.442695
    %v3487 = vpow.pop %v3486
    %v3488 = vmul.f32 %v3481, 1.442695
    %v3489 = vpow.pop %v3488
    %v3490 = vmul.f32 %v3482, 1.442695
    %v3491 = vpow.pop %v3490
    %v3492 = vmul.f32 %v3483, 1.442695
    %v3493 = vpow.pop %v3492
    %v3494 = vmul.f32 %v3484, 1.442695
    %v3495 = vpow.pop %v3494
    %v3496 = vmul.f32 %v3485, 1.442695
    %v3497 = vpow.pop %v3496
    %v3498 = vadd.f32 %v3487, 1.0
    %v3499 = vadd.f32 %v3489, 1.0
    %v3500 = vadd.f32 %v3491, 1.0
    %v3501 = vadd.f32 %v3493, 1.0
    %v3502 = vadd.f32 %v3495, 1.0
    %v3503 = vadd.f32 %v3497, 1.0
    %v3504 = vrcp.pop %v3498
    %v3505 = vmul.f32 1.0, %v3504
    %v3506 = vrcp.pop %v3499
    %v3507 = vmul.f32 1.0, %v3506
    %v3508 = vrcp.pop %v3500
    %v3509 = vmul.f32 1.0, %v3508
    %v3510 = vrcp.pop %v3501
    %v3511 = vmul.f32 1.0, %v3510
    %v3512 = vrcp.pop %v3502
    %v3513 = vmul.f32 1.0, %v3512
    %v3514 = vrcp.pop %v3503
    %v3515 = vmul.f32 1.0, %v3514
    %v3516 = vtanh.pop %v3475
    %v3517 = vtanh.pop %v3479
    %v3518 = vmul.f32 %v3507, %v3358
    %v3519 = vmul.f32 %v3513, %v3359
    %v3520 = vmul.f32 %v3505, %v3516
    %v3521 = vmul.f32 %v3511, %v3517
    %v3522 = vadd.f32 %v3518, %v3520
    %v3523 = vadd.f32 %v3519, %v3521
    %v3524 = vtanh.pop %v3522
    %v3525 = vtanh.pop %v3523
    %v3526 = vmul.f32 %v3509, %v3524
    %v3527 = vmul.f32 %v3515, %v3525
    %v3528 = vpack.c.bf16 %v3527, %v3526
    %v3530 = vunpack.c.l.b16 %v3528
    %v3531 = vunpack.c.h.b16 %v3528
    %v3532 = vpack.c.b16 %v3530, %v3530
    %v3533 = vpack.c.b16 %v3531, %v3531
    %3536 = vst [vmem:[%s1287] sm:$0xf] %v3532
    %3537 = vst [vmem:[%s1287 + $0x4] sm:$0xf] %v3533
    %v3538 = vld [vmem:[%s1290] sm:$0xff]
    %v3539 = vld [vmem:[%s1290 + $0x8] sm:$0xff]
    %v3540 = vld [vmem:[%s1290 + $0x10] sm:$0xff]
    %v3541 = vld [vmem:[%s1290 + $0x18] sm:$0xff]
    %v3542 = vunpack.c.l.bf16 %v3538
    %v3543 = vunpack.c.h.bf16 %v3538
    %v3544 = vunpack.c.l.bf16 %v3539
    %v3545 = vunpack.c.h.bf16 %v3539
    %v3546 = vunpack.c.l.bf16 %v3540
    %v3547 = vunpack.c.h.bf16 %v3540
    %v3548 = vunpack.c.l.bf16 %v3541
    %v3549 = vunpack.c.h.bf16 %v3541
    %3550 = vmatprep.subr.bf16.mxu0 %v3187
    %3551 = vmatpush1.bf16.msra.mxu0 %v3186
    %3552 = vmatprep.subr.bf16.mxu0 %v3183
    %3553 = vmatpush1.bf16.msra.mxu0 %v3182
    %3554 = vmatprep.subr.bf16.mxu0 %v3179
    %3555 = vmatpush1.bf16.msra.mxu0 %v3178
    %3556 = vmatprep.subr.bf16.mxu0 %v3175
    %3557 = vmatpush1.bf16.msra.mxu0 %v3174
    %3558 = vmatprep.subr.bf16.mxu0 %v3171
    %3559 = vmatpush1.bf16.msra.mxu0 %v3170
    %3560 = vmatprep.subr.bf16.mxu0 %v3167
    %3561 = vmatpush1.bf16.msra.mxu0 %v3166
    %3562 = vmatprep.subr.bf16.mxu0 %v3163
    %3563 = vmatpush1.bf16.msra.mxu0 %v3162
    %3564 = vmatprep.subr.bf16.mxu0 %v3159
    %3565 = vmatpush1.bf16.msra.mxu0 %v3158
    %3566 = vmatprep.subr.bf16.mxu0 0
    %3567 = vmatpush2.bf16.msra.mxu0 0
    %3568 = vmatprep.subr.bf16.mxu0 0
    %3569 = vmatpush2.bf16.msra.mxu0 0
    %3570 = vmatprep.subr.bf16.mxu0 0
    %3571 = vmatpush2.bf16.msra.mxu0 0
    %3572 = vmatprep.subr.bf16.mxu0 0
    %3573 = vmatpush2.bf16.msra.mxu0 0
    %3574 = vmatprep.subr.bf16.mxu0 0
    %3575 = vmatpush2.bf16.msra.mxu0 0
    %3576 = vmatprep.subr.bf16.mxu0 0
    %3577 = vmatpush2.bf16.msra.mxu0 0
    %3578 = vmatprep.subr.bf16.mxu0 0
    %3579 = vmatpush2.bf16.msra.mxu0 0
    %3580 = vmatprep.subr.bf16.mxu0 0
    %3581 = vmatpush2.bf16.msra.mxu0 0
    %3582 = vmatprep.mubr.bf16.mxu0 0
    %3583 = vmatmul.mubr.bf16.gmra.mxu0 %v3528
    %v3584 = vpop.f32.mrf.mxu0
    %v3585 = vadd.f32 0.0, %v3584
    %v3586 = vpop.f32.mrf.mxu0
    %v3587 = vadd.f32 0.0, %v3586
    %v3588 = vpop.f32.mrf.mxu0
    %v3589 = vadd.f32 0.0, %v3588
    %v3590 = vpop.f32.mrf.mxu0
    %v3591 = vadd.f32 0.0, %v3590
    %3592 = vdwg.mxu0
    %3593 = vmatprep.subr.bf16.mxu0 %v3189
    %3594 = vmatpush1.bf16.msra.mxu0 %v3188
    %3595 = vmatprep.subr.bf16.mxu0 %v3185
    %3596 = vmatpush1.bf16.msra.mxu0 %v3184
    %3597 = vmatprep.subr.bf16.mxu0 %v3181
    %3598 = vmatpush1.bf16.msra.mxu0 %v3180
    %3599 = vmatprep.subr.bf16.mxu0 %v3177
    %3600 = vmatpush1.bf16.msra.mxu0 %v3176
    %3601 = vmatprep.subr.bf16.mxu0 %v3173
    %3602 = vmatpush1.bf16.msra.mxu0 %v3172
    %3603 = vmatprep.subr.bf16.mxu0 %v3169
    %3604 = vmatpush1.bf16.msra.mxu0 %v3168
    %3605 = vmatprep.subr.bf16.mxu0 %v3165
    %3606 = vmatpush1.bf16.msra.mxu0 %v3164
    %3607 = vmatprep.subr.bf16.mxu0 %v3161
    %3608 = vmatpush1.bf16.msra.mxu0 %v3160
    %3609 = vmatprep.subr.bf16.mxu0 0
    %3610 = vmatpush2.bf16.msra.mxu0 0
    %3611 = vmatprep.subr.bf16.mxu0 0
    %3612 = vmatpush2.bf16.msra.mxu0 0
    %3613 = vmatprep.subr.bf16.mxu0 0
    %3614 = vmatpush2.bf16.msra.mxu0 0
    %3615 = vmatprep.subr.bf16.mxu0 0
    %3616 = vmatpush2.bf16.msra.mxu0 0
    %3617 = vmatprep.subr.bf16.mxu0 0
    %3618 = vmatpush2.bf16.msra.mxu0 0
    %3619 = vmatprep.subr.bf16.mxu0 0
    %3620 = vmatpush2.bf16.msra.mxu0 0
    %3621 = vmatprep.subr.bf16.mxu0 0
    %3622 = vmatpush2.bf16.msra.mxu0 0
    %3623 = vmatprep.subr.bf16.mxu0 0
    %3624 = vmatpush2.bf16.msra.mxu0 0
    %3625 = vmatprep.mubr.bf16.mxu0 0
    %3626 = vmatmul.mubr.bf16.gmra.mxu0 %v3528
    %v3627 = vpop.f32.mrf.mxu0
    %v3628 = vadd.f32 0.0, %v3627
    %v3629 = vpop.f32.mrf.mxu0
    %v3630 = vadd.f32 0.0, %v3629
    %v3631 = vpop.f32.mrf.mxu0
    %v3632 = vadd.f32 0.0, %v3631
    %v3633 = vpop.f32.mrf.mxu0
    %v3634 = vadd.f32 0.0, %v3633
    %3635 = vdwg.mxu0
    %v3636 = vadd.f32 %v3542, %v3585
    %v3637 = vadd.f32 %v3543, %v3587
    %v3638 = vadd.f32 %v3544, %v3628
    %v3639 = vadd.f32 %v3545, %v3630
    %v3640 = vadd.f32 %v3546, %v3589
    %v3641 = vadd.f32 %v3547, %v3591
    %v3642 = vadd.f32 %v3548, %v3632
    %v3643 = vadd.f32 %v3549, %v3634
    %v3644 = vxor.u32 %v3636, 2147483648
    %v3645 = vxor.u32 %v3637, 2147483648
    %v3646 = vxor.u32 %v3638, 2147483648
    %v3647 = vxor.u32 %v3640, 2147483648
    %v3648 = vxor.u32 %v3641, 2147483648
    %v3649 = vxor.u32 %v3642, 2147483648
    %v3650 = vmul.f32 %v3644, 1.442695
    %v3651 = vpow.pop %v3650
    %v3652 = vmul.f32 %v3645, 1.442695
    %v3653 = vpow.pop %v3652
    %v3654 = vmul.f32 %v3646, 1.442695
    %v3655 = vpow.pop %v3654
    %v3656 = vmul.f32 %v3647, 1.442695
    %v3657 = vpow.pop %v3656
    %v3658 = vmul.f32 %v3648, 1.442695
    %v3659 = vpow.pop %v3658
    %v3660 = vmul.f32 %v3649, 1.442695
    %v3661 = vpow.pop %v3660
    %v3662 = vadd.f32 %v3651, 1.0
    %v3663 = vadd.f32 %v3653, 1.0
    %v3664 = vadd.f32 %v3655, 1.0
    %v3665 = vadd.f32 %v3657, 1.0
    %v3666 = vadd.f32 %v3659, 1.0
    %v3667 = vadd.f32 %v3661, 1.0
    %v3668 = vrcp.pop %v3662
    %v3669 = vmul.f32 1.0, %v3668
    %v3670 = vrcp.pop %v3663
    %v3671 = vmul.f32 1.0, %v3670
    %v3672 = vrcp.pop %v3664
    %v3673 = vmul.f32 1.0, %v3672
    %v3674 = vrcp.pop %v3665
    %v3675 = vmul.f32 1.0, %v3674
    %v3676 = vrcp.pop %v3666
    %v3677 = vmul.f32 1.0, %v3676
    %v3678 = vrcp.pop %v3667
    %v3679 = vmul.f32 1.0, %v3678
    %v3680 = vtanh.pop %v3639
    %v3681 = vtanh.pop %v3643
    %v3682 = vmul.f32 %v3671, %v3522
    %v3683 = vmul.f32 %v3677, %v3523
    %v3684 = vmul.f32 %v3669, %v3680
    %v3685 = vmul.f32 %v3675, %v3681
    %v3686 = vadd.f32 %v3682, %v3684
    %v3687 = vadd.f32 %v3683, %v3685
    %v3688 = vtanh.pop %v3686
    %v3689 = vtanh.pop %v3687
    %v3690 = vmul.f32 %v3673, %v3688
    %v3691 = vmul.f32 %v3679, %v3689
    %v3692 = vpack.c.bf16 %v3691, %v3690
    %v3694 = vunpack.c.l.b16 %v3692
    %v3695 = vunpack.c.h.b16 %v3692
    %v3696 = vpack.c.b16 %v3694, %v3694
    %v3697 = vpack.c.b16 %v3695, %v3695
    %3700 = vst [vmem:[%s1453] sm:$0xf] %v3696
    %3701 = vst [vmem:[%s1453 + $0x4] sm:$0xf] %v3697
    %v3702 = vld [vmem:[%s1456] sm:$0xff]
    %v3703 = vld [vmem:[%s1456 + $0x8] sm:$0xff]
    %v3704 = vld [vmem:[%s1456 + $0x10] sm:$0xff]
    %v3705 = vld [vmem:[%s1456 + $0x18] sm:$0xff]
    %v3706 = vunpack.c.l.bf16 %v3702
    %v3707 = vunpack.c.h.bf16 %v3702
    %v3708 = vunpack.c.l.bf16 %v3703
    %v3709 = vunpack.c.h.bf16 %v3703
    %v3710 = vunpack.c.l.bf16 %v3704
    %v3711 = vunpack.c.h.bf16 %v3704
    %v3712 = vunpack.c.l.bf16 %v3705
    %v3713 = vunpack.c.h.bf16 %v3705
    %3714 = vmatprep.subr.bf16.mxu0 %v3187
    %3715 = vmatpush1.bf16.msra.mxu0 %v3186
    %3716 = vmatprep.subr.bf16.mxu0 %v3183
    %3717 = vmatpush1.bf16.msra.mxu0 %v3182
    %3718 = vmatprep.subr.bf16.mxu0 %v3179
    %3719 = vmatpush1.bf16.msra.mxu0 %v3178
    %3720 = vmatprep.subr.bf16.mxu0 %v3175
    %3721 = vmatpush1.bf16.msra.mxu0 %v3174
    %3722 = vmatprep.subr.bf16.mxu0 %v3171
    %3723 = vmatpush1.bf16.msra.mxu0 %v3170
    %3724 = vmatprep.subr.bf16.mxu0 %v3167
    %3725 = vmatpush1.bf16.msra.mxu0 %v3166
    %3726 = vmatprep.subr.bf16.mxu0 %v3163
    %3727 = vmatpush1.bf16.msra.mxu0 %v3162
    %3728 = vmatprep.subr.bf16.mxu0 %v3159
    %3729 = vmatpush1.bf16.msra.mxu0 %v3158
    %3730 = vmatprep.subr.bf16.mxu0 0
    %3731 = vmatpush2.bf16.msra.mxu0 0
    %3732 = vmatprep.subr.bf16.mxu0 0
    %3733 = vmatpush2.bf16.msra.mxu0 0
    %3734 = vmatprep.subr.bf16.mxu0 0
    %3735 = vmatpush2.bf16.msra.mxu0 0
    %3736 = vmatprep.subr.bf16.mxu0 0
    %3737 = vmatpush2.bf16.msra.mxu0 0
    %3738 = vmatprep.subr.bf16.mxu0 0
    %3739 = vmatpush2.bf16.msra.mxu0 0
    %3740 = vmatprep.subr.bf16.mxu0 0
    %3741 = vmatpush2.bf16.msra.mxu0 0
    %3742 = vmatprep.subr.bf16.mxu0 0
    %3743 = vmatpush2.bf16.msra.mxu0 0
    %3744 = vmatprep.subr.bf16.mxu0 0
    %3745 = vmatpush2.bf16.msra.mxu0 0
    %3746 = vmatprep.mubr.bf16.mxu0 0
    %3747 = vmatmul.mubr.bf16.gmra.mxu0 %v3692
    %v3748 = vpop.f32.mrf.mxu0
    %v3749 = vadd.f32 0.0, %v3748
    %v3750 = vpop.f32.mrf.mxu0
    %v3751 = vadd.f32 0.0, %v3750
    %v3752 = vpop.f32.mrf.mxu0
    %v3753 = vadd.f32 0.0, %v3752
    %v3754 = vpop.f32.mrf.mxu0
    %v3755 = vadd.f32 0.0, %v3754
    %3756 = vdwg.mxu0
    %3757 = vmatprep.subr.bf16.mxu0 %v3189
    %3758 = vmatpush1.bf16.msra.mxu0 %v3188
    %3759 = vmatprep.subr.bf16.mxu0 %v3185
    %3760 = vmatpush1.bf16.msra.mxu0 %v3184
    %3761 = vmatprep.subr.bf16.mxu0 %v3181
    %3762 = vmatpush1.bf16.msra.mxu0 %v3180
    %3763 = vmatprep.subr.bf16.mxu0 %v3177
    %3764 = vmatpush1.bf16.msra.mxu0 %v3176
    %3765 = vmatprep.subr.bf16.mxu0 %v3173
    %3766 = vmatpush1.bf16.msra.mxu0 %v3172
    %3767 = vmatprep.subr.bf16.mxu0 %v3169
    %3768 = vmatpush1.bf16.msra.mxu0 %v3168
    %3769 = vmatprep.subr.bf16.mxu0 %v3165
    %3770 = vmatpush1.bf16.msra.mxu0 %v3164
    %3771 = vmatprep.subr.bf16.mxu0 %v3161
    %3772 = vmatpush1.bf16.msra.mxu0 %v3160
    %3773 = vmatprep.subr.bf16.mxu0 0
    %3774 = vmatpush2.bf16.msra.mxu0 0
    %3775 = vmatprep.subr.bf16.mxu0 0
    %3776 = vmatpush2.bf16.msra.mxu0 0
    %3777 = vmatprep.subr.bf16.mxu0 0
    %3778 = vmatpush2.bf16.msra.mxu0 0
    %3779 = vmatprep.subr.bf16.mxu0 0
    %3780 = vmatpush2.bf16.msra.mxu0 0
    %3781 = vmatprep.subr.bf16.mxu0 0
    %3782 = vmatpush2.bf16.msra.mxu0 0
    %3783 = vmatprep.subr.bf16.mxu0 0
    %3784 = vmatpush2.bf16.msra.mxu0 0
    %3785 = vmatprep.subr.bf16.mxu0 0
    %3786 = vmatpush2.bf16.msra.mxu0 0
    %3787 = vmatprep.subr.bf16.mxu0 0
    %3788 = vmatpush2.bf16.msra.mxu0 0
    %3789 = vmatprep.mubr.bf16.mxu0 0
    %3790 = vmatmul.mubr.bf16.gmra.mxu0 %v3692
    %v3791 = vpop.f32.mrf.mxu0
    %v3792 = vadd.f32 0.0, %v3791
    %v3793 = vpop.f32.mrf.mxu0
    %v3794 = vadd.f32 0.0, %v3793
    %v3795 = vpop.f32.mrf.mxu0
    %v3796 = vadd.f32 0.0, %v3795
    %v3797 = vpop.f32.mrf.mxu0
    %v3798 = vadd.f32 0.0, %v3797
    %3799 = vdwg.mxu0
    %v3800 = vadd.f32 %v3706, %v3749
    %v3801 = vadd.f32 %v3707, %v3751
    %v3802 = vadd.f32 %v3708, %v3792
    %v3803 = vadd.f32 %v3709, %v3794
    %v3804 = vadd.f32 %v3710, %v3753
    %v3805 = vadd.f32 %v3711, %v3755
    %v3806 = vadd.f32 %v3712, %v3796
    %v3807 = vadd.f32 %v3713, %v3798
    %v3808 = vxor.u32 %v3800, 2147483648
    %v3809 = vxor.u32 %v3801, 2147483648
    %v3810 = vxor.u32 %v3802, 2147483648
    %v3811 = vxor.u32 %v3804, 2147483648
    %v3812 = vxor.u32 %v3805, 2147483648
    %v3813 = vxor.u32 %v3806, 2147483648
    %v3814 = vmul.f32 %v3808, 1.442695
    %v3815 = vpow.pop %v3814
    %v3816 = vmul.f32 %v3809, 1.442695
    %v3817 = vpow.pop %v3816
    %v3818 = vmul.f32 %v3810, 1.442695
    %v3819 = vpow.pop %v3818
    %v3820 = vmul.f32 %v3811, 1.442695
    %v3821 = vpow.pop %v3820
    %v3822 = vmul.f32 %v3812, 1.442695
    %v3823 = vpow.pop %v3822
    %v3824 = vmul.f32 %v3813, 1.442695
    %v3825 = vpow.pop %v3824
    %v3826 = vadd.f32 %v3815, 1.0
    %v3827 = vadd.f32 %v3817, 1.0
    %v3828 = vadd.f32 %v3819, 1.0
    %v3829 = vadd.f32 %v3821, 1.0
    %v3830 = vadd.f32 %v3823, 1.0
    %v3831 = vadd.f32 %v3825, 1.0
    %v3832 = vrcp.pop %v3826
    %v3833 = vmul.f32 1.0, %v3832
    %v3834 = vrcp.pop %v3827
    %v3835 = vmul.f32 1.0, %v3834
    %v3836 = vrcp.pop %v3828
    %v3837 = vmul.f32 1.0, %v3836
    %v3838 = vrcp.pop %v3829
    %v3839 = vmul.f32 1.0, %v3838
    %v3840 = vrcp.pop %v3830
    %v3841 = vmul.f32 1.0, %v3840
    %v3842 = vrcp.pop %v3831
    %v3843 = vmul.f32 1.0, %v3842
    %v3844 = vtanh.pop %v3803
    %v3845 = vtanh.pop %v3807
    %v3846 = vmul.f32 %v3835, %v3686
    %v3847 = vmul.f32 %v3841, %v3687
    %v3848 = vmul.f32 %v3833, %v3844
    %v3849 = vmul.f32 %v3839, %v3845
    %v3850 = vadd.f32 %v3846, %v3848
    %v3851 = vadd.f32 %v3847, %v3849
    %v3852 = vtanh.pop %v3850
    %v3853 = vtanh.pop %v3851
    %v3854 = vmul.f32 %v3837, %v3852
    %v3855 = vmul.f32 %v3843, %v3853
    %v3856 = vpack.c.bf16 %v3855, %v3854
    %v3858 = vunpack.c.l.b16 %v3856
    %v3859 = vunpack.c.h.b16 %v3856
    %v3860 = vpack.c.b16 %v3858, %v3858
    %v3861 = vpack.c.b16 %v3859, %v3859
    %3864 = vst [vmem:[%s1619] sm:$0xf] %v3860
    %3865 = vst [vmem:[%s1619 + $0x4] sm:$0xf] %v3861
    %v3866 = vld [vmem:[%s1622] sm:$0xff]
    %v3867 = vld [vmem:[%s1622 + $0x8] sm:$0xff]
    %v3868 = vld [vmem:[%s1622 + $0x10] sm:$0xff]
    %v3869 = vld [vmem:[%s1622 + $0x18] sm:$0xff]
    %v3870 = vunpack.c.l.bf16 %v3866
    %v3871 = vunpack.c.h.bf16 %v3866
    %v3872 = vunpack.c.l.bf16 %v3867
    %v3873 = vunpack.c.h.bf16 %v3867
    %v3874 = vunpack.c.l.bf16 %v3868
    %v3875 = vunpack.c.h.bf16 %v3868
    %v3876 = vunpack.c.l.bf16 %v3869
    %v3877 = vunpack.c.h.bf16 %v3869
    %3878 = vmatprep.subr.bf16.mxu0 %v3187
    %3879 = vmatpush1.bf16.msra.mxu0 %v3186
    %3880 = vmatprep.subr.bf16.mxu0 %v3183
    %3881 = vmatpush1.bf16.msra.mxu0 %v3182
    %3882 = vmatprep.subr.bf16.mxu0 %v3179
    %3883 = vmatpush1.bf16.msra.mxu0 %v3178
    %3884 = vmatprep.subr.bf16.mxu0 %v3175
    %3885 = vmatpush1.bf16.msra.mxu0 %v3174
    %3886 = vmatprep.subr.bf16.mxu0 %v3171
    %3887 = vmatpush1.bf16.msra.mxu0 %v3170
    %3888 = vmatprep.subr.bf16.mxu0 %v3167
    %3889 = vmatpush1.bf16.msra.mxu0 %v3166
    %3890 = vmatprep.subr.bf16.mxu0 %v3163
    %3891 = vmatpush1.bf16.msra.mxu0 %v3162
    %3892 = vmatprep.subr.bf16.mxu0 %v3159
    %3893 = vmatpush1.bf16.msra.mxu0 %v3158
    %3894 = vmatprep.subr.bf16.mxu0 0
    %3895 = vmatpush2.bf16.msra.mxu0 0
    %3896 = vmatprep.subr.bf16.mxu0 0
    %3897 = vmatpush2.bf16.msra.mxu0 0
    %3898 = vmatprep.subr.bf16.mxu0 0
    %3899 = vmatpush2.bf16.msra.mxu0 0
    %3900 = vmatprep.subr.bf16.mxu0 0
    %3901 = vmatpush2.bf16.msra.mxu0 0
    %3902 = vmatprep.subr.bf16.mxu0 0
    %3903 = vmatpush2.bf16.msra.mxu0 0
    %3904 = vmatprep.subr.bf16.mxu0 0
    %3905 = vmatpush2.bf16.msra.mxu0 0
    %3906 = vmatprep.subr.bf16.mxu0 0
    %3907 = vmatpush2.bf16.msra.mxu0 0
    %3908 = vmatprep.subr.bf16.mxu0 0
    %3909 = vmatpush2.bf16.msra.mxu0 0
    %3910 = vmatprep.mubr.bf16.mxu0 0
    %3911 = vmatmul.mubr.bf16.gmra.mxu0 %v3856
    %v3912 = vpop.f32.mrf.mxu0
    %v3913 = vadd.f32 0.0, %v3912
    %v3914 = vpop.f32.mrf.mxu0
    %v3915 = vadd.f32 0.0, %v3914
    %v3916 = vpop.f32.mrf.mxu0
    %v3917 = vadd.f32 0.0, %v3916
    %v3918 = vpop.f32.mrf.mxu0
    %v3919 = vadd.f32 0.0, %v3918
    %3920 = vdwg.mxu0
    %3921 = vmatprep.subr.bf16.mxu0 %v3189
    %3922 = vmatpush1.bf16.msra.mxu0 %v3188
    %3923 = vmatprep.subr.bf16.mxu0 %v3185
    %3924 = vmatpush1.bf16.msra.mxu0 %v3184
    %3925 = vmatprep.subr.bf16.mxu0 %v3181
    %3926 = vmatpush1.bf16.msra.mxu0 %v3180
    %3927 = vmatprep.subr.bf16.mxu0 %v3177
    %3928 = vmatpush1.bf16.msra.mxu0 %v3176
    %3929 = vmatprep.subr.bf16.mxu0 %v3173
    %3930 = vmatpush1.bf16.msra.mxu0 %v3172
    %3931 = vmatprep.subr.bf16.mxu0 %v3169
    %3932 = vmatpush1.bf16.msra.mxu0 %v3168
    %3933 = vmatprep.subr.bf16.mxu0 %v3165
    %3934 = vmatpush1.bf16.msra.mxu0 %v3164
    %3935 = vmatprep.subr.bf16.mxu0 %v3161
    %3936 = vmatpush1.bf16.msra.mxu0 %v3160
    %3937 = vmatprep.subr.bf16.mxu0 0
    %3938 = vmatpush2.bf16.msra.mxu0 0
    %3939 = vmatprep.subr.bf16.mxu0 0
    %3940 = vmatpush2.bf16.msra.mxu0 0
    %3941 = vmatprep.subr.bf16.mxu0 0
    %3942 = vmatpush2.bf16.msra.mxu0 0
    %3943 = vmatprep.subr.bf16.mxu0 0
    %3944 = vmatpush2.bf16.msra.mxu0 0
    %3945 = vmatprep.subr.bf16.mxu0 0
    %3946 = vmatpush2.bf16.msra.mxu0 0
    %3947 = vmatprep.subr.bf16.mxu0 0
    %3948 = vmatpush2.bf16.msra.mxu0 0
    %3949 = vmatprep.subr.bf16.mxu0 0
    %3950 = vmatpush2.bf16.msra.mxu0 0
    %3951 = vmatprep.subr.bf16.mxu0 0
    %3952 = vmatpush2.bf16.msra.mxu0 0
    %3953 = vmatprep.mubr.bf16.mxu0 0
    %3954 = vmatmul.mubr.bf16.gmra.mxu0 %v3856
    %v3955 = vpop.f32.mrf.mxu0
    %v3956 = vadd.f32 0.0, %v3955
    %v3957 = vpop.f32.mrf.mxu0
    %v3958 = vadd.f32 0.0, %v3957
    %v3959 = vpop.f32.mrf.mxu0
    %v3960 = vadd.f32 0.0, %v3959
    %v3961 = vpop.f32.mrf.mxu0
    %v3962 = vadd.f32 0.0, %v3961
    %3963 = vdwg.mxu0
    %v3964 = vadd.f32 %v3870, %v3913
    %v3965 = vadd.f32 %v3871, %v3915
    %v3966 = vadd.f32 %v3872, %v3956
    %v3967 = vadd.f32 %v3873, %v3958
    %v3968 = vadd.f32 %v3874, %v3917
    %v3969 = vadd.f32 %v3875, %v3919
    %v3970 = vadd.f32 %v3876, %v3960
    %v3971 = vadd.f32 %v3877, %v3962
    %v3972 = vxor.u32 %v3964, 2147483648
    %v3973 = vxor.u32 %v3965, 2147483648
    %v3974 = vxor.u32 %v3966, 2147483648
    %v3975 = vxor.u32 %v3968, 2147483648
    %v3976 = vxor.u32 %v3969, 2147483648
    %v3977 = vxor.u32 %v3970, 2147483648
    %v3978 = vmul.f32 %v3972, 1.442695
    %v3979 = vpow.pop %v3978
    %v3980 = vmul.f32 %v3973, 1.442695
    %v3981 = vpow.pop %v3980
    %v3982 = vmul.f32 %v3974, 1.442695
    %v3983 = vpow.pop %v3982
    %v3984 = vmul.f32 %v3975, 1.442695
    %v3985 = vpow.pop %v3984
    %v3986 = vmul.f32 %v3976, 1.442695
    %v3987 = vpow.pop %v3986
    %v3988 = vmul.f32 %v3977, 1.442695
    %v3989 = vpow.pop %v3988
    %v3990 = vadd.f32 %v3979, 1.0
    %v3991 = vadd.f32 %v3981, 1.0
    %v3992 = vadd.f32 %v3983, 1.0
    %v3993 = vadd.f32 %v3985, 1.0
    %v3994 = vadd.f32 %v3987, 1.0
    %v3995 = vadd.f32 %v3989, 1.0
    %v3996 = vrcp.pop %v3990
    %v3997 = vmul.f32 1.0, %v3996
    %v3998 = vrcp.pop %v3991
    %v3999 = vmul.f32 1.0, %v3998
    %v4000 = vrcp.pop %v3992
    %v4001 = vmul.f32 1.0, %v4000
    %v4002 = vrcp.pop %v3993
    %v4003 = vmul.f32 1.0, %v4002
    %v4004 = vrcp.pop %v3994
    %v4005 = vmul.f32 1.0, %v4004
    %v4006 = vrcp.pop %v3995
    %v4007 = vmul.f32 1.0, %v4006
    %v4008 = vtanh.pop %v3967
    %v4009 = vtanh.pop %v3971
    %v4010 = vmul.f32 %v3999, %v3850
    %v4011 = vmul.f32 %v4005, %v3851
    %v4012 = vmul.f32 %v3997, %v4008
    %v4013 = vmul.f32 %v4003, %v4009
    %v4014 = vadd.f32 %v4010, %v4012
    %v4015 = vadd.f32 %v4011, %v4013
    %v4016 = vtanh.pop %v4014
    %v4017 = vtanh.pop %v4015
    %v4018 = vmul.f32 %v4001, %v4016
    %v4019 = vmul.f32 %v4007, %v4017
    %v4020 = vpack.c.bf16 %v4019, %v4018
    %v4022 = vunpack.c.l.b16 %v4020
    %v4023 = vunpack.c.h.b16 %v4020
    %v4024 = vpack.c.b16 %v4022, %v4022
    %v4025 = vpack.c.b16 %v4023, %v4023
    %4028 = vst [vmem:[%s1785] sm:$0xf] %v4024
    %4029 = vst [vmem:[%s1785 + $0x4] sm:$0xf] %v4025
    %v4030 = vld [vmem:[%s1788] sm:$0xff]
    %v4031 = vld [vmem:[%s1788 + $0x8] sm:$0xff]
    %v4032 = vld [vmem:[%s1788 + $0x10] sm:$0xff]
    %v4033 = vld [vmem:[%s1788 + $0x18] sm:$0xff]
    %v4034 = vunpack.c.l.bf16 %v4030
    %v4035 = vunpack.c.h.bf16 %v4030
    %v4036 = vunpack.c.l.bf16 %v4031
    %v4037 = vunpack.c.h.bf16 %v4031
    %v4038 = vunpack.c.l.bf16 %v4032
    %v4039 = vunpack.c.h.bf16 %v4032
    %v4040 = vunpack.c.l.bf16 %v4033
    %v4041 = vunpack.c.h.bf16 %v4033
    %4042 = vmatprep.subr.bf16.mxu0 %v3187
    %4043 = vmatpush1.bf16.msra.mxu0 %v3186
    %4044 = vmatprep.subr.bf16.mxu0 %v3183
    %4045 = vmatpush1.bf16.msra.mxu0 %v3182
    %4046 = vmatprep.subr.bf16.mxu0 %v3179
    %4047 = vmatpush1.bf16.msra.mxu0 %v3178
    %4048 = vmatprep.subr.bf16.mxu0 %v3175
    %4049 = vmatpush1.bf16.msra.mxu0 %v3174
    %4050 = vmatprep.subr.bf16.mxu0 %v3171
    %4051 = vmatpush1.bf16.msra.mxu0 %v3170
    %4052 = vmatprep.subr.bf16.mxu0 %v3167
    %4053 = vmatpush1.bf16.msra.mxu0 %v3166
    %4054 = vmatprep.subr.bf16.mxu0 %v3163
    %4055 = vmatpush1.bf16.msra.mxu0 %v3162
    %4056 = vmatprep.subr.bf16.mxu0 %v3159
    %4057 = vmatpush1.bf16.msra.mxu0 %v3158
    %4058 = vmatprep.subr.bf16.mxu0 0
    %4059 = vmatpush2.bf16.msra.mxu0 0
    %4060 = vmatprep.subr.bf16.mxu0 0
    %4061 = vmatpush2.bf16.msra.mxu0 0
    %4062 = vmatprep.subr.bf16.mxu0 0
    %4063 = vmatpush2.bf16.msra.mxu0 0
    %4064 = vmatprep.subr.bf16.mxu0 0
    %4065 = vmatpush2.bf16.msra.mxu0 0
    %4066 = vmatprep.subr.bf16.mxu0 0
    %4067 = vmatpush2.bf16.msra.mxu0 0
    %4068 = vmatprep.subr.bf16.mxu0 0
    %4069 = vmatpush2.bf16.msra.mxu0 0
    %4070 = vmatprep.subr.bf16.mxu0 0
    %4071 = vmatpush2.bf16.msra.mxu0 0
    %4072 = vmatprep.subr.bf16.mxu0 0
    %4073 = vmatpush2.bf16.msra.mxu0 0
    %4074 = vmatprep.mubr.bf16.mxu0 0
    %4075 = vmatmul.mubr.bf16.gmra.mxu0 %v4020
    %v4076 = vpop.f32.mrf.mxu0
    %v4077 = vadd.f32 0.0, %v4076
    %v4078 = vpop.f32.mrf.mxu0
    %v4079 = vadd.f32 0.0, %v4078
    %v4080 = vpop.f32.mrf.mxu0
    %v4081 = vadd.f32 0.0, %v4080
    %v4082 = vpop.f32.mrf.mxu0
    %v4083 = vadd.f32 0.0, %v4082
    %4084 = vdwg.mxu0
    %4085 = vmatprep.subr.bf16.mxu0 %v3189
    %4086 = vmatpush1.bf16.msra.mxu0 %v3188
    %4087 = vmatprep.subr.bf16.mxu0 %v3185
    %4088 = vmatpush1.bf16.msra.mxu0 %v3184
    %4089 = vmatprep.subr.bf16.mxu0 %v3181
    %4090 = vmatpush1.bf16.msra.mxu0 %v3180
    %4091 = vmatprep.subr.bf16.mxu0 %v3177
    %4092 = vmatpush1.bf16.msra.mxu0 %v3176
    %4093 = vmatprep.subr.bf16.mxu0 %v3173
    %4094 = vmatpush1.bf16.msra.mxu0 %v3172
    %4095 = vmatprep.subr.bf16.mxu0 %v3169
    %4096 = vmatpush1.bf16.msra.mxu0 %v3168
    %4097 = vmatprep.subr.bf16.mxu0 %v3165
    %4098 = vmatpush1.bf16.msra.mxu0 %v3164
    %4099 = vmatprep.subr.bf16.mxu0 %v3161
    %4100 = vmatpush1.bf16.msra.mxu0 %v3160
    %4101 = vmatprep.subr.bf16.mxu0 0
    %4102 = vmatpush2.bf16.msra.mxu0 0
    %4103 = vmatprep.subr.bf16.mxu0 0
    %4104 = vmatpush2.bf16.msra.mxu0 0
    %4105 = vmatprep.subr.bf16.mxu0 0
    %4106 = vmatpush2.bf16.msra.mxu0 0
    %4107 = vmatprep.subr.bf16.mxu0 0
    %4108 = vmatpush2.bf16.msra.mxu0 0
    %4109 = vmatprep.subr.bf16.mxu0 0
    %4110 = vmatpush2.bf16.msra.mxu0 0
    %4111 = vmatprep.subr.bf16.mxu0 0
    %4112 = vmatpush2.bf16.msra.mxu0 0
    %4113 = vmatprep.subr.bf16.mxu0 0
    %4114 = vmatpush2.bf16.msra.mxu0 0
    %4115 = vmatprep.subr.bf16.mxu0 0
    %4116 = vmatpush2.bf16.msra.mxu0 0
    %4117 = vmatprep.mubr.bf16.mxu0 0
    %4118 = vmatmul.mubr.bf16.gmra.mxu0 %v4020
    %v4119 = vpop.f32.mrf.mxu0
    %v4120 = vadd.f32 0.0, %v4119
    %v4121 = vpop.f32.mrf.mxu0
    %v4122 = vadd.f32 0.0, %v4121
    %v4123 = vpop.f32.mrf.mxu0
    %v4124 = vadd.f32 0.0, %v4123
    %v4125 = vpop.f32.mrf.mxu0
    %v4126 = vadd.f32 0.0, %v4125
    %4127 = vdwg.mxu0
    %v4128 = vadd.f32 %v4034, %v4077
    %v4129 = vadd.f32 %v4035, %v4079
    %v4130 = vadd.f32 %v4036, %v4120
    %v4131 = vadd.f32 %v4037, %v4122
    %v4132 = vadd.f32 %v4038, %v4081
    %v4133 = vadd.f32 %v4039, %v4083
    %v4134 = vadd.f32 %v4040, %v4124
    %v4135 = vadd.f32 %v4041, %v4126
    %v4136 = vxor.u32 %v4128, 2147483648
    %v4137 = vxor.u32 %v4129, 2147483648
    %v4138 = vxor.u32 %v4130, 2147483648
    %v4139 = vxor.u32 %v4132, 2147483648
    %v4140 = vxor.u32 %v4133, 2147483648
    %v4141 = vxor.u32 %v4134, 2147483648
    %v4142 = vmul.f32 %v4136, 1.442695
    %v4143 = vpow.pop %v4142
    %v4144 = vmul.f32 %v4137, 1.442695
    %v4145 = vpow.pop %v4144
    %v4146 = vmul.f32 %v4138, 1.442695
    %v4147 = vpow.pop %v4146
    %v4148 = vmul.f32 %v4139, 1.442695
    %v4149 = vpow.pop %v4148
    %v4150 = vmul.f32 %v4140, 1.442695
    %v4151 = vpow.pop %v4150
    %v4152 = vmul.f32 %v4141, 1.442695
    %v4153 = vpow.pop %v4152
    %v4154 = vadd.f32 %v4143, 1.0
    %v4155 = vadd.f32 %v4145, 1.0
    %v4156 = vadd.f32 %v4147, 1.0
    %v4157 = vadd.f32 %v4149, 1.0
    %v4158 = vadd.f32 %v4151, 1.0
    %v4159 = vadd.f32 %v4153, 1.0
    %v4160 = vrcp.pop %v4154
    %v4161 = vmul.f32 1.0, %v4160
    %v4162 = vrcp.pop %v4155
    %v4163 = vmul.f32 1.0, %v4162
    %v4164 = vrcp.pop %v4156
    %v4165 = vmul.f32 1.0, %v4164
    %v4166 = vrcp.pop %v4157
    %v4167 = vmul.f32 1.0, %v4166
    %v4168 = vrcp.pop %v4158
    %v4169 = vmul.f32 1.0, %v4168
    %v4170 = vrcp.pop %v4159
    %v4171 = vmul.f32 1.0, %v4170
    %v4172 = vtanh.pop %v4131
    %v4173 = vtanh.pop %v4135
    %v4174 = vmul.f32 %v4163, %v4014
    %v4175 = vmul.f32 %v4169, %v4015
    %v4176 = vmul.f32 %v4161, %v4172
    %v4177 = vmul.f32 %v4167, %v4173
    %v4178 = vadd.f32 %v4174, %v4176
    %v4179 = vadd.f32 %v4175, %v4177
    %v4180 = vtanh.pop %v4178
    %v4181 = vtanh.pop %v4179
    %v4182 = vmul.f32 %v4165, %v4180
    %v4183 = vmul.f32 %v4171, %v4181
    %v4184 = vpack.c.bf16 %v4183, %v4182
    %v4186 = vunpack.c.l.b16 %v4184
    %v4187 = vunpack.c.h.b16 %v4184
    %v4188 = vpack.c.b16 %v4186, %v4186
    %v4189 = vpack.c.b16 %v4187, %v4187
    %4192 = vst [vmem:[%s1951] sm:$0xf] %v4188
    %4193 = vst [vmem:[%s1951 + $0x4] sm:$0xf] %v4189
    %v4194 = vld [vmem:[%s1954] sm:$0xff]
    %v4195 = vld [vmem:[%s1954 + $0x8] sm:$0xff]
    %v4196 = vld [vmem:[%s1954 + $0x10] sm:$0xff]
    %v4197 = vld [vmem:[%s1954 + $0x18] sm:$0xff]
    %v4198 = vunpack.c.l.bf16 %v4194
    %v4199 = vunpack.c.h.bf16 %v4194
    %v4200 = vunpack.c.l.bf16 %v4195
    %v4201 = vunpack.c.h.bf16 %v4195
    %v4202 = vunpack.c.l.bf16 %v4196
    %v4203 = vunpack.c.h.bf16 %v4196
    %v4204 = vunpack.c.l.bf16 %v4197
    %v4205 = vunpack.c.h.bf16 %v4197
    %4206 = vmatprep.subr.bf16.mxu0 %v3187
    %4207 = vmatpush1.bf16.msra.mxu0 %v3186
    %4208 = vmatprep.subr.bf16.mxu0 %v3183
    %4209 = vmatpush1.bf16.msra.mxu0 %v3182
    %4210 = vmatprep.subr.bf16.mxu0 %v3179
    %4211 = vmatpush1.bf16.msra.mxu0 %v3178
    %4212 = vmatprep.subr.bf16.mxu0 %v3175
    %4213 = vmatpush1.bf16.msra.mxu0 %v3174
    %4214 = vmatprep.subr.bf16.mxu0 %v3171
    %4215 = vmatpush1.bf16.msra.mxu0 %v3170
    %4216 = vmatprep.subr.bf16.mxu0 %v3167
    %4217 = vmatpush1.bf16.msra.mxu0 %v3166
    %4218 = vmatprep.subr.bf16.mxu0 %v3163
    %4219 = vmatpush1.bf16.msra.mxu0 %v3162
    %4220 = vmatprep.subr.bf16.mxu0 %v3159
    %4221 = vmatpush1.bf16.msra.mxu0 %v3158
    %4222 = vmatprep.subr.bf16.mxu0 0
    %4223 = vmatpush2.bf16.msra.mxu0 0
    %4224 = vmatprep.subr.bf16.mxu0 0
    %4225 = vmatpush2.bf16.msra.mxu0 0
    %4226 = vmatprep.subr.bf16.mxu0 0
    %4227 = vmatpush2.bf16.msra.mxu0 0
    %4228 = vmatprep.subr.bf16.mxu0 0
    %4229 = vmatpush2.bf16.msra.mxu0 0
    %4230 = vmatprep.subr.bf16.mxu0 0
    %4231 = vmatpush2.bf16.msra.mxu0 0
    %4232 = vmatprep.subr.bf16.mxu0 0
    %4233 = vmatpush2.bf16.msra.mxu0 0
    %4234 = vmatprep.subr.bf16.mxu0 0
    %4235 = vmatpush2.bf16.msra.mxu0 0
    %4236 = vmatprep.subr.bf16.mxu0 0
    %4237 = vmatpush2.bf16.msra.mxu0 0
    %4238 = vmatprep.mubr.bf16.mxu0 0
    %4239 = vmatmul.mubr.bf16.gmra.mxu0 %v4184
    %v4240 = vpop.f32.mrf.mxu0
    %v4241 = vadd.f32 0.0, %v4240
    %v4242 = vpop.f32.mrf.mxu0
    %v4243 = vadd.f32 0.0, %v4242
    %v4244 = vpop.f32.mrf.mxu0
    %v4245 = vadd.f32 0.0, %v4244
    %v4246 = vpop.f32.mrf.mxu0
    %v4247 = vadd.f32 0.0, %v4246
    %4248 = vdwg.mxu0
    %4249 = vmatprep.subr.bf16.mxu0 %v3189
    %4250 = vmatpush1.bf16.msra.mxu0 %v3188
    %4251 = vmatprep.subr.bf16.mxu0 %v3185
    %4252 = vmatpush1.bf16.msra.mxu0 %v3184
    %4253 = vmatprep.subr.bf16.mxu0 %v3181
    %4254 = vmatpush1.bf16.msra.mxu0 %v3180
    %4255 = vmatprep.subr.bf16.mxu0 %v3177
    %4256 = vmatpush1.bf16.msra.mxu0 %v3176
    %4257 = vmatprep.subr.bf16.mxu0 %v3173
    %4258 = vmatpush1.bf16.msra.mxu0 %v3172
    %4259 = vmatprep.subr.bf16.mxu0 %v3169
    %4260 = vmatpush1.bf16.msra.mxu0 %v3168
    %4261 = vmatprep.subr.bf16.mxu0 %v3165
    %4262 = vmatpush1.bf16.msra.mxu0 %v3164
    %4263 = vmatprep.subr.bf16.mxu0 %v3161
    %4264 = vmatpush1.bf16.msra.mxu0 %v3160
    %4265 = vmatprep.subr.bf16.mxu0 0
    %4266 = vmatpush2.bf16.msra.mxu0 0
    %4267 = vmatprep.subr.bf16.mxu0 0
    %4268 = vmatpush2.bf16.msra.mxu0 0
    %4269 = vmatprep.subr.bf16.mxu0 0
    %4270 = vmatpush2.bf16.msra.mxu0 0
    %4271 = vmatprep.subr.bf16.mxu0 0
    %4272 = vmatpush2.bf16.msra.mxu0 0
    %4273 = vmatprep.subr.bf16.mxu0 0
    %4274 = vmatpush2.bf16.msra.mxu0 0
    %4275 = vmatprep.subr.bf16.mxu0 0
    %4276 = vmatpush2.bf16.msra.mxu0 0
    %4277 = vmatprep.subr.bf16.mxu0 0
    %4278 = vmatpush2.bf16.msra.mxu0 0
    %4279 = vmatprep.subr.bf16.mxu0 0
    %4280 = vmatpush2.bf16.msra.mxu0 0
    %4281 = vmatprep.mubr.bf16.mxu0 0
    %4282 = vmatmul.mubr.bf16.gmra.mxu0 %v4184
    %v4283 = vpop.f32.mrf.mxu0
    %v4284 = vadd.f32 0.0, %v4283
    %v4285 = vpop.f32.mrf.mxu0
    %v4286 = vadd.f32 0.0, %v4285
    %v4287 = vpop.f32.mrf.mxu0
    %v4288 = vadd.f32 0.0, %v4287
    %v4289 = vpop.f32.mrf.mxu0
    %v4290 = vadd.f32 0.0, %v4289
    %4291 = vdwg.mxu0
    %v4292 = vadd.f32 %v4198, %v4241
    %v4293 = vadd.f32 %v4199, %v4243
    %v4294 = vadd.f32 %v4200, %v4284
    %v4295 = vadd.f32 %v4201, %v4286
    %v4296 = vadd.f32 %v4202, %v4245
    %v4297 = vadd.f32 %v4203, %v4247
    %v4298 = vadd.f32 %v4204, %v4288
    %v4299 = vadd.f32 %v4205, %v4290
    %v4300 = vxor.u32 %v4292, 2147483648
    %v4301 = vxor.u32 %v4293, 2147483648
    %v4302 = vxor.u32 %v4294, 2147483648
    %v4303 = vxor.u32 %v4296, 2147483648
    %v4304 = vxor.u32 %v4297, 2147483648
    %v4305 = vxor.u32 %v4298, 2147483648
    %v4306 = vmul.f32 %v4300, 1.442695
    %v4307 = vpow.pop %v4306
    %v4308 = vmul.f32 %v4301, 1.442695
    %v4309 = vpow.pop %v4308
    %v4310 = vmul.f32 %v4302, 1.442695
    %v4311 = vpow.pop %v4310
    %v4312 = vmul.f32 %v4303, 1.442695
    %v4313 = vpow.pop %v4312
    %v4314 = vmul.f32 %v4304, 1.442695
    %v4315 = vpow.pop %v4314
    %v4316 = vmul.f32 %v4305, 1.442695
    %v4317 = vpow.pop %v4316
    %v4318 = vadd.f32 %v4307, 1.0
    %v4319 = vadd.f32 %v4309, 1.0
    %v4320 = vadd.f32 %v4311, 1.0
    %v4321 = vadd.f32 %v4313, 1.0
    %v4322 = vadd.f32 %v4315, 1.0
    %v4323 = vadd.f32 %v4317, 1.0
    %v4324 = vrcp.pop %v4318
    %v4325 = vmul.f32 1.0, %v4324
    %v4326 = vrcp.pop %v4319
    %v4327 = vmul.f32 1.0, %v4326
    %v4328 = vrcp.pop %v4320
    %v4329 = vmul.f32 1.0, %v4328
    %v4330 = vrcp.pop %v4321
    %v4331 = vmul.f32 1.0, %v4330
    %v4332 = vrcp.pop %v4322
    %v4333 = vmul.f32 1.0, %v4332
    %v4334 = vrcp.pop %v4323
    %v4335 = vmul.f32 1.0, %v4334
    %v4336 = vtanh.pop %v4295
    %v4337 = vtanh.pop %v4299
    %v4338 = vmul.f32 %v4327, %v4178
    %v4339 = vmul.f32 %v4333, %v4179
    %v4340 = vmul.f32 %v4325, %v4336
    %v4341 = vmul.f32 %v4331, %v4337
    %v4342 = vadd.f32 %v4338, %v4340
    %v4343 = vadd.f32 %v4339, %v4341
    %v4344 = vtanh.pop %v4342
    %v4345 = vtanh.pop %v4343
    %v4346 = vmul.f32 %v4329, %v4344
    %v4347 = vmul.f32 %v4335, %v4345
    %v4348 = vpack.c.bf16 %v4347, %v4346
    %v4350 = vunpack.c.l.b16 %v4348
    %v4351 = vunpack.c.h.b16 %v4348
    %v4352 = vpack.c.b16 %v4350, %v4350
    %v4353 = vpack.c.b16 %v4351, %v4351
    %4356 = vst [vmem:[%s2117] sm:$0xf] %v4352
    %4357 = vst [vmem:[%s2117 + $0x4] sm:$0xf] %v4353
    %v4358 = vld [vmem:[%s2120] sm:$0xff]
    %v4359 = vld [vmem:[%s2120 + $0x8] sm:$0xff]
    %v4360 = vld [vmem:[%s2120 + $0x10] sm:$0xff]
    %v4361 = vld [vmem:[%s2120 + $0x18] sm:$0xff]
    %v4362 = vunpack.c.l.bf16 %v4358
    %v4363 = vunpack.c.h.bf16 %v4358
    %v4364 = vunpack.c.l.bf16 %v4359
    %v4365 = vunpack.c.h.bf16 %v4359
    %v4366 = vunpack.c.l.bf16 %v4360
    %v4367 = vunpack.c.h.bf16 %v4360
    %v4368 = vunpack.c.l.bf16 %v4361
    %v4369 = vunpack.c.h.bf16 %v4361
    %4370 = vmatprep.subr.bf16.mxu0 %v3187
    %4371 = vmatpush1.bf16.msra.mxu0 %v3186
    %4372 = vmatprep.subr.bf16.mxu0 %v3183
    %4373 = vmatpush1.bf16.msra.mxu0 %v3182
    %4374 = vmatprep.subr.bf16.mxu0 %v3179
    %4375 = vmatpush1.bf16.msra.mxu0 %v3178
    %4376 = vmatprep.subr.bf16.mxu0 %v3175
    %4377 = vmatpush1.bf16.msra.mxu0 %v3174
    %4378 = vmatprep.subr.bf16.mxu0 %v3171
    %4379 = vmatpush1.bf16.msra.mxu0 %v3170
    %4380 = vmatprep.subr.bf16.mxu0 %v3167
    %4381 = vmatpush1.bf16.msra.mxu0 %v3166
    %4382 = vmatprep.subr.bf16.mxu0 %v3163
    %4383 = vmatpush1.bf16.msra.mxu0 %v3162
    %4384 = vmatprep.subr.bf16.mxu0 %v3159
    %4385 = vmatpush1.bf16.msra.mxu0 %v3158
    %4386 = vmatprep.subr.bf16.mxu0 0
    %4387 = vmatpush2.bf16.msra.mxu0 0
    %4388 = vmatprep.subr.bf16.mxu0 0
    %4389 = vmatpush2.bf16.msra.mxu0 0
    %4390 = vmatprep.subr.bf16.mxu0 0
    %4391 = vmatpush2.bf16.msra.mxu0 0
    %4392 = vmatprep.subr.bf16.mxu0 0
    %4393 = vmatpush2.bf16.msra.mxu0 0
    %4394 = vmatprep.subr.bf16.mxu0 0
    %4395 = vmatpush2.bf16.msra.mxu0 0
    %4396 = vmatprep.subr.bf16.mxu0 0
    %4397 = vmatpush2.bf16.msra.mxu0 0
    %4398 = vmatprep.subr.bf16.mxu0 0
    %4399 = vmatpush2.bf16.msra.mxu0 0
    %4400 = vmatprep.subr.bf16.mxu0 0
    %4401 = vmatpush2.bf16.msra.mxu0 0
    %4402 = vmatprep.mubr.bf16.mxu0 0
    %4403 = vmatmul.mubr.bf16.gmra.mxu0 %v4348
    %v4404 = vpop.f32.mrf.mxu0
    %v4405 = vadd.f32 0.0, %v4404
    %v4406 = vpop.f32.mrf.mxu0
    %v4407 = vadd.f32 0.0, %v4406
    %v4408 = vpop.f32.mrf.mxu0
    %v4409 = vadd.f32 0.0, %v4408
    %v4410 = vpop.f32.mrf.mxu0
    %v4411 = vadd.f32 0.0, %v4410
    %4412 = vdwg.mxu0
    %4413 = vmatprep.subr.bf16.mxu0 %v3189
    %4414 = vmatpush1.bf16.msra.mxu0 %v3188
    %4415 = vmatprep.subr.bf16.mxu0 %v3185
    %4416 = vmatpush1.bf16.msra.mxu0 %v3184
    %4417 = vmatprep.subr.bf16.mxu0 %v3181
    %4418 = vmatpush1.bf16.msra.mxu0 %v3180
    %4419 = vmatprep.subr.bf16.mxu0 %v3177
    %4420 = vmatpush1.bf16.msra.mxu0 %v3176
    %4421 = vmatprep.subr.bf16.mxu0 %v3173
    %4422 = vmatpush1.bf16.msra.mxu0 %v3172
    %4423 = vmatprep.subr.bf16.mxu0 %v3169
    %4424 = vmatpush1.bf16.msra.mxu0 %v3168
    %4425 = vmatprep.subr.bf16.mxu0 %v3165
    %4426 = vmatpush1.bf16.msra.mxu0 %v3164
    %4427 = vmatprep.subr.bf16.mxu0 %v3161
    %4428 = vmatpush1.bf16.msra.mxu0 %v3160
    %4429 = vmatprep.subr.bf16.mxu0 0
    %4430 = vmatpush2.bf16.msra.mxu0 0
    %4431 = vmatprep.subr.bf16.mxu0 0
    %4432 = vmatpush2.bf16.msra.mxu0 0
    %4433 = vmatprep.subr.bf16.mxu0 0
    %4434 = vmatpush2.bf16.msra.mxu0 0
    %4435 = vmatprep.subr.bf16.mxu0 0
    %4436 = vmatpush2.bf16.msra.mxu0 0
    %4437 = vmatprep.subr.bf16.mxu0 0
    %4438 = vmatpush2.bf16.msra.mxu0 0
    %4439 = vmatprep.subr.bf16.mxu0 0
    %4440 = vmatpush2.bf16.msra.mxu0 0
    %4441 = vmatprep.subr.bf16.mxu0 0
    %4442 = vmatpush2.bf16.msra.mxu0 0
    %4443 = vmatprep.subr.bf16.mxu0 0
    %4444 = vmatpush2.bf16.msra.mxu0 0
    %4445 = vmatprep.mubr.bf16.mxu0 0
    %4446 = vmatmul.mubr.bf16.gmra.mxu0 %v4348
    %v4447 = vpop.f32.mrf.mxu0
    %v4448 = vadd.f32 0.0, %v4447
    %v4449 = vpop.f32.mrf.mxu0
    %v4450 = vadd.f32 0.0, %v4449
    %v4451 = vpop.f32.mrf.mxu0
    %v4452 = vadd.f32 0.0, %v4451
    %v4453 = vpop.f32.mrf.mxu0
    %v4454 = vadd.f32 0.0, %v4453
    %4455 = vdwg.mxu0
    %v4456 = vadd.f32 %v4362, %v4405
    %v4457 = vadd.f32 %v4363, %v4407
    %v4458 = vadd.f32 %v4364, %v4448
    %v4459 = vadd.f32 %v4365, %v4450
    %v4460 = vadd.f32 %v4366, %v4409
    %v4461 = vadd.f32 %v4367, %v4411
    %v4462 = vadd.f32 %v4368, %v4452
    %v4463 = vadd.f32 %v4369, %v4454
    %v4464 = vxor.u32 %v4456, 2147483648
    %v4465 = vxor.u32 %v4457, 2147483648
    %v4466 = vxor.u32 %v4458, 2147483648
    %v4467 = vxor.u32 %v4460, 2147483648
    %v4468 = vxor.u32 %v4461, 2147483648
    %v4469 = vxor.u32 %v4462, 2147483648
    %v4470 = vmul.f32 %v4464, 1.442695
    %v4471 = vpow.pop %v4470
    %v4472 = vmul.f32 %v4465, 1.442695
    %v4473 = vpow.pop %v4472
    %v4474 = vmul.f32 %v4466, 1.442695
    %v4475 = vpow.pop %v4474
    %v4476 = vmul.f32 %v4467, 1.442695
    %v4477 = vpow.pop %v4476
    %v4478 = vmul.f32 %v4468, 1.442695
    %v4479 = vpow.pop %v4478
    %v4480 = vmul.f32 %v4469, 1.442695
    %v4481 = vpow.pop %v4480
    %v4482 = vadd.f32 %v4471, 1.0
    %v4483 = vadd.f32 %v4473, 1.0
    %v4484 = vadd.f32 %v4475, 1.0
    %v4485 = vadd.f32 %v4477, 1.0
    %v4486 = vadd.f32 %v4479, 1.0
    %v4487 = vadd.f32 %v4481, 1.0
    %v4488 = vrcp.pop %v4482
    %v4489 = vmul.f32 1.0, %v4488
    %v4490 = vrcp.pop %v4483
    %v4491 = vmul.f32 1.0, %v4490
    %v4492 = vrcp.pop %v4484
    %v4493 = vmul.f32 1.0, %v4492
    %v4494 = vrcp.pop %v4485
    %v4495 = vmul.f32 1.0, %v4494
    %v4496 = vrcp.pop %v4486
    %v4497 = vmul.f32 1.0, %v4496
    %v4498 = vrcp.pop %v4487
    %v4499 = vmul.f32 1.0, %v4498
    %v4500 = vtanh.pop %v4459
    %v4501 = vtanh.pop %v4463
    %v4502 = vmul.f32 %v4491, %v4342
    %v4503 = vmul.f32 %v4497, %v4343
    %v4504 = vmul.f32 %v4489, %v4500
    %v4505 = vmul.f32 %v4495, %v4501
    %v4506 = vadd.f32 %v4502, %v4504
    %v4507 = vadd.f32 %v4503, %v4505
    %v4508 = vtanh.pop %v4506
    %v4509 = vtanh.pop %v4507
    %v4510 = vmul.f32 %v4493, %v4508
    %v4511 = vmul.f32 %v4499, %v4509
    %v4512 = vpack.c.bf16 %v4511, %v4510
    %v4514 = vunpack.c.l.b16 %v4512
    %v4515 = vunpack.c.h.b16 %v4512
    %v4516 = vpack.c.b16 %v4514, %v4514
    %v4517 = vpack.c.b16 %v4515, %v4515
    %4520 = vst [vmem:[%s2283] sm:$0xf] %v4516
    %4521 = vst [vmem:[%s2283 + $0x4] sm:$0xf] %v4517
    %s4522 = scalar_lea.vmem %s10, 16
    %4523 = vst [vmem:[%s4522] sm:$0xff] %v4510
    %4524 = vst [vmem:[%s4522 + $0x8] sm:$0xff] %v4511
    %s4525 = scalar_lea.vmem %s11, 16
    %4526 = vst [vmem:[%s4525] sm:$0xff] %v4506
    %4527 = vst [vmem:[%s4525 + $0x8] sm:$0xff] %v4507
  $region41: #{lstm_generator_forward.1} parent=0 // pred_fallthru
    _
  %v4528 = vld [vmem:[#allocation3] sm:$0xf]
  %v4529 = vld [vmem:[#allocation3 + $0x4] sm:$0xf]
  %v4530 = vld [vmem:[#allocation3 + $0x8] sm:$0xf]
  %v4531 = vld [vmem:[#allocation3 + $0xc] sm:$0xf]
  %v4532 = vld [vmem:[#allocation3 + $0x10] sm:$0xf]
  %v4533 = vld [vmem:[#allocation3 + $0x14] sm:$0xf]
  %v4534 = vld [vmem:[#allocation3 + $0x18] sm:$0xf]
  %v4535 = vld [vmem:[#allocation3 + $0x1c] sm:$0xf]
  %v4536 = vld [vmem:[#allocation3 + $0x20] sm:$0xf]
  %v4537 = vld [vmem:[#allocation3 + $0x24] sm:$0xf]
  %v4538 = vld [vmem:[#allocation3 + $0x28] sm:$0xf]
  %v4539 = vld [vmem:[#allocation3 + $0x2c] sm:$0xf]
  %v4540 = vld [vmem:[#allocation3 + $0x30] sm:$0xf]
  %v4541 = vld [vmem:[#allocation3 + $0x34] sm:$0xf]
  %v4542 = vld [vmem:[#allocation3 + $0x38] sm:$0xf]
  %v4543 = vld [vmem:[#allocation3 + $0x3c] sm:$0xf]
  %v4544 = vld [vmem:[%s7] sm:$0xf]
  %v4545 = vld [vmem:[%s7 + $0x4] sm:$0xf]
  %v4546 = vld [vmem:[%s7 + $0x8] sm:$0xf]
  %v4547 = vld [vmem:[%s7 + $0xc] sm:$0xf]
  %v4548 = vld [vmem:[%s7 + $0x10] sm:$0xf]
  %v4549 = vld [vmem:[%s7 + $0x14] sm:$0xf]
  %v4550 = vld [vmem:[%s7 + $0x18] sm:$0xf]
  %v4551 = vld [vmem:[%s7 + $0x1c] sm:$0xf]
  %v4552 = vld [vmem:[%s7 + $0x20] sm:$0xf]
  %v4553 = vld [vmem:[%s7 + $0x24] sm:$0xf]
  %v4554 = vld [vmem:[%s7 + $0x28] sm:$0xf]
  %v4555 = vld [vmem:[%s7 + $0x2c] sm:$0xf]
  %v4556 = vld [vmem:[%s7 + $0x30] sm:$0xf]
  %v4557 = vld [vmem:[%s7 + $0x34] sm:$0xf]
  %v4558 = vld [vmem:[%s7 + $0x38] sm:$0xf]
  %v4559 = vld [vmem:[%s7 + $0x3c] sm:$0xf]
  %v4560 = vld [vmem:[%s8] sm:$0x1]
  %v4562 = vlaneseq
  %v4563 = vshrl.u32 %v4562, 7
  %v4564 = vsub.s32 0, %v4563
  %v4565 = vrot.slane %v4560, %v4564
  %v4583 = vunpack.c.l.b16 %v4528
  %v4584 = vunpack.c.l.b16 %v4529
  %v4585 = vunpack.c.l.b16 %v4530
  %v4586 = vunpack.c.l.b16 %v4531
  %v4587 = vunpack.c.l.b16 %v4532
  %v4588 = vunpack.c.l.b16 %v4533
  %v4589 = vunpack.c.l.b16 %v4534
  %v4590 = vunpack.c.l.b16 %v4535
  %v4591 = vunpack.c.l.b16 %v4536
  %v4592 = vunpack.c.l.b16 %v4537
  %v4593 = vunpack.c.l.b16 %v4538
  %v4594 = vunpack.c.l.b16 %v4539
  %v4595 = vunpack.c.l.b16 %v4540
  %v4596 = vunpack.c.l.b16 %v4541
  %v4597 = vunpack.c.l.b16 %v4542
  %v4598 = vunpack.c.l.b16 %v4543
  %v4599 = vpack.c.b16 %v4584, %v4583
  %v4600 = vpack.c.b16 %v4586, %v4585
  %v4601 = vpack.c.b16 %v4588, %v4587
  %v4602 = vpack.c.b16 %v4590, %v4589
  %v4603 = vpack.c.b16 %v4592, %v4591
  %v4604 = vpack.c.b16 %v4594, %v4593
  %v4605 = vpack.c.b16 %v4596, %v4595
  %v4606 = vpack.c.b16 %v4598, %v4597
  %v4631 = vunpack.c.l.b16 %v4544
  %v4632 = vunpack.c.l.b16 %v4545
  %v4633 = vunpack.c.l.b16 %v4546
  %v4634 = vunpack.c.l.b16 %v4547
  %v4635 = vunpack.c.l.b16 %v4548
  %v4636 = vunpack.c.l.b16 %v4549
  %v4637 = vunpack.c.l.b16 %v4550
  %v4638 = vunpack.c.l.b16 %v4551
  %v4639 = vunpack.c.l.b16 %v4552
  %v4640 = vunpack.c.l.b16 %v4553
  %v4641 = vunpack.c.l.b16 %v4554
  %v4642 = vunpack.c.l.b16 %v4555
  %v4643 = vunpack.c.l.b16 %v4556
  %v4644 = vunpack.c.l.b16 %v4557
  %v4645 = vunpack.c.l.b16 %v4558
  %v4646 = vunpack.c.l.b16 %v4559
  %v4647 = vpack.c.b16 %v4632, %v4631
  %v4648 = vpack.c.b16 %v4634, %v4633
  %v4649 = vpack.c.b16 %v4636, %v4635
  %v4650 = vpack.c.b16 %v4638, %v4637
  %v4651 = vpack.c.b16 %v4640, %v4639
  %v4652 = vpack.c.b16 %v4642, %v4641
  %v4653 = vpack.c.b16 %v4644, %v4643
  %v4654 = vpack.c.b16 %v4646, %v4645
  %4663 = vmatprep.subr.bf16.mxu0 0
  %4664 = vmatpush1.bf16.msra.mxu0 %v4654
  %4665 = vmatprep.subr.bf16.mxu0 0
  %4666 = vmatpush1.bf16.msra.mxu0 %v4653
  %4667 = vmatprep.subr.bf16.mxu0 0
  %4668 = vmatpush1.bf16.msra.mxu0 %v4652
  %4669 = vmatprep.subr.bf16.mxu0 0
  %4670 = vmatpush1.bf16.msra.mxu0 %v4651
  %4671 = vmatprep.subr.bf16.mxu0 0
  %4672 = vmatpush1.bf16.msra.mxu0 %v4650
  %4673 = vmatprep.subr.bf16.mxu0 0
  %4674 = vmatpush1.bf16.msra.mxu0 %v4649
  %4675 = vmatprep.subr.bf16.mxu0 0
  %4676 = vmatpush1.bf16.msra.mxu0 %v4648
  %4677 = vmatprep.subr.bf16.mxu0 0
  %4678 = vmatpush1.bf16.msra.mxu0 %v4647
  %4679 = vmatprep.subr.bf16.mxu0 0
  %4680 = vmatpush2.bf16.msra.mxu0 0
  %4681 = vmatprep.subr.bf16.mxu0 0
  %4682 = vmatpush2.bf16.msra.mxu0 0
  %4683 = vmatprep.subr.bf16.mxu0 0
  %4684 = vmatpush2.bf16.msra.mxu0 0
  %4685 = vmatprep.subr.bf16.mxu0 0
  %4686 = vmatpush2.bf16.msra.mxu0 0
  %4687 = vmatprep.subr.bf16.mxu0 0
  %4688 = vmatpush2.bf16.msra.mxu0 0
  %4689 = vmatprep.subr.bf16.mxu0 0
  %4690 = vmatpush2.bf16.msra.mxu0 0
  %4691 = vmatprep.subr.bf16.mxu0 0
  %4692 = vmatpush2.bf16.msra.mxu0 0
  %4693 = vmatprep.subr.bf16.mxu0 0
  %4694 = vmatpush2.bf16.msra.mxu0 0
  %4695 = vmatprep.mubr.bf16.mxu0 0
  %4696 = vmatmul.mubr.bf16.gmra.mxu0 %v4599
  %v4697 = vpop.f32.mrf.mxu0
  %v4698 = vadd.f32 %v4565, %v4697
  %v4699 = vpop.f32.mrf.mxu0
  %v4700 = vpop.f32.mrf.mxu0
  %v4701 = vadd.f32 %v4565, %v4700
  %v4702 = vpop.f32.mrf.mxu0
  %4703 = vmatprep.mubr.bf16.mxu0 0
  %4704 = vmatmul.mubr.bf16.gmra.mxu0 %v4600
  %v4705 = vpop.f32.mrf.mxu0
  %v4706 = vadd.f32 %v4565, %v4705
  %v4707 = vpop.f32.mrf.mxu0
  %v4708 = vpop.f32.mrf.mxu0
  %v4709 = vadd.f32 %v4565, %v4708
  %v4710 = vpop.f32.mrf.mxu0
  %4711 = vmatprep.mubr.bf16.mxu0 0
  %4712 = vmatmul.mubr.bf16.gmra.mxu0 %v4601
  %v4713 = vpop.f32.mrf.mxu0
  %v4714 = vadd.f32 %v4565, %v4713
  %v4715 = vpop.f32.mrf.mxu0
  %v4716 = vpop.f32.mrf.mxu0
  %v4717 = vadd.f32 %v4565, %v4716
  %v4718 = vpop.f32.mrf.mxu0
  %4719 = vmatprep.mubr.bf16.mxu0 0
  %4720 = vmatmul.mubr.bf16.gmra.mxu0 %v4602
  %v4721 = vpop.f32.mrf.mxu0
  %v4722 = vadd.f32 %v4565, %v4721
  %v4723 = vpop.f32.mrf.mxu0
  %v4724 = vpop.f32.mrf.mxu0
  %v4725 = vadd.f32 %v4565, %v4724
  %v4726 = vpop.f32.mrf.mxu0
  %4727 = vmatprep.mubr.bf16.mxu0 0
  %4728 = vmatmul.mubr.bf16.gmra.mxu0 %v4603
  %v4729 = vpop.f32.mrf.mxu0
  %v4730 = vadd.f32 %v4565, %v4729
  %v4731 = vpop.f32.mrf.mxu0
  %v4732 = vpop.f32.mrf.mxu0
  %v4733 = vadd.f32 %v4565, %v4732
  %v4734 = vpop.f32.mrf.mxu0
  %4735 = vmatprep.mubr.bf16.mxu0 0
  %4736 = vmatmul.mubr.bf16.gmra.mxu0 %v4604
  %v4737 = vpop.f32.mrf.mxu0
  %v4738 = vadd.f32 %v4565, %v4737
  %v4739 = vpop.f32.mrf.mxu0
  %v4740 = vpop.f32.mrf.mxu0
  %v4741 = vadd.f32 %v4565, %v4740
  %v4742 = vpop.f32.mrf.mxu0
  %4743 = vmatprep.mubr.bf16.mxu0 0
  %4744 = vmatmul.mubr.bf16.gmra.mxu0 %v4605
  %v4745 = vpop.f32.mrf.mxu0
  %v4746 = vadd.f32 %v4565, %v4745
  %v4747 = vpop.f32.mrf.mxu0
  %v4748 = vpop.f32.mrf.mxu0
  %v4749 = vadd.f32 %v4565, %v4748
  %v4750 = vpop.f32.mrf.mxu0
  %4751 = vmatprep.mubr.bf16.mxu0 0
  %4752 = vmatmul.mubr.bf16.gmra.mxu0 %v4606
  %v4753 = vpop.f32.mrf.mxu0
  %v4754 = vadd.f32 %v4565, %v4753
  %v4755 = vpop.f32.mrf.mxu0
  %v4756 = vpop.f32.mrf.mxu0
  %v4757 = vadd.f32 %v4565, %v4756
  %v4758 = vpop.f32.mrf.mxu0
  %4759 = vdwg.mxu0
  %v4760 = vpack.c.bf16 %v4701, %v4698
  %v4761 = vpack.c.bf16 %v4709, %v4706
  %v4762 = vpack.c.bf16 %v4717, %v4714
  %v4763 = vpack.c.bf16 %v4725, %v4722
  %v4764 = vpack.c.bf16 %v4733, %v4730
  %v4765 = vpack.c.bf16 %v4741, %v4738
  %v4766 = vpack.c.bf16 %v4749, %v4746
  %v4767 = vpack.c.bf16 %v4757, %v4754
  %v4776 = vunpack.c.l.b16 %v4760
  %v4777 = vunpack.c.h.b16 %v4760
  %v4778 = vunpack.c.l.b16 %v4761
  %v4779 = vunpack.c.h.b16 %v4761
  %v4780 = vunpack.c.l.b16 %v4762
  %v4781 = vunpack.c.h.b16 %v4762
  %v4782 = vunpack.c.l.b16 %v4763
  %v4783 = vunpack.c.h.b16 %v4763
  %v4784 = vunpack.c.l.b16 %v4764
  %v4785 = vunpack.c.h.b16 %v4764
  %v4786 = vunpack.c.l.b16 %v4765
  %v4787 = vunpack.c.h.b16 %v4765
  %v4788 = vunpack.c.l.b16 %v4766
  %v4789 = vunpack.c.h.b16 %v4766
  %v4790 = vunpack.c.l.b16 %v4767
  %v4791 = vunpack.c.h.b16 %v4767
  %v4792 = vpack.c.b16 %v4776, %v4776
  %v4793 = vpack.c.b16 %v4777, %v4777
  %v4794 = vpack.c.b16 %v4778, %v4778
  %v4795 = vpack.c.b16 %v4779, %v4779
  %v4796 = vpack.c.b16 %v4780, %v4780
  %v4797 = vpack.c.b16 %v4781, %v4781
  %v4798 = vpack.c.b16 %v4782, %v4782
  %v4799 = vpack.c.b16 %v4783, %v4783
  %v4800 = vpack.c.b16 %v4784, %v4784
  %v4801 = vpack.c.b16 %v4785, %v4785
  %v4802 = vpack.c.b16 %v4786, %v4786
  %v4803 = vpack.c.b16 %v4787, %v4787
  %v4804 = vpack.c.b16 %v4788, %v4788
  %v4805 = vpack.c.b16 %v4789, %v4789
  %v4806 = vpack.c.b16 %v4790, %v4790
  %v4807 = vpack.c.b16 %v4791, %v4791
  %4824 = vst [vmem:[%s9] sm:$0xf] %v4792
  %4825 = vst [vmem:[%s9 + $0x4] sm:$0xf] %v4793
  %4826 = vst [vmem:[%s9 + $0x8] sm:$0xf] %v4794
  %4827 = vst [vmem:[%s9 + $0xc] sm:$0xf] %v4795
  %4828 = vst [vmem:[%s9 + $0x10] sm:$0xf] %v4796
  %4829 = vst [vmem:[%s9 + $0x14] sm:$0xf] %v4797
  %4830 = vst [vmem:[%s9 + $0x18] sm:$0xf] %v4798
  %4831 = vst [vmem:[%s9 + $0x1c] sm:$0xf] %v4799
  %4832 = vst [vmem:[%s9 + $0x20] sm:$0xf] %v4800
  %4833 = vst [vmem:[%s9 + $0x24] sm:$0xf] %v4801
  %4834 = vst [vmem:[%s9 + $0x28] sm:$0xf] %v4802
  %4835 = vst [vmem:[%s9 + $0x2c] sm:$0xf] %v4803
  %4836 = vst [vmem:[%s9 + $0x30] sm:$0xf] %v4804
  %4837 = vst [vmem:[%s9 + $0x34] sm:$0xf] %v4805
  %4838 = vst [vmem:[%s9 + $0x38] sm:$0xf] %v4806
  %4839 = vst [vmem:[%s9 + $0x3c] sm:$0xf] %v4807
  // Predicated region
  $region42: #{lstm_generator_forward.1} parent=0 // pred_check
    _
  $region43: #{lstm_generator_forward.1} parent=0 // pred_check_branch
    %4841 = sbr.rel (0) target = $region45
  $region44: #{lstm_generator_forward.1} parent=0 // pred_region
    _
  $region45: #{lstm_generator_forward.1} parent=0 // pred_fallthru
    _
  // Predicated region
  $region46: #{lstm_generator_forward.1} parent=0 // pred_check
    _
  $region47: #{lstm_generator_forward.1} parent=0 // pred_check_branch
    %4843 = sbr.rel (0) target = $region49
  $region48: #{lstm_generator_forward.1} parent=0 // pred_region
    _
  $region49: #{lstm_generator_forward.1} parent=0 // pred_fallthru
    _
  // Predicated region
  $region50: #{lstm_generator_forward.1} parent=0 // pred_check
    _
  $region51: #{lstm_generator_forward.1} parent=0 // pred_check_branch
    %4845 = sbr.rel (0) target = $region53
  $region52: #{lstm_generator_forward.1} parent=0 // pred_region
    _
  $region53: #{lstm_generator_forward.1} parent=0 // pred_fallthru
    _
  // Predicated region
  $region54: #{lstm_generator_forward.1} parent=0 // pred_check
    _
  $region55: #{lstm_generator_forward.1} parent=0 // pred_check_branch
    %4847 = sbr.rel (0) target = $region57
  $region56: #{lstm_generator_forward.1} parent=0 // pred_region
    _
  $region57: #{lstm_generator_forward.1} parent=0 // pred_fallthru
    _
  // Predicated region
  $region58: #{lstm_generator_forward.1} parent=0 // pred_check
    _
  $region59: #{lstm_generator_forward.1} parent=0 // pred_check_branch
    %4849 = sbr.rel (0) target = $region61
  $region60: #{lstm_generator_forward.1} parent=0 // pred_region
    _
  $region61: #{lstm_generator_forward.1} parent=0 // pred_fallthru
    _
  // Predicated region
  $region62: #{lstm_generator_forward.1} parent=0 // pred_check
    _
  $region63: #{lstm_generator_forward.1} parent=0 // pred_check_branch
    %4851 = sbr.rel (0) target = $region65
  $region64: #{lstm_generator_forward.1} parent=0 // pred_region
    _
  $region65: #{lstm_generator_forward.1} parent=0 // pred_fallthru
    _

</llo_original>
